<compile_context>
chip_gen: v6e
topology: v6e:2x2x1
jax: 0.10.0
libtpu: 0.0.40
codegen_flags: <defaults>
</compile_context>

<pallas_src>
import jax
import jax.numpy as jnp
from jax.experimental import pallas as pl
from jax.experimental.pallas import tpu as pltpu

K = 5              # conv kernel size
PAD = 2            # padding=2 (SAME for k=5, stride=1)
EPS = 1e-5         # BatchNorm eps
LANE = 128
SUB = 16           # channel padding granularity (bf16 sublane pack)
ROW_TILE_MAX = 512 # rows (output voxels) per grid step; raise at larger shapes within VMEM budget


def _round_up(x, m):
    return (x + m - 1) // m * m


def matmul_bn_relu_kernel(p_ref, w_ref, scale_ref, shift_ref, o_ref):
    # p_ref     : (Kc_pad, Rt)     bf16  transposed im2col patches (contraction on sublanes)
    # w_ref     : (Co_pad, Kc_pad) bf16  packed conv weights (grid-invariant, stays resident)
    # scale_ref : (Co_pad, 1)      f32   folded BN scale = gamma / sqrt(var + eps)
    # shift_ref : (Co_pad, 1)      f32   folded BN shift = (bias - mean) * scale + beta
    # o_ref     : (Co_pad, Rt)           channel-major output -> dense lane stores, no 128-lane pad
    acc = jnp.dot(w_ref[...], p_ref[...], preferred_element_type=jnp.float32)  # one MXU matmul
    y = acc * scale_ref[...] + shift_ref[...]     # fused (folded) BatchNorm3d, inference stats
    y = jnp.maximum(y, 0.0)                       # ReLU
    o_ref[...] = y.astype(o_ref.dtype)


def conv3d_bn_relu(x_ndhwc, w_oidhw, b, gamma, beta, mean, var, out_dtype=jnp.float32):
    """One conv3d(k=5, pad=2) + BatchNorm3d(eval) + ReLU as a single fused Pallas matmul."""
    N, D, H, W, Cin = x_ndhwc.shape
    Cout = w_oidhw.shape[0]
    R = D * H * W
    rows = N * R
    Kc = K * K * K * Cin

    Kc_pad = _round_up(Kc, LANE)
    Co_pad = _round_up(Cout, SUB)
    rt = min(ROW_TILE_MAX, _round_up(rows, LANE))
    rows_pad = _round_up(rows, rt)

    # ---- fold conv bias + BN running stats into per-channel scale/shift (f32, applied in-kernel)
    scale = gamma / jnp.sqrt(var + EPS)
    shift = (b - mean) * scale + beta
    scale_p = jnp.zeros((Co_pad, 1), jnp.float32).at[:Cout, 0].set(scale)
    shift_p = jnp.zeros((Co_pad, 1), jnp.float32).at[:Cout, 0].set(shift)

    # ---- pack weights: (Cout,Cin,kd,kh,kw) -> (Cout, kd,kh,kw,Cin) -> (Cout, Kc), pad, bf16 ----
    w2 = jnp.transpose(w_oidhw, (0, 2, 3, 4, 1)).reshape(Cout, Kc)
    w_p = jnp.zeros((Co_pad, Kc_pad), jnp.float32).at[:Cout, :Kc].set(w2).astype(jnp.bfloat16)

    # ---- wrapper-side im2col, bf16, transposed to (Kc, rows): contraction dim on sublanes ------
    # TODO(synk): move im2col into the kernel (haloed VMEM slab + shifted reads) and fuse the
    # conv1->conv2 chain in VMEM to remove the ~K^3 HBM read amplification.
    xb = x_ndhwc.astype(jnp.bfloat16)
    xp = jnp.pad(xb, ((0, 0), (PAD, PAD), (PAD, PAD), (PAD, PAD), (0, 0)))
    taps = jnp.stack([xp[:, kd:kd + D, kh:kh + H, kw:kw + W, :]
                      for kd in range(K) for kh in range(K) for kw in range(K)],
                     axis=0)                                   # (K^3, N, D, H, W, Cin)
    patches_t = jnp.transpose(taps, (0, 5, 1, 2, 3, 4)).reshape(Kc, rows)  # tap-major, ch-minor
    patches_t = jnp.pad(patches_t, ((0, Kc_pad - Kc), (0, rows_pad - rows)))

    out = pl.pallas_call(
        matmul_bn_relu_kernel,
        out_shape=jax.ShapeDtypeStruct((Co_pad, rows_pad), out_dtype),
        grid_spec=pltpu.PrefetchScalarGridSpec(
            num_scalar_prefetch=0,
            grid=(rows_pad // rt,),
            in_specs=[
                pl.BlockSpec((Kc_pad, rt), lambda r: (0, r)),      # patches: per-step row tile
                pl.BlockSpec((Co_pad, Kc_pad), lambda r: (0, 0)),  # weights: resident
                pl.BlockSpec((Co_pad, 1), lambda r: (0, 0)),
                pl.BlockSpec((Co_pad, 1), lambda r: (0, 0)),
            ],
            out_specs=pl.BlockSpec((Co_pad, rt), lambda r: (0, r)),
        ),
        compiler_params=pltpu.CompilerParams(
            dimension_semantics=("parallel",),
            vmem_limit_bytes=32 * 1024 * 1024),
    )(patches_t, w_p, scale_p, shift_p)

    # Padded rows hold relu(shift) and padded channels hold 0 -> slice both off before any reuse.
    y = out[:Cout, :rows].reshape(Cout, N, D, H, W)
    return jnp.transpose(y, (1, 2, 3, 4, 0))                       # NDHWC for the next stage


def cnn3d_block(x_ncdhw, p):
    """Pallas implementation of CNN3DBlock.forward (inference semantics)."""
    x = jnp.transpose(x_ncdhw, (0, 2, 3, 4, 1))                    # NCDHW -> NDHWC
    y = conv3d_bn_relu(x, p["w1"], p["b1"], p["g1"], p["bt1"], p["m1"], p["v1"],
                       out_dtype=jnp.bfloat16)                     # inter-layer act stays bf16
    y = conv3d_bn_relu(y, p["w2"], p["b2"], p["g2"], p["bt2"], p["m2"], p["v2"],
                       out_dtype=jnp.float32)
    # TODO(synk): Dropout3d(p=0.05) is identity in eval mode; train-mode channel masking and
    # train-mode BatchNorm batch statistics are not implemented.
    return jnp.transpose(y, (0, 4, 1, 2, 3))                       # NDHWC -> NCDHW


# ---------------------------------------------------------------------------
# Pure-JAX reference (lax.conv) for correctness checking.  Inputs/weights and the inter-layer
# activation are bf16-quantized exactly like the kernel path, so the comparison isolates kernel
# correctness (f32 accumulation order is the only remaining difference).
# ---------------------------------------------------------------------------
def _q(a):
    return a.astype(jnp.bfloat16).astype(jnp.float32)


def _ref_conv_bn_relu(x_ncdhw, w, b, g, bt, m, v):
    y = jax.lax.conv_general_dilated(
        _q(x_ncdhw), _q(w), window_strides=(1, 1, 1), padding=((PAD, PAD),) * 3,
        dimension_numbers=("NCDHW", "OIDHW", "NCDHW"))
    scale = (g / jnp.sqrt(v + EPS))[None, :, None, None, None]
    y = (y + b[None, :, None, None, None] - m[None, :, None, None, None]) * scale \
        + bt[None, :, None, None, None]
    return jnp.maximum(y, 0.0)


def _ref_block(x_ncdhw, p):
    y = _ref_conv_bn_relu(x_ncdhw, p["w1"], p["b1"], p["g1"], p["bt1"], p["m1"], p["v1"])
    y = _q(y)   # kernel keeps the inter-layer activation in bf16
    y = _ref_conv_bn_relu(y, p["w2"], p["b2"], p["g2"], p["bt2"], p["m2"], p["v2"])
    return y


if __name__ == "__main__":
    N, CIN, COUT, D, H, W = 2, 4, 8, 8, 8, 8

    key = jax.random.PRNGKey(0)
    ks = jax.random.split(key, 16)

    params = {
        # conv1: Conv3d(in=4, out=8, k=5, pad=2) weight (Cout, Cin, 5, 5, 5) + bias
        "w1": 0.1 * jax.random.normal(ks[0], (COUT, CIN, K, K, K), jnp.float32),
        "b1": 0.1 * jax.random.normal(ks[1], (COUT,), jnp.float32),
        # bn1 params + running stats (inference)
        "g1": 0.5 + jax.random.uniform(ks[2], (COUT,), jnp.float32),
        "bt1": 0.1 * jax.random.normal(ks[3], (COUT,), jnp.float32),
        "m1": 0.1 * jax.random.normal(ks[4], (COUT,), jnp.float32),
        "v1": 0.5 + jax.random.uniform(ks[5], (COUT,), jnp.float32),
        # conv2: Conv3d(in=8, out=8, k=5, pad=2)
        "w2": 0.1 * jax.random.normal(ks[6], (COUT, COUT, K, K, K), jnp.float32),
        "b2": 0.1 * jax.random.normal(ks[7], (COUT,), jnp.float32),
        # bn2
        "g2": 0.5 + jax.random.uniform(ks[8], (COUT,), jnp.float32),
        "bt2": 0.1 * jax.random.normal(ks[9], (COUT,), jnp.float32),
        "m2": 0.1 * jax.random.normal(ks[10], (COUT,), jnp.float32),
        "v2": 0.5 + jax.random.uniform(ks[11], (COUT,), jnp.float32),
    }

    x = jax.random.normal(ks[12], (N, CIN, D, H, W), jnp.float32)   # NCDHW, like PyTorch

    run = jax.jit(cnn3d_block)
    out = jax.block_until_ready(run(x, params))
    assert out.shape == (N, COUT, D, H, W), out.shape

    ref = jax.block_until_ready(_ref_block(x, params))
    assert jnp.allclose(out, ref, rtol=2e-2, atol=5e-2), float(jnp.max(jnp.abs(out - ref)))

    print("KERNEL_OK")
</pallas_src>

<mosaic_0001>
module attributes {stable_mosaic.version = 11 : i64} {
  func.func @matmul_bn_relu_kernel(%arg0: i32, %arg1: memref<512x512xbf16, #tpu.memory_space<vmem>>, %arg2: memref<16x512xbf16, #tpu.memory_space<vmem>>, %arg3: memref<16x1xf32, #tpu.memory_space<vmem>>, %arg4: memref<16x1xf32, #tpu.memory_space<vmem>>, %arg5: memref<16x512xbf16, #tpu.memory_space<vmem>>) attributes {dimension_semantics = [#tpu.dimension_semantics<parallel>], iteration_bounds = array<i64: 2>, scalar_prefetch = 0 : i64, scratch_operands = 0 : i64, tpu.core_type = #tpu.core_type<tc>, window_params = [{transform_indices = @transform_0, window_bounds = array<i64: 512, 512>}, {pipeline_mode = #tpu.pipeline_mode<synchronous>, transform_indices = @transform_1, window_bounds = array<i64: 16, 512>}, {pipeline_mode = #tpu.pipeline_mode<synchronous>, transform_indices = @transform_2, window_bounds = array<i64: 16, 1>}, {pipeline_mode = #tpu.pipeline_mode<synchronous>, transform_indices = @transform_3, window_bounds = array<i64: 16, 1>}, {transform_indices = @transform_4, window_bounds = array<i64: 16, 512>}]} {
    %c0 = arith.constant 0 : index
    %c0_0 = arith.constant 0 : index
    %0 = vector.load %arg2[%c0, %c0_0] : memref<16x512xbf16, #tpu.memory_space<vmem>>, vector<16x512xbf16>
    %c0_1 = arith.constant 0 : index
    %c0_2 = arith.constant 0 : index
    %1 = vector.load %arg1[%c0_1, %c0_2] : memref<512x512xbf16, #tpu.memory_space<vmem>>, vector<512x512xbf16>
    %cst = arith.constant dense<0.000000e+00> : vector<16x512xf32>
    %2 = tpu.matmul %0, %1, %cst {dimension_numbers = #tpu.dot_dimension_numbers<[1], [0], [0], [1], [0, 0, 1, 1], [], []>} : vector<16x512xbf16>, vector<512x512xbf16>, vector<16x512xf32> -> vector<16x512xf32>
    %c0_3 = arith.constant 0 : index
    %c0_4 = arith.constant 0 : index
    %3 = vector.load %arg3[%c0_3, %c0_4] : memref<16x1xf32, #tpu.memory_space<vmem>>, vector<16x1xf32>
    %4 = vector.broadcast %3 : vector<16x1xf32> to vector<16x512xf32>
    %5 = arith.mulf %2, %4 : vector<16x512xf32>
    %c0_5 = arith.constant 0 : index
    %c0_6 = arith.constant 0 : index
    %6 = vector.load %arg4[%c0_5, %c0_6] : memref<16x1xf32, #tpu.memory_space<vmem>>, vector<16x1xf32>
    %7 = vector.broadcast %6 : vector<16x1xf32> to vector<16x512xf32>
    %8 = arith.addf %5, %7 : vector<16x512xf32>
    %cst_7 = arith.constant 0.000000e+00 : f32
    %9 = vector.broadcast %cst_7 : f32 to vector<16x512xf32>
    %10 = arith.maximumf %8, %9 : vector<16x512xf32>
    %11 = arith.truncf %10 : vector<16x512xf32> to vector<16x512xbf16>
    %c0_8 = arith.constant 0 : index
    %c0_9 = arith.constant 0 : index
    %12 = vector.load %arg5[%c0_8, %c0_9] : memref<16x512xbf16, #tpu.memory_space<vmem>>, vector<16x512xbf16>
    tpu.vector_store %arg5[%c0_8, %c0_9], %11 {strides = array<i32>} : memref<16x512xbf16, #tpu.memory_space<vmem>>, vector<16x512xbf16>,
    return
  }
  func.func @transform_0(%arg0: i32) -> (i32, i32) {
    %c0_i32 = arith.constant 0 : i32
    %c0_i32_0 = arith.constant 0 : i32
    return %c0_i32, %arg0 : i32, i32
  }
  func.func @transform_1(%arg0: i32) -> (i32, i32) {
    %c0_i32 = arith.constant 0 : i32
    %c0_i32_0 = arith.constant 0 : i32
    %c0_i32_1 = arith.constant 0 : i32
    return %c0_i32, %c0_i32_0 : i32, i32
  }
  func.func @transform_2(%arg0: i32) -> (i32, i32) {
    %c0_i32 = arith.constant 0 : i32
    %c0_i32_0 = arith.constant 0 : i32
    %c0_i32_1 = arith.constant 0 : i32
    return %c0_i32, %c0_i32_0 : i32, i32
  }
  func.func @transform_3(%arg0: i32) -> (i32, i32) {
    %c0_i32 = arith.constant 0 : i32
    %c0_i32_0 = arith.constant 0 : i32
    %c0_i32_1 = arith.constant 0 : i32
    return %c0_i32, %c0_i32_0 : i32, i32
  }
  func.func @transform_4(%arg0: i32) -> (i32, i32) {
    %c0_i32 = arith.constant 0 : i32
    %c0_i32_0 = arith.constant 0 : i32
    return %c0_i32, %arg0 : i32, i32
  }
}

module attributes {stable_mosaic.version = 11 : i64} {
  func.func @matmul_bn_relu_kernel(%arg0: i32, %arg1: memref<1024x512xbf16, #tpu.memory_space<vmem>>, %arg2: memref<16x1024xbf16, #tpu.memory_space<vmem>>, %arg3: memref<16x1xf32, #tpu.memory_space<vmem>>, %arg4: memref<16x1xf32, #tpu.memory_space<vmem>>, %arg5: memref<16x512xf32, #tpu.memory_space<vmem>>) attributes {dimension_semantics = [#tpu.dimension_semantics<parallel>], iteration_bounds = array<i64: 2>, scalar_prefetch = 0 : i64, scratch_operands = 0 : i64, tpu.core_type = #tpu.core_type<tc>, window_params = [{transform_indices = @transform_0, window_bounds = array<i64: 1024, 512>}, {pipeline_mode = #tpu.pipeline_mode<synchronous>, transform_indices = @transform_1, window_bounds = array<i64: 16, 1024>}, {pipeline_mode = #tpu.pipeline_mode<synchronous>, transform_indices = @transform_2, window_bounds = array<i64: 16, 1>}, {pipeline_mode = #tpu.pipeline_mode<synchronous>, transform_indices = @transform_3, window_bounds = array<i64: 16, 1>}, {transform_indices = @transform_4, window_bounds = array<i64: 16, 512>}]} {
    %c0 = arith.constant 0 : index
    %c0_0 = arith.constant 0 : index
    %0 = vector.load %arg2[%c0, %c0_0] : memref<16x1024xbf16, #tpu.memory_space<vmem>>, vector<16x1024xbf16>
    %c0_1 = arith.constant 0 : index
    %c0_2 = arith.constant 0 : index
    %1 = vector.load %arg1[%c0_1, %c0_2] : memref<1024x512xbf16, #tpu.memory_space<vmem>>, vector<1024x512xbf16>
    %cst = arith.constant dense<0.000000e+00> : vector<16x512xf32>
    %2 = tpu.matmul %0, %1, %cst {dimension_numbers = #tpu.dot_dimension_numbers<[1], [0], [0], [1], [0, 0, 1, 1], [], []>} : vector<16x1024xbf16>, vector<1024x512xbf16>, vector<16x512xf32> -> vector<16x512xf32>
    %c0_3 = arith.constant 0 : index
    %c0_4 = arith.constant 0 : index
    %3 = vector.load %arg3[%c0_3, %c0_4] : memref<16x1xf32, #tpu.memory_space<vmem>>, vector<16x1xf32>
    %4 = vector.broadcast %3 : vector<16x1xf32> to vector<16x512xf32>
    %5 = arith.mulf %2, %4 : vector<16x512xf32>
    %c0_5 = arith.constant 0 : index
    %c0_6 = arith.constant 0 : index
    %6 = vector.load %arg4[%c0_5, %c0_6] : memref<16x1xf32, #tpu.memory_space<vmem>>, vector<16x1xf32>
    %7 = vector.broadcast %6 : vector<16x1xf32> to vector<16x512xf32>
    %8 = arith.addf %5, %7 : vector<16x512xf32>
    %cst_7 = arith.constant 0.000000e+00 : f32
    %9 = vector.broadcast %cst_7 : f32 to vector<16x512xf32>
    %10 = arith.maximumf %8, %9 : vector<16x512xf32>
    %c0_8 = arith.constant 0 : index
    %c0_9 = arith.constant 0 : index
    %11 = vector.load %arg5[%c0_8, %c0_9] : memref<16x512xf32, #tpu.memory_space<vmem>>, vector<16x512xf32>
    tpu.vector_store %arg5[%c0_8, %c0_9], %10 {strides = array<i32>} : memref<16x512xf32, #tpu.memory_space<vmem>>, vector<16x512xf32>,
    return
  }
  func.func @transform_0(%arg0: i32) -> (i32, i32) {
    %c0_i32 = arith.constant 0 : i32
    %c0_i32_0 = arith.constant 0 : i32
    return %c0_i32, %arg0 : i32, i32
  }
  func.func @transform_1(%arg0: i32) -> (i32, i32) {
    %c0_i32 = arith.constant 0 : i32
    %c0_i32_0 = arith.constant 0 : i32
    %c0_i32_1 = arith.constant 0 : i32
    return %c0_i32, %c0_i32_0 : i32, i32
  }
  func.func @transform_2(%arg0: i32) -> (i32, i32) {
    %c0_i32 = arith.constant 0 : i32
    %c0_i32_0 = arith.constant 0 : i32
    %c0_i32_1 = arith.constant 0 : i32
    return %c0_i32, %c0_i32_0 : i32, i32
  }
  func.func @transform_3(%arg0: i32) -> (i32, i32) {
    %c0_i32 = arith.constant 0 : i32
    %c0_i32_0 = arith.constant 0 : i32
    %c0_i32_1 = arith.constant 0 : i32
    return %c0_i32, %c0_i32_0 : i32, i32
  }
  func.func @transform_4(%arg0: i32) -> (i32, i32) {
    %c0_i32 = arith.constant 0 : i32
    %c0_i32_0 = arith.constant 0 : i32
    return %c0_i32, %arg0 : i32, i32
  }
}

</mosaic_0001>

<llo_original>
// kernel: cnn3d_block.2
$region0: #{cnn3d_block.2}
  #allocation0 [shape = 'u32[]', space=smem, size = 0x4, offset = 0x4, fixed_abs, tag = 'smem constant byte address 0x4 - core index']
  #allocation1 [shape = 'u32[144,128]{1,0:T(1,128)}', space=vmem, size = 0x12000, scoped, tag = 'internal scratch']
  %s0 = inlined_call_operand.vmem [shape: bf16[512,1024], index: 0, kind: input, shape index: {}]
  %s1 = inlined_call_operand.vmem [shape: bf16[16,512], index: 1, kind: input, shape index: {}]
  %s2 = inlined_call_operand.vmem [shape: f32[16,1], index: 2, kind: input, shape index: {}]
  %s3 = inlined_call_operand.vmem [shape: f32[16,1], index: 3, kind: input, shape index: {}]
  %s4 = inlined_call_operand.vmem [shape: bf16[16,1024], index: 4, kind: output, shape index: {}]
  %s5 = sld [smem:[#allocation0]]
  $region91: #{cnn3d_block.2} parent=0
    _
  %s7 = ssub.s32 1, %s5
  %s8 = scalar_select 0, %s7, %s5
  $region1: #{cnn3d_block.2} parent=0
    #allocation2 [shape = 'u8[1048576]{0}', space=vmem, size = 0x100000, scoped, tag = 'input window, operand 0']
    #allocation3 [shape = 'u8[32768]{0}', space=vmem, size = 0x8000, scoped, tag = 'output window, operand 0']
    loop: start=0, step=1, limit=4
    $region2: #{cnn3d_block.2} parent=1 // loop_pre_header
      _
    $region3: #{cnn3d_block.2} parent=1 // loop_header
      %s10 = sphi 0, %s14
      %p11 = scmp.ge.s32.totalorder %s10, 4
      %s20 = sphi 0, %s22
      %s23 = sphi 0, %s20
      %s24 = sphi 0, %s23
      %s40 = sphi 0, %s24
      %s44 = sphi 0, %s44
      %s46 = sphi 0, %s44
      %s47 = sphi 0, %s46
      %s61 = sphi 0, %s47
      %s65 = sphi 0, %s65
      %s67 = sphi 0, %s65
      %s68 = sphi 0, %s67
      %s82 = sphi 0, %s68
      %s86 = sphi 0, %s86
      %s88 = sphi 0, %s86
      %s89 = sphi 0, %s88
      %s103 = sphi 0, %s89
      %s109 = sphi 0, %s111
      %s112 = sphi 0, %s109
      %s113 = sphi 0, %s112
      %s129 = sphi 0, %s113
    $region4: #{cnn3d_block.2} parent=1 // loop_header_branch
      %13 = sbr.rel (%p11) target = $region8
    $region5: #{cnn3d_block.2} parent=1 // loop_body
      %s15 = ssub.s32 %s10, 1
      %s16 = ssub.s32 %s10, 2
      %s17 = sadd.s32 %s10, 1
      %s18 = ssub.s32 %s10, %s17
      %p19 = scmp.eq.s32.totalorder %s18, 0
      %s21 = sadd.s32 %s20, 1
      %s22 = scalar_select %p19, %s20, %s21
      %p25 = pneg %p19
      %p26 = scmp.eq.s32.totalorder %s10, 1
      %p27 = por %p25, %p26
      %p28 = scmp.ne.s32.totalorder %s20, %s23
      %p29 = scmp.eq.s32.totalorder %s10, 0
      %p30 = por %p28, %p29
      %p31 = scmp.ne.s32.totalorder %s20, %s23
      %p32 = scmp.eq.s32.totalorder %s15, 1
      %p33 = por %p31, %p32
      %p34 = scmp.ne.s32.totalorder %s23, %s24
      %p35 = scmp.eq.s32.totalorder %s15, 0
      %p36 = por %p34, %p35
      %p37 = scmp.ne.s32.totalorder %s23, %s24
      %p38 = scmp.eq.s32.totalorder %s16, 1
      %p39 = por %p37, %p38
      %p41 = scmp.ne.s32.totalorder %s24, %s40
      %p42 = scmp.eq.s32.totalorder %s16, 0
      %p43 = por %p41, %p42
      %s45 = sadd.s32 %s44, 1
      %p48 = scmp.eq.s32.totalorder %s10, 1
      %p49 = scmp.ne.s32.totalorder %s44, %s46
      %p50 = scmp.eq.s32.totalorder %s10, 0
      %p51 = por %p49, %p50
      %p52 = scmp.ne.s32.totalorder %s44, %s46
      %p53 = scmp.eq.s32.totalorder %s15, 1
      %p54 = por %p52, %p53
      %p55 = scmp.ne.s32.totalorder %s46, %s47
      %p56 = scmp.eq.s32.totalorder %s15, 0
      %p57 = por %p55, %p56
      %p58 = scmp.ne.s32.totalorder %s46, %s47
      %p59 = scmp.eq.s32.totalorder %s16, 1
      %p60 = por %p58, %p59
      %p62 = scmp.ne.s32.totalorder %s47, %s61
      %p63 = scmp.eq.s32.totalorder %s16, 0
      %p64 = por %p62, %p63
      %s66 = sadd.s32 %s65, 1
      %p69 = scmp.eq.s32.totalorder %s10, 1
      %p70 = scmp.ne.s32.totalorder %s65, %s67
      %p71 = scmp.eq.s32.totalorder %s10, 0
      %p72 = por %p70, %p71
      %p73 = scmp.ne.s32.totalorder %s65, %s67
      %p74 = scmp.eq.s32.totalorder %s15, 1
      %p75 = por %p73, %p74
      %p76 = scmp.ne.s32.totalorder %s67, %s68
      %p77 = scmp.eq.s32.totalorder %s15, 0
      %p78 = por %p76, %p77
      %p79 = scmp.ne.s32.totalorder %s67, %s68
      %p80 = scmp.eq.s32.totalorder %s16, 1
      %p81 = por %p79, %p80
      %p83 = scmp.ne.s32.totalorder %s68, %s82
      %p84 = scmp.eq.s32.totalorder %s16, 0
      %p85 = por %p83, %p84
      %s87 = sadd.s32 %s86, 1
      %p90 = scmp.eq.s32.totalorder %s10, 1
      %p91 = scmp.ne.s32.totalorder %s86, %s88
      %p92 = scmp.eq.s32.totalorder %s10, 0
      %p93 = por %p91, %p92
      %p94 = scmp.ne.s32.totalorder %s86, %s88
      %p95 = scmp.eq.s32.totalorder %s15, 1
      %p96 = por %p94, %p95
      %p97 = scmp.ne.s32.totalorder %s88, %s89
      %p98 = scmp.eq.s32.totalorder %s15, 0
      %p99 = por %p97, %p98
      %p100 = scmp.ne.s32.totalorder %s88, %s89
      %p101 = scmp.eq.s32.totalorder %s16, 1
      %p102 = por %p100, %p101
      %p104 = scmp.ne.s32.totalorder %s89, %s103
      %p105 = scmp.eq.s32.totalorder %s16, 0
      %p106 = por %p104, %p105
      %s107 = ssub.s32 %s10, %s17
      %p108 = scmp.eq.s32.totalorder %s107, 0
      %s110 = sadd.s32 %s109, 1
      %s111 = scalar_select %p108, %s109, %s110
      %p114 = pneg %p108
      %p115 = scmp.eq.s32.totalorder %s10, 1
      %p116 = por %p114, %p115
      %p117 = scmp.ne.s32.totalorder %s109, %s112
      %p118 = scmp.eq.s32.totalorder %s10, 0
      %p119 = por %p117, %p118
      %p120 = scmp.ne.s32.totalorder %s109, %s112
      %p121 = scmp.eq.s32.totalorder %s15, 1
      %p122 = por %p120, %p121
      %p123 = scmp.ne.s32.totalorder %s112, %s113
      %p124 = scmp.eq.s32.totalorder %s15, 0
      %p125 = por %p123, %p124
      %p126 = scmp.ne.s32.totalorder %s112, %s113
      %p127 = scmp.eq.s32.totalorder %s16, 1
      %p128 = por %p126, %p127
      %p130 = scmp.ne.s32.totalorder %s113, %s129
      %p131 = scmp.eq.s32.totalorder %s16, 0
      %p132 = por %p130, %p131
      %p133 = scmp.le.s32.totalorder 1, %s10
      %p134 = scmp.lt.s32.totalorder %s10, 3
      %p135 = pnand %p133, %p134
      %p136 = pneg %p135
      // Predicated region
      $region9: #{cnn3d_block.2} parent=5 // pred_check
        _
      $region10: #{cnn3d_block.2} parent=5 // pred_check_branch
        %138 = sbr.rel (%p135) target = $region12
      $region11: #{cnn3d_block.2} parent=5 // pred_region
        %s139 = ssub.s32 %s10, 1
        // Predicated region
        $region13: #{cnn3d_block.2} parent=11 // pred_check
          %p140 = pneg %p57
        $region14: #{cnn3d_block.2} parent=11 // pred_check_branch
          %142 = sbr.rel (%p140) target = $region16
        $region15: #{cnn3d_block.2} parent=11 // pred_region
          _
        $region16: #{cnn3d_block.2} parent=11 // pred_fallthru
          _
        // Predicated region
        $region17: #{cnn3d_block.2} parent=11 // pred_check
          %p143 = pneg %p78
        $region18: #{cnn3d_block.2} parent=11 // pred_check_branch
          %145 = sbr.rel (%p143) target = $region20
        $region19: #{cnn3d_block.2} parent=11 // pred_region
          _
        $region20: #{cnn3d_block.2} parent=11 // pred_fallthru
          _
        // Predicated region
        $region21: #{cnn3d_block.2} parent=11 // pred_check
          %p146 = pneg %p99
        $region22: #{cnn3d_block.2} parent=11 // pred_check_branch
          %148 = sbr.rel (%p146) target = $region24
        $region23: #{cnn3d_block.2} parent=11 // pred_region
          _
        $region24: #{cnn3d_block.2} parent=11 // pred_fallthru
          _
      $region12: #{cnn3d_block.2} parent=5 // pred_fallthru
        _
      %p149 = scmp.lt.s32.totalorder %s10, 2
      // Predicated region
      $region25: #{cnn3d_block.2} parent=5 // pred_check
        %p150 = pneg %p149
      $region26: #{cnn3d_block.2} parent=5 // pred_check_branch
        %152 = sbr.rel (%p150) target = $region28
      $region27: #{cnn3d_block.2} parent=5 // pred_region
        // Predicated region
        $region29: #{cnn3d_block.2} parent=27 // pred_check
          %p153 = pneg %p30
        $region30: #{cnn3d_block.2} parent=27 // pred_check_branch
          %155 = sbr.rel (%p153) target = $region32
        $region31: #{cnn3d_block.2} parent=27 // pred_region
          %s156 = sand.u32 %s20, 1
          %s157 = sand.u32 %s20, 1
          %s158 = smul.addr %s157, 1024
          %s159 = scalar_lea.vmem [#allocation2], %s158
          %s160 = smul.u32 4, %s10
          %s161 = smul.addr %s160, 4
          %s162 = scalar_lea.vmem %s0, %s161
          // Predicated region
          $region33: #{cnn3d_block.2} parent=31 // pred_check
            _
          $region34: #{cnn3d_block.2} parent=31 // pred_check_branch
            %164 = sbr.rel (0) target = $region36
          $region35: #{cnn3d_block.2} parent=31 // pred_region
            // Predicated region
            $region37: #{cnn3d_block.2} parent=35 // pred_check
              _
            $region38: #{cnn3d_block.2} parent=35 // pred_check_branch
              %166 = sbr.rel (0) target = $region40
            $region39: #{cnn3d_block.2} parent=35 // pred_region
              loop: start=0, step=1, limit=1
              $region41: #{cnn3d_block.2} parent=39 // loop_pre_header
                _
              $region42: #{cnn3d_block.2} parent=39 // loop_header
                %s168 = sphi 0, %s172
                %p169 = scmp.ge.s32.totalorder %s168, 1
                %s173 = sphi %s162, %s162
                %s174 = sphi %s159, %s159
              $region43: #{cnn3d_block.2} parent=39 // loop_header_branch
                %171 = sbr.rel (%p169) target = $region47
              $region44: #{cnn3d_block.2} parent=39 // loop_body
                %v175 = vld [vmem:[%s173] sm:$0xff]
                %176 = vst [vmem:[%s174] sm:$0xff] %v175
                %v177 = vld [vmem:[%s173 + $0x8] sm:$0xff]
                %178 = vst [vmem:[%s174 + $0x8] sm:$0xff] %v177
                %v179 = vld [vmem:[%s173 + $0x20] sm:$0xff]
                %180 = vst [vmem:[%s174 + $0x10] sm:$0xff] %v179
                %v181 = vld [vmem:[%s173 + $0x28] sm:$0xff]
                %182 = vst [vmem:[%s174 + $0x18] sm:$0xff] %v181
                %v183 = vld [vmem:[%s173 + $0x40] sm:$0xff]
                %184 = vst [vmem:[%s174 + $0x20] sm:$0xff] %v183
                %v185 = vld [vmem:[%s173 + $0x48] sm:$0xff]
                %186 = vst [vmem:[%s174 + $0x28] sm:$0xff] %v185
                %v187 = vld [vmem:[%s173 + $0x60] sm:$0xff]
                %188 = vst [vmem:[%s174 + $0x30] sm:$0xff] %v187
                %v189 = vld [vmem:[%s173 + $0x68] sm:$0xff]
                %190 = vst [vmem:[%s174 + $0x38] sm:$0xff] %v189
                %v191 = vld [vmem:[%s173 + $0x80] sm:$0xff]
                %192 = vst [vmem:[%s174 + $0x40] sm:$0xff] %v191
                %v193 = vld [vmem:[%s173 + $0x88] sm:$0xff]
                %194 = vst [vmem:[%s174 + $0x48] sm:$0xff] %v193
                %v195 = vld [vmem:[%s173 + $0xa0] sm:$0xff]
                %196 = vst [vmem:[%s174 + $0x50] sm:$0xff] %v195
                %v197 = vld [vmem:[%s173 + $0xa8] sm:$0xff]
                %198 = vst [vmem:[%s174 + $0x58] sm:$0xff] %v197
                %v199 = vld [vmem:[%s173 + $0xc0] sm:$0xff]
                %200 = vst [vmem:[%s174 + $0x60] sm:$0xff] %v199
                %v201 = vld [vmem:[%s173 + $0xc8] sm:$0xff]
                %202 = vst [vmem:[%s174 + $0x68] sm:$0xff] %v201
                %v203 = vld [vmem:[%s173 + $0xe0] sm:$0xff]
                %204 = vst [vmem:[%s174 + $0x70] sm:$0xff] %v203
                %v205 = vld [vmem:[%s173 + $0xe8] sm:$0xff]
                %206 = vst [vmem:[%s174 + $0x78] sm:$0xff] %v205
                %v207 = vld [vmem:[%s173 + $0x100] sm:$0xff]
                %208 = vst [vmem:[%s174 + $0x80] sm:$0xff] %v207
                %v209 = vld [vmem:[%s173 + $0x108] sm:$0xff]
                %210 = vst [vmem:[%s174 + $0x88] sm:$0xff] %v209
                %v211 = vld [vmem:[%s173 + $0x120] sm:$0xff]
                %212 = vst [vmem:[%s174 + $0x90] sm:$0xff] %v211
                %v213 = vld [vmem:[%s173 + $0x128] sm:$0xff]
                %214 = vst [vmem:[%s174 + $0x98] sm:$0xff] %v213
                %v215 = vld [vmem:[%s173 + $0x140] sm:$0xff]
                %216 = vst [vmem:[%s174 + $0xa0] sm:$0xff] %v215
                %v217 = vld [vmem:[%s173 + $0x148] sm:$0xff]
                %218 = vst [vmem:[%s174 + $0xa8] sm:$0xff] %v217
                %v219 = vld [vmem:[%s173 + $0x160] sm:$0xff]
                %220 = vst [vmem:[%s174 + $0xb0] sm:$0xff] %v219
                %v221 = vld [vmem:[%s173 + $0x168] sm:$0xff]
                %222 = vst [vmem:[%s174 + $0xb8] sm:$0xff] %v221
                %v223 = vld [vmem:[%s173 + $0x180] sm:$0xff]
                %224 = vst [vmem:[%s174 + $0xc0] sm:$0xff] %v223
                %v225 = vld [vmem:[%s173 + $0x188] sm:$0xff]
                %226 = vst [vmem:[%s174 + $0xc8] sm:$0xff] %v225
                %v227 = vld [vmem:[%s173 + $0x1a0] sm:$0xff]
                %228 = vst [vmem:[%s174 + $0xd0] sm:$0xff] %v227
                %v229 = vld [vmem:[%s173 + $0x1a8] sm:$0xff]
                %230 = vst [vmem:[%s174 + $0xd8] sm:$0xff] %v229
                %v231 = vld [vmem:[%s173 + $0x1c0] sm:$0xff]
                %232 = vst [vmem:[%s174 + $0xe0] sm:$0xff] %v231
                %v233 = vld [vmem:[%s173 + $0x1c8] sm:$0xff]
                %234 = vst [vmem:[%s174 + $0xe8] sm:$0xff] %v233
                %v235 = vld [vmem:[%s173 + $0x1e0] sm:$0xff]
                %236 = vst [vmem:[%s174 + $0xf0] sm:$0xff] %v235
                %v237 = vld [vmem:[%s173 + $0x1e8] sm:$0xff]
                %238 = vst [vmem:[%s174 + $0xf8] sm:$0xff] %v237
                %v239 = vld [vmem:[%s173 + $0x200] sm:$0xff]
                %240 = vst [vmem:[%s174 + $0x100] sm:$0xff] %v239
                %v241 = vld [vmem:[%s173 + $0x208] sm:$0xff]
                %242 = vst [vmem:[%s174 + $0x108] sm:$0xff] %v241
                %v243 = vld [vmem:[%s173 + $0x220] sm:$0xff]
                %244 = vst [vmem:[%s174 + $0x110] sm:$0xff] %v243
                %v245 = vld [vmem:[%s173 + $0x228] sm:$0xff]
                %246 = vst [vmem:[%s174 + $0x118] sm:$0xff] %v245
                %v247 = vld [vmem:[%s173 + $0x240] sm:$0xff]
                %248 = vst [vmem:[%s174 + $0x120] sm:$0xff] %v247
                %v249 = vld [vmem:[%s173 + $0x248] sm:$0xff]
                %250 = vst [vmem:[%s174 + $0x128] sm:$0xff] %v249
                %v251 = vld [vmem:[%s173 + $0x260] sm:$0xff]
                %252 = vst [vmem:[%s174 + $0x130] sm:$0xff] %v251
                %v253 = vld [vmem:[%s173 + $0x268] sm:$0xff]
                %254 = vst [vmem:[%s174 + $0x138] sm:$0xff] %v253
                %v255 = vld [vmem:[%s173 + $0x280] sm:$0xff]
                %256 = vst [vmem:[%s174 + $0x140] sm:$0xff] %v255
                %v257 = vld [vmem:[%s173 + $0x288] sm:$0xff]
                %258 = vst [vmem:[%s174 + $0x148] sm:$0xff] %v257
                %v259 = vld [vmem:[%s173 + $0x2a0] sm:$0xff]
                %260 = vst [vmem:[%s174 + $0x150] sm:$0xff] %v259
                %v261 = vld [vmem:[%s173 + $0x2a8] sm:$0xff]
                %262 = vst [vmem:[%s174 + $0x158] sm:$0xff] %v261
                %v263 = vld [vmem:[%s173 + $0x2c0] sm:$0xff]
                %264 = vst [vmem:[%s174 + $0x160] sm:$0xff] %v263
                %v265 = vld [vmem:[%s173 + $0x2c8] sm:$0xff]
                %266 = vst [vmem:[%s174 + $0x168] sm:$0xff] %v265
                %v267 = vld [vmem:[%s173 + $0x2e0] sm:$0xff]
                %268 = vst [vmem:[%s174 + $0x170] sm:$0xff] %v267
                %v269 = vld [vmem:[%s173 + $0x2e8] sm:$0xff]
                %270 = vst [vmem:[%s174 + $0x178] sm:$0xff] %v269
                %v271 = vld [vmem:[%s173 + $0x300] sm:$0xff]
                %272 = vst [vmem:[%s174 + $0x180] sm:$0xff] %v271
                %v273 = vld [vmem:[%s173 + $0x308] sm:$0xff]
                %274 = vst [vmem:[%s174 + $0x188] sm:$0xff] %v273
                %v275 = vld [vmem:[%s173 + $0x320] sm:$0xff]
                %276 = vst [vmem:[%s174 + $0x190] sm:$0xff] %v275
                %v277 = vld [vmem:[%s173 + $0x328] sm:$0xff]
                %278 = vst [vmem:[%s174 + $0x198] sm:$0xff] %v277
                %v279 = vld [vmem:[%s173 + $0x340] sm:$0xff]
                %280 = vst [vmem:[%s174 + $0x1a0] sm:$0xff] %v279
                %v281 = vld [vmem:[%s173 + $0x348] sm:$0xff]
                %282 = vst [vmem:[%s174 + $0x1a8] sm:$0xff] %v281
                %v283 = vld [vmem:[%s173 + $0x360] sm:$0xff]
                %284 = vst [vmem:[%s174 + $0x1b0] sm:$0xff] %v283
                %v285 = vld [vmem:[%s173 + $0x368] sm:$0xff]
                %286 = vst [vmem:[%s174 + $0x1b8] sm:$0xff] %v285
                %v287 = vld [vmem:[%s173 + $0x380] sm:$0xff]
                %288 = vst [vmem:[%s174 + $0x1c0] sm:$0xff] %v287
                %v289 = vld [vmem:[%s173 + $0x388] sm:$0xff]
                %290 = vst [vmem:[%s174 + $0x1c8] sm:$0xff] %v289
                %v291 = vld [vmem:[%s173 + $0x3a0] sm:$0xff]
                %292 = vst [vmem:[%s174 + $0x1d0] sm:$0xff] %v291
                %v293 = vld [vmem:[%s173 + $0x3a8] sm:$0xff]
                %294 = vst [vmem:[%s174 + $0x1d8] sm:$0xff] %v293
                %v295 = vld [vmem:[%s173 + $0x3c0] sm:$0xff]
                %296 = vst [vmem:[%s174 + $0x1e0] sm:$0xff] %v295
                %v297 = vld [vmem:[%s173 + $0x3c8] sm:$0xff]
                %298 = vst [vmem:[%s174 + $0x1e8] sm:$0xff] %v297
                %v299 = vld [vmem:[%s173 + $0x3e0] sm:$0xff]
                %300 = vst [vmem:[%s174 + $0x1f0] sm:$0xff] %v299
                %v301 = vld [vmem:[%s173 + $0x3e8] sm:$0xff]
                %302 = vst [vmem:[%s174 + $0x1f8] sm:$0xff] %v301
                %v303 = vld [vmem:[%s173 + $0x400] sm:$0xff]
                %304 = vst [vmem:[%s174 + $0x200] sm:$0xff] %v303
                %v305 = vld [vmem:[%s173 + $0x408] sm:$0xff]
                %306 = vst [vmem:[%s174 + $0x208] sm:$0xff] %v305
                %v307 = vld [vmem:[%s173 + $0x420] sm:$0xff]
                %308 = vst [vmem:[%s174 + $0x210] sm:$0xff] %v307
                %v309 = vld [vmem:[%s173 + $0x428] sm:$0xff]
                %310 = vst [vmem:[%s174 + $0x218] sm:$0xff] %v309
                %v311 = vld [vmem:[%s173 + $0x440] sm:$0xff]
                %312 = vst [vmem:[%s174 + $0x220] sm:$0xff] %v311
                %v313 = vld [vmem:[%s173 + $0x448] sm:$0xff]
                %314 = vst [vmem:[%s174 + $0x228] sm:$0xff] %v313
                %v315 = vld [vmem:[%s173 + $0x460] sm:$0xff]
                %316 = vst [vmem:[%s174 + $0x230] sm:$0xff] %v315
                %v317 = vld [vmem:[%s173 + $0x468] sm:$0xff]
                %318 = vst [vmem:[%s174 + $0x238] sm:$0xff] %v317
                %v319 = vld [vmem:[%s173 + $0x480] sm:$0xff]
                %320 = vst [vmem:[%s174 + $0x240] sm:$0xff] %v319
                %v321 = vld [vmem:[%s173 + $0x488] sm:$0xff]
                %322 = vst [vmem:[%s174 + $0x248] sm:$0xff] %v321
                %v323 = vld [vmem:[%s173 + $0x4a0] sm:$0xff]
                %324 = vst [vmem:[%s174 + $0x250] sm:$0xff] %v323
                %v325 = vld [vmem:[%s173 + $0x4a8] sm:$0xff]
                %326 = vst [vmem:[%s174 + $0x258] sm:$0xff] %v325
                %v327 = vld [vmem:[%s173 + $0x4c0] sm:$0xff]
                %328 = vst [vmem:[%s174 + $0x260] sm:$0xff] %v327
                %v329 = vld [vmem:[%s173 + $0x4c8] sm:$0xff]
                %330 = vst [vmem:[%s174 + $0x268] sm:$0xff] %v329
                %v331 = vld [vmem:[%s173 + $0x4e0] sm:$0xff]
                %332 = vst [vmem:[%s174 + $0x270] sm:$0xff] %v331
                %v333 = vld [vmem:[%s173 + $0x4e8] sm:$0xff]
                %334 = vst [vmem:[%s174 + $0x278] sm:$0xff] %v333
                %v335 = vld [vmem:[%s173 + $0x500] sm:$0xff]
                %336 = vst [vmem:[%s174 + $0x280] sm:$0xff] %v335
                %v337 = vld [vmem:[%s173 + $0x508] sm:$0xff]
                %338 = vst [vmem:[%s174 + $0x288] sm:$0xff] %v337
                %v339 = vld [vmem:[%s173 + $0x520] sm:$0xff]
                %340 = vst [vmem:[%s174 + $0x290] sm:$0xff] %v339
                %v341 = vld [vmem:[%s173 + $0x528] sm:$0xff]
                %342 = vst [vmem:[%s174 + $0x298] sm:$0xff] %v341
                %v343 = vld [vmem:[%s173 + $0x540] sm:$0xff]
                %344 = vst [vmem:[%s174 + $0x2a0] sm:$0xff] %v343
                %v345 = vld [vmem:[%s173 + $0x548] sm:$0xff]
                %346 = vst [vmem:[%s174 + $0x2a8] sm:$0xff] %v345
                %v347 = vld [vmem:[%s173 + $0x560] sm:$0xff]
                %348 = vst [vmem:[%s174 + $0x2b0] sm:$0xff] %v347
                %v349 = vld [vmem:[%s173 + $0x568] sm:$0xff]
                %350 = vst [vmem:[%s174 + $0x2b8] sm:$0xff] %v349
                %v351 = vld [vmem:[%s173 + $0x580] sm:$0xff]
                %352 = vst [vmem:[%s174 + $0x2c0] sm:$0xff] %v351
                %v353 = vld [vmem:[%s173 + $0x588] sm:$0xff]
                %354 = vst [vmem:[%s174 + $0x2c8] sm:$0xff] %v353
                %v355 = vld [vmem:[%s173 + $0x5a0] sm:$0xff]
                %356 = vst [vmem:[%s174 + $0x2d0] sm:$0xff] %v355
                %v357 = vld [vmem:[%s173 + $0x5a8] sm:$0xff]
                %358 = vst [vmem:[%s174 + $0x2d8] sm:$0xff] %v357
                %v359 = vld [vmem:[%s173 + $0x5c0] sm:$0xff]
                %360 = vst [vmem:[%s174 + $0x2e0] sm:$0xff] %v359
                %v361 = vld [vmem:[%s173 + $0x5c8] sm:$0xff]
                %362 = vst [vmem:[%s174 + $0x2e8] sm:$0xff] %v361
                %v363 = vld [vmem:[%s173 + $0x5e0] sm:$0xff]
                %364 = vst [vmem:[%s174 + $0x2f0] sm:$0xff] %v363
                %v365 = vld [vmem:[%s173 + $0x5e8] sm:$0xff]
                %366 = vst [vmem:[%s174 + $0x2f8] sm:$0xff] %v365
                %v367 = vld [vmem:[%s173 + $0x600] sm:$0xff]
                %368 = vst [vmem:[%s174 + $0x300] sm:$0xff] %v367
                %v369 = vld [vmem:[%s173 + $0x608] sm:$0xff]
                %370 = vst [vmem:[%s174 + $0x308] sm:$0xff] %v369
                %v371 = vld [vmem:[%s173 + $0x620] sm:$0xff]
                %372 = vst [vmem:[%s174 + $0x310] sm:$0xff] %v371
                %v373 = vld [vmem:[%s173 + $0x628] sm:$0xff]
                %374 = vst [vmem:[%s174 + $0x318] sm:$0xff] %v373
                %v375 = vld [vmem:[%s173 + $0x640] sm:$0xff]
                %376 = vst [vmem:[%s174 + $0x320] sm:$0xff] %v375
                %v377 = vld [vmem:[%s173 + $0x648] sm:$0xff]
                %378 = vst [vmem:[%s174 + $0x328] sm:$0xff] %v377
                %v379 = vld [vmem:[%s173 + $0x660] sm:$0xff]
                %380 = vst [vmem:[%s174 + $0x330] sm:$0xff] %v379
                %v381 = vld [vmem:[%s173 + $0x668] sm:$0xff]
                %382 = vst [vmem:[%s174 + $0x338] sm:$0xff] %v381
                %v383 = vld [vmem:[%s173 + $0x680] sm:$0xff]
                %384 = vst [vmem:[%s174 + $0x340] sm:$0xff] %v383
                %v385 = vld [vmem:[%s173 + $0x688] sm:$0xff]
                %386 = vst [vmem:[%s174 + $0x348] sm:$0xff] %v385
                %v387 = vld [vmem:[%s173 + $0x6a0] sm:$0xff]
                %388 = vst [vmem:[%s174 + $0x350] sm:$0xff] %v387
                %v389 = vld [vmem:[%s173 + $0x6a8] sm:$0xff]
                %390 = vst [vmem:[%s174 + $0x358] sm:$0xff] %v389
                %v391 = vld [vmem:[%s173 + $0x6c0] sm:$0xff]
                %392 = vst [vmem:[%s174 + $0x360] sm:$0xff] %v391
                %v393 = vld [vmem:[%s173 + $0x6c8] sm:$0xff]
                %394 = vst [vmem:[%s174 + $0x368] sm:$0xff] %v393
                %v395 = vld [vmem:[%s173 + $0x6e0] sm:$0xff]
                %396 = vst [vmem:[%s174 + $0x370] sm:$0xff] %v395
                %v397 = vld [vmem:[%s173 + $0x6e8] sm:$0xff]
                %398 = vst [vmem:[%s174 + $0x378] sm:$0xff] %v397
                %v399 = vld [vmem:[%s173 + $0x700] sm:$0xff]
                %400 = vst [vmem:[%s174 + $0x380] sm:$0xff] %v399
                %v401 = vld [vmem:[%s173 + $0x708] sm:$0xff]
                %402 = vst [vmem:[%s174 + $0x388] sm:$0xff] %v401
                %v403 = vld [vmem:[%s173 + $0x720] sm:$0xff]
                %404 = vst [vmem:[%s174 + $0x390] sm:$0xff] %v403
                %v405 = vld [vmem:[%s173 + $0x728] sm:$0xff]
                %406 = vst [vmem:[%s174 + $0x398] sm:$0xff] %v405
                %v407 = vld [vmem:[%s173 + $0x740] sm:$0xff]
                %408 = vst [vmem:[%s174 + $0x3a0] sm:$0xff] %v407
                %v409 = vld [vmem:[%s173 + $0x748] sm:$0xff]
                %410 = vst [vmem:[%s174 + $0x3a8] sm:$0xff] %v409
                %v411 = vld [vmem:[%s173 + $0x760] sm:$0xff]
                %412 = vst [vmem:[%s174 + $0x3b0] sm:$0xff] %v411
                %v413 = vld [vmem:[%s173 + $0x768] sm:$0xff]
                %414 = vst [vmem:[%s174 + $0x3b8] sm:$0xff] %v413
                %v415 = vld [vmem:[%s173 + $0x780] sm:$0xff]
                %416 = vst [vmem:[%s174 + $0x3c0] sm:$0xff] %v415
                %v417 = vld [vmem:[%s173 + $0x788] sm:$0xff]
                %418 = vst [vmem:[%s174 + $0x3c8] sm:$0xff] %v417
                %v419 = vld [vmem:[%s173 + $0x7a0] sm:$0xff]
                %420 = vst [vmem:[%s174 + $0x3d0] sm:$0xff] %v419
                %v421 = vld [vmem:[%s173 + $0x7a8] sm:$0xff]
                %422 = vst [vmem:[%s174 + $0x3d8] sm:$0xff] %v421
                %v423 = vld [vmem:[%s173 + $0x7c0] sm:$0xff]
                %424 = vst [vmem:[%s174 + $0x3e0] sm:$0xff] %v423
                %v425 = vld [vmem:[%s173 + $0x7c8] sm:$0xff]
                %426 = vst [vmem:[%s174 + $0x3e8] sm:$0xff] %v425
                %v427 = vld [vmem:[%s173 + $0x7e0] sm:$0xff]
                %428 = vst [vmem:[%s174 + $0x3f0] sm:$0xff] %v427
                %v429 = vld [vmem:[%s173 + $0x7e8] sm:$0xff]
                %430 = vst [vmem:[%s174 + $0x3f8] sm:$0xff] %v429
              $region45: #{cnn3d_block.2} parent=39 // loop_footer
                %s172 = sadd.s32 1, %s168
              $region46: #{cnn3d_block.2} parent=39 // loop_footer_branch
                %167 = sbr.rel target = $region42
              $region47: #{cnn3d_block.2} parent=39 // loop_exit
                _
            $region40: #{cnn3d_block.2} parent=35 // pred_fallthru
              _
            // Predicated region
            $region48: #{cnn3d_block.2} parent=35 // pred_check
              _
            $region49: #{cnn3d_block.2} parent=35 // pred_check_branch
              %432 = sbr.rel target = $region51
            $region50: #{cnn3d_block.2} parent=35 // pred_region
              _
            $region51: #{cnn3d_block.2} parent=35 // pred_fallthru
              _
          $region36: #{cnn3d_block.2} parent=31 // pred_fallthru
            _
          %433 = vnop
        $region32: #{cnn3d_block.2} parent=27 // pred_fallthru
          _
      $region28: #{cnn3d_block.2} parent=5 // pred_fallthru
        _
      %p434 = scmp.le.s32.totalorder 1, %s10
      %p435 = scmp.lt.s32.totalorder %s10, 3
      %p436 = pnand %p434, %p435
      %p437 = pneg %p436
      // Predicated region
      $region52: #{cnn3d_block.2} parent=5 // pred_check
        _
      $region53: #{cnn3d_block.2} parent=5 // pred_check_branch
        %439 = sbr.rel (%p436) target = $region55
      $region54: #{cnn3d_block.2} parent=5 // pred_region
        %s440 = ssub.s32 %s10, 1
        %s441 = sand.u32 %s23, 1
        %s442 = sand.u32 %s23, 1
        %s443 = smul.addr %s442, 1024
        %s444 = scalar_lea.vmem [#allocation2], %s443
        // Predicated region
        $region56: #{cnn3d_block.2} parent=54 // pred_check
          %p445 = pneg %p36
        $region57: #{cnn3d_block.2} parent=54 // pred_check_branch
          %447 = sbr.rel (%p445) target = $region59
        $region58: #{cnn3d_block.2} parent=54 // pred_region
          _
        $region59: #{cnn3d_block.2} parent=54 // pred_fallthru
          _
        %s448 = sand.u32 %s23, 1
        %s449 = sand.u32 %s23, 1
        %s450 = smul.addr %s449, 1024
        %s451 = scalar_lea.vmem [#allocation2], %s450
        %p452 = pneg %p36
        %p453 = pneg %p33
        %p454 = pneg %p57
        %p455 = pneg %p54
        %p456 = pneg %p78
        %p457 = pneg %p75
        %p458 = pneg %p99
        %p459 = pneg %p96
        %p460 = pneg %p125
        %p461 = pneg %p122
        %s462 = sand.u32 %s112, 1
        %s463 = sand.u32 %s112, 1
        %s464 = smul.addr %s463, 32
        %s465 = scalar_lea.vmem [#allocation3], %s464
        %s466 = smul.u32 4, %s15
        %s467 = smul.u32 4, %s15
        %v468 = vld [vmem:[%s1] sm:$0xff]
        %v469 = vld [vmem:[%s1 + $0x8] sm:$0xff]
        %v470 = vld [vmem:[%s1 + $0x10] sm:$0xff]
        %v471 = vld [vmem:[%s1 + $0x18] sm:$0xff]
        %v472 = vld [vmem:[%s444] sm:$0xff]
        %v473 = vld [vmem:[%s444 + $0x8] sm:$0xff]
        %v474 = vld [vmem:[%s444 + $0x10] sm:$0xff]
        %v475 = vld [vmem:[%s444 + $0x18] sm:$0xff]
        %v476 = vld [vmem:[%s444 + $0x20] sm:$0xff]
        %v477 = vld [vmem:[%s444 + $0x28] sm:$0xff]
        %v478 = vld [vmem:[%s444 + $0x30] sm:$0xff]
        %v479 = vld [vmem:[%s444 + $0x38] sm:$0xff]
        %v480 = vld [vmem:[%s444 + $0x40] sm:$0xff]
        %v481 = vld [vmem:[%s444 + $0x48] sm:$0xff]
        %v482 = vld [vmem:[%s444 + $0x50] sm:$0xff]
        %v483 = vld [vmem:[%s444 + $0x58] sm:$0xff]
        %v484 = vld [vmem:[%s444 + $0x60] sm:$0xff]
        %v485 = vld [vmem:[%s444 + $0x68] sm:$0xff]
        %v486 = vld [vmem:[%s444 + $0x70] sm:$0xff]
        %v487 = vld [vmem:[%s444 + $0x78] sm:$0xff]
        %v488 = vld [vmem:[%s444 + $0x80] sm:$0xff]
        %v489 = vld [vmem:[%s444 + $0x88] sm:$0xff]
        %v490 = vld [vmem:[%s444 + $0x90] sm:$0xff]
        %v491 = vld [vmem:[%s444 + $0x98] sm:$0xff]
        %v492 = vld [vmem:[%s444 + $0xa0] sm:$0xff]
        %v493 = vld [vmem:[%s444 + $0xa8] sm:$0xff]
        %v494 = vld [vmem:[%s444 + $0xb0] sm:$0xff]
        %v495 = vld [vmem:[%s444 + $0xb8] sm:$0xff]
        %v496 = vld [vmem:[%s444 + $0xc0] sm:$0xff]
        %v497 = vld [vmem:[%s444 + $0xc8] sm:$0xff]
        %v498 = vld [vmem:[%s444 + $0xd0] sm:$0xff]
        %v499 = vld [vmem:[%s444 + $0xd8] sm:$0xff]
        %v500 = vld [vmem:[%s444 + $0xe0] sm:$0xff]
        %v501 = vld [vmem:[%s444 + $0xe8] sm:$0xff]
        %v502 = vld [vmem:[%s444 + $0xf0] sm:$0xff]
        %v503 = vld [vmem:[%s444 + $0xf8] sm:$0xff]
        %v504 = vld [vmem:[%s444 + $0x100] sm:$0xff]
        %v505 = vld [vmem:[%s444 + $0x108] sm:$0xff]
        %v506 = vld [vmem:[%s444 + $0x110] sm:$0xff]
        %v507 = vld [vmem:[%s444 + $0x118] sm:$0xff]
        %v508 = vld [vmem:[%s444 + $0x120] sm:$0xff]
        %v509 = vld [vmem:[%s444 + $0x128] sm:$0xff]
        %v510 = vld [vmem:[%s444 + $0x130] sm:$0xff]
        %v511 = vld [vmem:[%s444 + $0x138] sm:$0xff]
        %v512 = vld [vmem:[%s444 + $0x140] sm:$0xff]
        %v513 = vld [vmem:[%s444 + $0x148] sm:$0xff]
        %v514 = vld [vmem:[%s444 + $0x150] sm:$0xff]
        %v515 = vld [vmem:[%s444 + $0x158] sm:$0xff]
        %v516 = vld [vmem:[%s444 + $0x160] sm:$0xff]
        %v517 = vld [vmem:[%s444 + $0x168] sm:$0xff]
        %v518 = vld [vmem:[%s444 + $0x170] sm:$0xff]
        %v519 = vld [vmem:[%s444 + $0x178] sm:$0xff]
        %v520 = vld [vmem:[%s444 + $0x180] sm:$0xff]
        %v521 = vld [vmem:[%s444 + $0x188] sm:$0xff]
        %v522 = vld [vmem:[%s444 + $0x190] sm:$0xff]
        %v523 = vld [vmem:[%s444 + $0x198] sm:$0xff]
        %v524 = vld [vmem:[%s444 + $0x1a0] sm:$0xff]
        %v525 = vld [vmem:[%s444 + $0x1a8] sm:$0xff]
        %v526 = vld [vmem:[%s444 + $0x1b0] sm:$0xff]
        %v527 = vld [vmem:[%s444 + $0x1b8] sm:$0xff]
        %v528 = vld [vmem:[%s444 + $0x1c0] sm:$0xff]
        %v529 = vld [vmem:[%s444 + $0x1c8] sm:$0xff]
        %v530 = vld [vmem:[%s444 + $0x1d0] sm:$0xff]
        %v531 = vld [vmem:[%s444 + $0x1d8] sm:$0xff]
        %v532 = vld [vmem:[%s444 + $0x1e0] sm:$0xff]
        %v533 = vld [vmem:[%s444 + $0x1e8] sm:$0xff]
        %v534 = vld [vmem:[%s444 + $0x1f0] sm:$0xff]
        %v535 = vld [vmem:[%s444 + $0x1f8] sm:$0xff]
        %v536 = vld [vmem:[%s444 + $0x200] sm:$0xff]
        %v537 = vld [vmem:[%s444 + $0x208] sm:$0xff]
        %v538 = vld [vmem:[%s444 + $0x210] sm:$0xff]
        %v539 = vld [vmem:[%s444 + $0x218] sm:$0xff]
        %v540 = vld [vmem:[%s444 + $0x220] sm:$0xff]
        %v541 = vld [vmem:[%s444 + $0x228] sm:$0xff]
        %v542 = vld [vmem:[%s444 + $0x230] sm:$0xff]
        %v543 = vld [vmem:[%s444 + $0x238] sm:$0xff]
        %v544 = vld [vmem:[%s444 + $0x240] sm:$0xff]
        %v545 = vld [vmem:[%s444 + $0x248] sm:$0xff]
        %v546 = vld [vmem:[%s444 + $0x250] sm:$0xff]
        %v547 = vld [vmem:[%s444 + $0x258] sm:$0xff]
        %v548 = vld [vmem:[%s444 + $0x260] sm:$0xff]
        %v549 = vld [vmem:[%s444 + $0x268] sm:$0xff]
        %v550 = vld [vmem:[%s444 + $0x270] sm:$0xff]
        %v551 = vld [vmem:[%s444 + $0x278] sm:$0xff]
        %v552 = vld [vmem:[%s444 + $0x280] sm:$0xff]
        %v553 = vld [vmem:[%s444 + $0x288] sm:$0xff]
        %v554 = vld [vmem:[%s444 + $0x290] sm:$0xff]
        %v555 = vld [vmem:[%s444 + $0x298] sm:$0xff]
        %v556 = vld [vmem:[%s444 + $0x2a0] sm:$0xff]
        %v557 = vld [vmem:[%s444 + $0x2a8] sm:$0xff]
        %v558 = vld [vmem:[%s444 + $0x2b0] sm:$0xff]
        %v559 = vld [vmem:[%s444 + $0x2b8] sm:$0xff]
        %v560 = vld [vmem:[%s444 + $0x2c0] sm:$0xff]
        %v561 = vld [vmem:[%s444 + $0x2c8] sm:$0xff]
        %v562 = vld [vmem:[%s444 + $0x2d0] sm:$0xff]
        %v563 = vld [vmem:[%s444 + $0x2d8] sm:$0xff]
        %v564 = vld [vmem:[%s444 + $0x2e0] sm:$0xff]
        %v565 = vld [vmem:[%s444 + $0x2e8] sm:$0xff]
        %v566 = vld [vmem:[%s444 + $0x2f0] sm:$0xff]
        %v567 = vld [vmem:[%s444 + $0x2f8] sm:$0xff]
        %v568 = vld [vmem:[%s444 + $0x300] sm:$0xff]
        %v569 = vld [vmem:[%s444 + $0x308] sm:$0xff]
        %v570 = vld [vmem:[%s444 + $0x310] sm:$0xff]
        %v571 = vld [vmem:[%s444 + $0x318] sm:$0xff]
        %v572 = vld [vmem:[%s444 + $0x320] sm:$0xff]
        %v573 = vld [vmem:[%s444 + $0x328] sm:$0xff]
        %v574 = vld [vmem:[%s444 + $0x330] sm:$0xff]
        %v575 = vld [vmem:[%s444 + $0x338] sm:$0xff]
        %v576 = vld [vmem:[%s444 + $0x340] sm:$0xff]
        %v577 = vld [vmem:[%s444 + $0x348] sm:$0xff]
        %v578 = vld [vmem:[%s444 + $0x350] sm:$0xff]
        %v579 = vld [vmem:[%s444 + $0x358] sm:$0xff]
        %v580 = vld [vmem:[%s444 + $0x360] sm:$0xff]
        %v581 = vld [vmem:[%s444 + $0x368] sm:$0xff]
        %v582 = vld [vmem:[%s444 + $0x370] sm:$0xff]
        %v583 = vld [vmem:[%s444 + $0x378] sm:$0xff]
        %v584 = vld [vmem:[%s444 + $0x380] sm:$0xff]
        %v585 = vld [vmem:[%s444 + $0x388] sm:$0xff]
        %v586 = vld [vmem:[%s444 + $0x390] sm:$0xff]
        %v587 = vld [vmem:[%s444 + $0x398] sm:$0xff]
        %v588 = vld [vmem:[%s444 + $0x3a0] sm:$0xff]
        %v589 = vld [vmem:[%s444 + $0x3a8] sm:$0xff]
        %v590 = vld [vmem:[%s444 + $0x3b0] sm:$0xff]
        %v591 = vld [vmem:[%s444 + $0x3b8] sm:$0xff]
        %v592 = vld [vmem:[%s444 + $0x3c0] sm:$0xff]
        %v593 = vld [vmem:[%s444 + $0x3c8] sm:$0xff]
        %v594 = vld [vmem:[%s444 + $0x3d0] sm:$0xff]
        %v595 = vld [vmem:[%s444 + $0x3d8] sm:$0xff]
        %v596 = vld [vmem:[%s444 + $0x3e0] sm:$0xff]
        %v597 = vld [vmem:[%s444 + $0x3e8] sm:$0xff]
        %v598 = vld [vmem:[%s444 + $0x3f0] sm:$0xff]
        %v599 = vld [vmem:[%s444 + $0x3f8] sm:$0xff]
        %v604 = vunpack.c.l.b16 %v468
        %v605 = vunpack.c.h.b16 %v468
        %v606 = vunpack.c.l.b16 %v469
        %v607 = vunpack.c.h.b16 %v469
        %v608 = vunpack.c.l.b16 %v470
        %v609 = vunpack.c.h.b16 %v470
        %v610 = vunpack.c.l.b16 %v471
        %v611 = vunpack.c.h.b16 %v471
        %v612 = vpack.c.b16 %v608, %v604
        %v613 = vpack.c.b16 %v609, %v605
        %v614 = vpack.c.b16 %v610, %v606
        %v615 = vpack.c.b16 %v611, %v607
        %v748 = vunpack.c.l.b16 %v472
        %v749 = vunpack.c.h.b16 %v472
        %v750 = vunpack.c.l.b16 %v473
        %v751 = vunpack.c.h.b16 %v473
        %v752 = vunpack.c.l.b16 %v474
        %v753 = vunpack.c.h.b16 %v474
        %v754 = vunpack.c.l.b16 %v475
        %v755 = vunpack.c.h.b16 %v475
        %v756 = vunpack.c.l.b16 %v476
        %v757 = vunpack.c.h.b16 %v476
        %v758 = vunpack.c.l.b16 %v477
        %v759 = vunpack.c.h.b16 %v477
        %v760 = vunpack.c.l.b16 %v478
        %v761 = vunpack.c.h.b16 %v478
        %v762 = vunpack.c.l.b16 %v479
        %v763 = vunpack.c.h.b16 %v479
        %v764 = vunpack.c.l.b16 %v480
        %v765 = vunpack.c.h.b16 %v480
        %v766 = vunpack.c.l.b16 %v481
        %v767 = vunpack.c.h.b16 %v481
        %v768 = vunpack.c.l.b16 %v482
        %v769 = vunpack.c.h.b16 %v482
        %v770 = vunpack.c.l.b16 %v483
        %v771 = vunpack.c.h.b16 %v483
        %v772 = vunpack.c.l.b16 %v484
        %v773 = vunpack.c.h.b16 %v484
        %v774 = vunpack.c.l.b16 %v485
        %v775 = vunpack.c.h.b16 %v485
        %v776 = vunpack.c.l.b16 %v486
        %v777 = vunpack.c.h.b16 %v486
        %v778 = vunpack.c.l.b16 %v487
        %v779 = vunpack.c.h.b16 %v487
        %v780 = vunpack.c.l.b16 %v488
        %v781 = vunpack.c.h.b16 %v488
        %v782 = vunpack.c.l.b16 %v489
        %v783 = vunpack.c.h.b16 %v489
        %v784 = vunpack.c.l.b16 %v490
        %v785 = vunpack.c.h.b16 %v490
        %v786 = vunpack.c.l.b16 %v491
        %v787 = vunpack.c.h.b16 %v491
        %v788 = vunpack.c.l.b16 %v492
        %v789 = vunpack.c.h.b16 %v492
        %v790 = vunpack.c.l.b16 %v493
        %v791 = vunpack.c.h.b16 %v493
        %v792 = vunpack.c.l.b16 %v494
        %v793 = vunpack.c.h.b16 %v494
        %v794 = vunpack.c.l.b16 %v495
        %v795 = vunpack.c.h.b16 %v495
        %v796 = vunpack.c.l.b16 %v496
        %v797 = vunpack.c.h.b16 %v496
        %v798 = vunpack.c.l.b16 %v497
        %v799 = vunpack.c.h.b16 %v497
        %v800 = vunpack.c.l.b16 %v498
        %v801 = vunpack.c.h.b16 %v498
        %v802 = vunpack.c.l.b16 %v499
        %v803 = vunpack.c.h.b16 %v499
        %v804 = vunpack.c.l.b16 %v500
        %v805 = vunpack.c.h.b16 %v500
        %v806 = vunpack.c.l.b16 %v501
        %v807 = vunpack.c.h.b16 %v501
        %v808 = vunpack.c.l.b16 %v502
        %v809 = vunpack.c.h.b16 %v502
        %v810 = vunpack.c.l.b16 %v503
        %v811 = vunpack.c.h.b16 %v503
        %v812 = vunpack.c.l.b16 %v504
        %v813 = vunpack.c.h.b16 %v504
        %v814 = vunpack.c.l.b16 %v505
        %v815 = vunpack.c.h.b16 %v505
        %v816 = vunpack.c.l.b16 %v506
        %v817 = vunpack.c.h.b16 %v506
        %v818 = vunpack.c.l.b16 %v507
        %v819 = vunpack.c.h.b16 %v507
        %v820 = vunpack.c.l.b16 %v508
        %v821 = vunpack.c.h.b16 %v508
        %v822 = vunpack.c.l.b16 %v509
        %v823 = vunpack.c.h.b16 %v509
        %v824 = vunpack.c.l.b16 %v510
        %v825 = vunpack.c.h.b16 %v510
        %v826 = vunpack.c.l.b16 %v511
        %v827 = vunpack.c.h.b16 %v511
        %v828 = vunpack.c.l.b16 %v512
        %v829 = vunpack.c.h.b16 %v512
        %v830 = vunpack.c.l.b16 %v513
        %v831 = vunpack.c.h.b16 %v513
        %v832 = vunpack.c.l.b16 %v514
        %v833 = vunpack.c.h.b16 %v514
        %v834 = vunpack.c.l.b16 %v515
        %v835 = vunpack.c.h.b16 %v515
        %v836 = vunpack.c.l.b16 %v516
        %v837 = vunpack.c.h.b16 %v516
        %v838 = vunpack.c.l.b16 %v517
        %v839 = vunpack.c.h.b16 %v517
        %v840 = vunpack.c.l.b16 %v518
        %v841 = vunpack.c.h.b16 %v518
        %v842 = vunpack.c.l.b16 %v519
        %v843 = vunpack.c.h.b16 %v519
        %v844 = vunpack.c.l.b16 %v520
        %v845 = vunpack.c.h.b16 %v520
        %v846 = vunpack.c.l.b16 %v521
        %v847 = vunpack.c.h.b16 %v521
        %v848 = vunpack.c.l.b16 %v522
        %v849 = vunpack.c.h.b16 %v522
        %v850 = vunpack.c.l.b16 %v523
        %v851 = vunpack.c.h.b16 %v523
        %v852 = vunpack.c.l.b16 %v524
        %v853 = vunpack.c.h.b16 %v524
        %v854 = vunpack.c.l.b16 %v525
        %v855 = vunpack.c.h.b16 %v525
        %v856 = vunpack.c.l.b16 %v526
        %v857 = vunpack.c.h.b16 %v526
        %v858 = vunpack.c.l.b16 %v527
        %v859 = vunpack.c.h.b16 %v527
        %v860 = vunpack.c.l.b16 %v528
        %v861 = vunpack.c.h.b16 %v528
        %v862 = vunpack.c.l.b16 %v529
        %v863 = vunpack.c.h.b16 %v529
        %v864 = vunpack.c.l.b16 %v530
        %v865 = vunpack.c.h.b16 %v530
        %v866 = vunpack.c.l.b16 %v531
        %v867 = vunpack.c.h.b16 %v531
        %v868 = vunpack.c.l.b16 %v532
        %v869 = vunpack.c.h.b16 %v532
        %v870 = vunpack.c.l.b16 %v533
        %v871 = vunpack.c.h.b16 %v533
        %v872 = vunpack.c.l.b16 %v534
        %v873 = vunpack.c.h.b16 %v534
        %v874 = vunpack.c.l.b16 %v535
        %v875 = vunpack.c.h.b16 %v535
        %v876 = vunpack.c.l.b16 %v536
        %v877 = vunpack.c.h.b16 %v536
        %v878 = vunpack.c.l.b16 %v537
        %v879 = vunpack.c.h.b16 %v537
        %v880 = vunpack.c.l.b16 %v538
        %v881 = vunpack.c.h.b16 %v538
        %v882 = vunpack.c.l.b16 %v539
        %v883 = vunpack.c.h.b16 %v539
        %v884 = vunpack.c.l.b16 %v540
        %v885 = vunpack.c.h.b16 %v540
        %v886 = vunpack.c.l.b16 %v541
        %v887 = vunpack.c.h.b16 %v541
        %v888 = vunpack.c.l.b16 %v542
        %v889 = vunpack.c.h.b16 %v542
        %v890 = vunpack.c.l.b16 %v543
        %v891 = vunpack.c.h.b16 %v543
        %v892 = vunpack.c.l.b16 %v544
        %v893 = vunpack.c.h.b16 %v544
        %v894 = vunpack.c.l.b16 %v545
        %v895 = vunpack.c.h.b16 %v545
        %v896 = vunpack.c.l.b16 %v546
        %v897 = vunpack.c.h.b16 %v546
        %v898 = vunpack.c.l.b16 %v547
        %v899 = vunpack.c.h.b16 %v547
        %v900 = vunpack.c.l.b16 %v548
        %v901 = vunpack.c.h.b16 %v548
        %v902 = vunpack.c.l.b16 %v549
        %v903 = vunpack.c.h.b16 %v549
        %v904 = vunpack.c.l.b16 %v550
        %v905 = vunpack.c.h.b16 %v550
        %v906 = vunpack.c.l.b16 %v551
        %v907 = vunpack.c.h.b16 %v551
        %v908 = vunpack.c.l.b16 %v552
        %v909 = vunpack.c.h.b16 %v552
        %v910 = vunpack.c.l.b16 %v553
        %v911 = vunpack.c.h.b16 %v553
        %v912 = vunpack.c.l.b16 %v554
        %v913 = vunpack.c.h.b16 %v554
        %v914 = vunpack.c.l.b16 %v555
        %v915 = vunpack.c.h.b16 %v555
        %v916 = vunpack.c.l.b16 %v556
        %v917 = vunpack.c.h.b16 %v556
        %v918 = vunpack.c.l.b16 %v557
        %v919 = vunpack.c.h.b16 %v557
        %v920 = vunpack.c.l.b16 %v558
        %v921 = vunpack.c.h.b16 %v558
        %v922 = vunpack.c.l.b16 %v559
        %v923 = vunpack.c.h.b16 %v559
        %v924 = vunpack.c.l.b16 %v560
        %v925 = vunpack.c.h.b16 %v560
        %v926 = vunpack.c.l.b16 %v561
        %v927 = vunpack.c.h.b16 %v561
        %v928 = vunpack.c.l.b16 %v562
        %v929 = vunpack.c.h.b16 %v562
        %v930 = vunpack.c.l.b16 %v563
        %v931 = vunpack.c.h.b16 %v563
        %v932 = vunpack.c.l.b16 %v564
        %v933 = vunpack.c.h.b16 %v564
        %v934 = vunpack.c.l.b16 %v565
        %v935 = vunpack.c.h.b16 %v565
        %v936 = vunpack.c.l.b16 %v566
        %v937 = vunpack.c.h.b16 %v566
        %v938 = vunpack.c.l.b16 %v567
        %v939 = vunpack.c.h.b16 %v567
        %v940 = vunpack.c.l.b16 %v568
        %v941 = vunpack.c.h.b16 %v568
        %v942 = vunpack.c.l.b16 %v569
        %v943 = vunpack.c.h.b16 %v569
        %v944 = vunpack.c.l.b16 %v570
        %v945 = vunpack.c.h.b16 %v570
        %v946 = vunpack.c.l.b16 %v571
        %v947 = vunpack.c.h.b16 %v571
        %v948 = vunpack.c.l.b16 %v572
        %v949 = vunpack.c.h.b16 %v572
        %v950 = vunpack.c.l.b16 %v573
        %v951 = vunpack.c.h.b16 %v573
        %v952 = vunpack.c.l.b16 %v574
        %v953 = vunpack.c.h.b16 %v574
        %v954 = vunpack.c.l.b16 %v575
        %v955 = vunpack.c.h.b16 %v575
        %v956 = vunpack.c.l.b16 %v576
        %v957 = vunpack.c.h.b16 %v576
        %v958 = vunpack.c.l.b16 %v577
        %v959 = vunpack.c.h.b16 %v577
        %v960 = vunpack.c.l.b16 %v578
        %v961 = vunpack.c.h.b16 %v578
        %v962 = vunpack.c.l.b16 %v579
        %v963 = vunpack.c.h.b16 %v579
        %v964 = vunpack.c.l.b16 %v580
        %v965 = vunpack.c.h.b16 %v580
        %v966 = vunpack.c.l.b16 %v581
        %v967 = vunpack.c.h.b16 %v581
        %v968 = vunpack.c.l.b16 %v582
        %v969 = vunpack.c.h.b16 %v582
        %v970 = vunpack.c.l.b16 %v583
        %v971 = vunpack.c.h.b16 %v583
        %v972 = vunpack.c.l.b16 %v584
        %v973 = vunpack.c.h.b16 %v584
        %v974 = vunpack.c.l.b16 %v585
        %v975 = vunpack.c.h.b16 %v585
        %v976 = vunpack.c.l.b16 %v586
        %v977 = vunpack.c.h.b16 %v586
        %v978 = vunpack.c.l.b16 %v587
        %v979 = vunpack.c.h.b16 %v587
        %v980 = vunpack.c.l.b16 %v588
        %v981 = vunpack.c.h.b16 %v588
        %v982 = vunpack.c.l.b16 %v589
        %v983 = vunpack.c.h.b16 %v589
        %v984 = vunpack.c.l.b16 %v590
        %v985 = vunpack.c.h.b16 %v590
        %v986 = vunpack.c.l.b16 %v591
        %v987 = vunpack.c.h.b16 %v591
        %v988 = vunpack.c.l.b16 %v592
        %v989 = vunpack.c.h.b16 %v592
        %v990 = vunpack.c.l.b16 %v593
        %v991 = vunpack.c.h.b16 %v593
        %v992 = vunpack.c.l.b16 %v594
        %v993 = vunpack.c.h.b16 %v594
        %v994 = vunpack.c.l.b16 %v595
        %v995 = vunpack.c.h.b16 %v595
        %v996 = vunpack.c.l.b16 %v596
        %v997 = vunpack.c.h.b16 %v596
        %v998 = vunpack.c.l.b16 %v597
        %v999 = vunpack.c.h.b16 %v597
        %v1000 = vunpack.c.l.b16 %v598
        %v1001 = vunpack.c.h.b16 %v598
        %v1002 = vunpack.c.l.b16 %v599
        %v1003 = vunpack.c.h.b16 %v599
        %v1004 = vpack.c.b16 %v752, %v748
        %v1005 = vpack.c.b16 %v753, %v749
        %v1006 = vpack.c.b16 %v754, %v750
        %v1007 = vpack.c.b16 %v755, %v751
        %v1008 = vpack.c.b16 %v760, %v756
        %v1009 = vpack.c.b16 %v761, %v757
        %v1010 = vpack.c.b16 %v762, %v758
        %v1011 = vpack.c.b16 %v763, %v759
        %v1012 = vpack.c.b16 %v768, %v764
        %v1013 = vpack.c.b16 %v769, %v765
        %v1014 = vpack.c.b16 %v770, %v766
        %v1015 = vpack.c.b16 %v771, %v767
        %v1016 = vpack.c.b16 %v776, %v772
        %v1017 = vpack.c.b16 %v777, %v773
        %v1018 = vpack.c.b16 %v778, %v774
        %v1019 = vpack.c.b16 %v779, %v775
        %v1020 = vpack.c.b16 %v784, %v780
        %v1021 = vpack.c.b16 %v785, %v781
        %v1022 = vpack.c.b16 %v786, %v782
        %v1023 = vpack.c.b16 %v787, %v783
        %v1024 = vpack.c.b16 %v792, %v788
        %v1025 = vpack.c.b16 %v793, %v789
        %v1026 = vpack.c.b16 %v794, %v790
        %v1027 = vpack.c.b16 %v795, %v791
        %v1028 = vpack.c.b16 %v800, %v796
        %v1029 = vpack.c.b16 %v801, %v797
        %v1030 = vpack.c.b16 %v802, %v798
        %v1031 = vpack.c.b16 %v803, %v799
        %v1032 = vpack.c.b16 %v808, %v804
        %v1033 = vpack.c.b16 %v809, %v805
        %v1034 = vpack.c.b16 %v810, %v806
        %v1035 = vpack.c.b16 %v811, %v807
        %v1036 = vpack.c.b16 %v816, %v812
        %v1037 = vpack.c.b16 %v817, %v813
        %v1038 = vpack.c.b16 %v818, %v814
        %v1039 = vpack.c.b16 %v819, %v815
        %v1040 = vpack.c.b16 %v824, %v820
        %v1041 = vpack.c.b16 %v825, %v821
        %v1042 = vpack.c.b16 %v826, %v822
        %v1043 = vpack.c.b16 %v827, %v823
        %v1044 = vpack.c.b16 %v832, %v828
        %v1045 = vpack.c.b16 %v833, %v829
        %v1046 = vpack.c.b16 %v834, %v830
        %v1047 = vpack.c.b16 %v835, %v831
        %v1048 = vpack.c.b16 %v840, %v836
        %v1049 = vpack.c.b16 %v841, %v837
        %v1050 = vpack.c.b16 %v842, %v838
        %v1051 = vpack.c.b16 %v843, %v839
        %v1052 = vpack.c.b16 %v848, %v844
        %v1053 = vpack.c.b16 %v849, %v845
        %v1054 = vpack.c.b16 %v850, %v846
        %v1055 = vpack.c.b16 %v851, %v847
        %v1056 = vpack.c.b16 %v856, %v852
        %v1057 = vpack.c.b16 %v857, %v853
        %v1058 = vpack.c.b16 %v858, %v854
        %v1059 = vpack.c.b16 %v859, %v855
        %v1060 = vpack.c.b16 %v864, %v860
        %v1061 = vpack.c.b16 %v865, %v861
        %v1062 = vpack.c.b16 %v866, %v862
        %v1063 = vpack.c.b16 %v867, %v863
        %v1064 = vpack.c.b16 %v872, %v868
        %v1065 = vpack.c.b16 %v873, %v869
        %v1066 = vpack.c.b16 %v874, %v870
        %v1067 = vpack.c.b16 %v875, %v871
        %v1068 = vpack.c.b16 %v880, %v876
        %v1069 = vpack.c.b16 %v881, %v877
        %v1070 = vpack.c.b16 %v882, %v878
        %v1071 = vpack.c.b16 %v883, %v879
        %v1072 = vpack.c.b16 %v888, %v884
        %v1073 = vpack.c.b16 %v889, %v885
        %v1074 = vpack.c.b16 %v890, %v886
        %v1075 = vpack.c.b16 %v891, %v887
        %v1076 = vpack.c.b16 %v896, %v892
        %v1077 = vpack.c.b16 %v897, %v893
        %v1078 = vpack.c.b16 %v898, %v894
        %v1079 = vpack.c.b16 %v899, %v895
        %v1080 = vpack.c.b16 %v904, %v900
        %v1081 = vpack.c.b16 %v905, %v901
        %v1082 = vpack.c.b16 %v906, %v902
        %v1083 = vpack.c.b16 %v907, %v903
        %v1084 = vpack.c.b16 %v912, %v908
        %v1085 = vpack.c.b16 %v913, %v909
        %v1086 = vpack.c.b16 %v914, %v910
        %v1087 = vpack.c.b16 %v915, %v911
        %v1088 = vpack.c.b16 %v920, %v916
        %v1089 = vpack.c.b16 %v921, %v917
        %v1090 = vpack.c.b16 %v922, %v918
        %v1091 = vpack.c.b16 %v923, %v919
        %v1092 = vpack.c.b16 %v928, %v924
        %v1093 = vpack.c.b16 %v929, %v925
        %v1094 = vpack.c.b16 %v930, %v926
        %v1095 = vpack.c.b16 %v931, %v927
        %v1096 = vpack.c.b16 %v936, %v932
        %v1097 = vpack.c.b16 %v937, %v933
        %v1098 = vpack.c.b16 %v938, %v934
        %v1099 = vpack.c.b16 %v939, %v935
        %v1100 = vpack.c.b16 %v944, %v940
        %v1101 = vpack.c.b16 %v945, %v941
        %v1102 = vpack.c.b16 %v946, %v942
        %v1103 = vpack.c.b16 %v947, %v943
        %v1104 = vpack.c.b16 %v952, %v948
        %v1105 = vpack.c.b16 %v953, %v949
        %v1106 = vpack.c.b16 %v954, %v950
        %v1107 = vpack.c.b16 %v955, %v951
        %v1108 = vpack.c.b16 %v960, %v956
        %v1109 = vpack.c.b16 %v961, %v957
        %v1110 = vpack.c.b16 %v962, %v958
        %v1111 = vpack.c.b16 %v963, %v959
        %v1112 = vpack.c.b16 %v968, %v964
        %v1113 = vpack.c.b16 %v969, %v965
        %v1114 = vpack.c.b16 %v970, %v966
        %v1115 = vpack.c.b16 %v971, %v967
        %v1116 = vpack.c.b16 %v976, %v972
        %v1117 = vpack.c.b16 %v977, %v973
        %v1118 = vpack.c.b16 %v978, %v974
        %v1119 = vpack.c.b16 %v979, %v975
        %v1120 = vpack.c.b16 %v984, %v980
        %v1121 = vpack.c.b16 %v985, %v981
        %v1122 = vpack.c.b16 %v986, %v982
        %v1123 = vpack.c.b16 %v987, %v983
        %v1124 = vpack.c.b16 %v992, %v988
        %v1125 = vpack.c.b16 %v993, %v989
        %v1126 = vpack.c.b16 %v994, %v990
        %v1127 = vpack.c.b16 %v995, %v991
        %v1128 = vpack.c.b16 %v1000, %v996
        %v1129 = vpack.c.b16 %v1001, %v997
        %v1130 = vpack.c.b16 %v1002, %v998
        %v1131 = vpack.c.b16 %v1003, %v999
        %1260 = vmatprep.subr.bf16.mxu0 %v1033
        %1261 = vmatpush1.bf16.msra.mxu0 %v1032
        %1262 = vmatprep.subr.bf16.mxu0 %v1029
        %1263 = vmatpush1.bf16.msra.mxu0 %v1028
        %1264 = vmatprep.subr.bf16.mxu0 %v1025
        %1265 = vmatpush1.bf16.msra.mxu0 %v1024
        %1266 = vmatprep.subr.bf16.mxu0 %v1021
        %1267 = vmatpush1.bf16.msra.mxu0 %v1020
        %1268 = vmatprep.subr.bf16.mxu0 %v1017
        %1269 = vmatpush1.bf16.msra.mxu0 %v1016
        %1270 = vmatprep.subr.bf16.mxu0 %v1013
        %1271 = vmatpush1.bf16.msra.mxu0 %v1012
        %1272 = vmatprep.subr.bf16.mxu0 %v1009
        %1273 = vmatpush1.bf16.msra.mxu0 %v1008
        %1274 = vmatprep.subr.bf16.mxu0 %v1005
        %1275 = vmatpush1.bf16.msra.mxu0 %v1004
        %1276 = vmatprep.subr.bf16.mxu0 %v1065
        %1277 = vmatpush2.bf16.msra.mxu0 %v1064
        %1278 = vmatprep.subr.bf16.mxu0 %v1061
        %1279 = vmatpush2.bf16.msra.mxu0 %v1060
        %1280 = vmatprep.subr.bf16.mxu0 %v1057
        %1281 = vmatpush2.bf16.msra.mxu0 %v1056
        %1282 = vmatprep.subr.bf16.mxu0 %v1053
        %1283 = vmatpush2.bf16.msra.mxu0 %v1052
        %1284 = vmatprep.subr.bf16.mxu0 %v1049
        %1285 = vmatpush2.bf16.msra.mxu0 %v1048
        %1286 = vmatprep.subr.bf16.mxu0 %v1045
        %1287 = vmatpush2.bf16.msra.mxu0 %v1044
        %1288 = vmatprep.subr.bf16.mxu0 %v1041
        %1289 = vmatpush2.bf16.msra.mxu0 %v1040
        %1290 = vmatprep.subr.bf16.mxu0 %v1037
        %1291 = vmatpush2.bf16.msra.mxu0 %v1036
        %1292 = vmatprep.mubr.bf16.mxu0 %v613
        %1293 = vmatmul.mubr.bf16.gmra.mxu0 %v612
        %v1294 = vpop.f32.mrf.mxu0
        %v1295 = vadd.f32 0.0, %v1294
        %v1296 = vpop.f32.mrf.mxu0
        %v1297 = vadd.f32 0.0, %v1296
        %v1298 = vpop.f32.mrf.mxu0
        %v1299 = vadd.f32 0.0, %v1298
        %v1300 = vpop.f32.mrf.mxu0
        %v1301 = vadd.f32 0.0, %v1300
        %1302 = vdwg.mxu0
        %1303 = vmatprep.subr.bf16.mxu0 %v1097
        %1304 = vmatpush1.bf16.msra.mxu0 %v1096
        %1305 = vmatprep.subr.bf16.mxu0 %v1093
        %1306 = vmatpush1.bf16.msra.mxu0 %v1092
        %1307 = vmatprep.subr.bf16.mxu0 %v1089
        %1308 = vmatpush1.bf16.msra.mxu0 %v1088
        %1309 = vmatprep.subr.bf16.mxu0 %v1085
        %1310 = vmatpush1.bf16.msra.mxu0 %v1084
        %1311 = vmatprep.subr.bf16.mxu0 %v1081
        %1312 = vmatpush1.bf16.msra.mxu0 %v1080
        %1313 = vmatprep.subr.bf16.mxu0 %v1077
        %1314 = vmatpush1.bf16.msra.mxu0 %v1076
        %1315 = vmatprep.subr.bf16.mxu0 %v1073
        %1316 = vmatpush1.bf16.msra.mxu0 %v1072
        %1317 = vmatprep.subr.bf16.mxu0 %v1069
        %1318 = vmatpush1.bf16.msra.mxu0 %v1068
        %1319 = vmatprep.subr.bf16.mxu0 %v1129
        %1320 = vmatpush2.bf16.msra.mxu0 %v1128
        %1321 = vmatprep.subr.bf16.mxu0 %v1125
        %1322 = vmatpush2.bf16.msra.mxu0 %v1124
        %1323 = vmatprep.subr.bf16.mxu0 %v1121
        %1324 = vmatpush2.bf16.msra.mxu0 %v1120
        %1325 = vmatprep.subr.bf16.mxu0 %v1117
        %1326 = vmatpush2.bf16.msra.mxu0 %v1116
        %1327 = vmatprep.subr.bf16.mxu0 %v1113
        %1328 = vmatpush2.bf16.msra.mxu0 %v1112
        %1329 = vmatprep.subr.bf16.mxu0 %v1109
        %1330 = vmatpush2.bf16.msra.mxu0 %v1108
        %1331 = vmatprep.subr.bf16.mxu0 %v1105
        %1332 = vmatpush2.bf16.msra.mxu0 %v1104
        %1333 = vmatprep.subr.bf16.mxu0 %v1101
        %1334 = vmatpush2.bf16.msra.mxu0 %v1100
        %1335 = vmatprep.mubr.bf16.mxu0 %v615
        %1336 = vmatmul.mubr.bf16.gmra.mxu0 %v614
        %v1337 = vpop.f32.mrf.mxu0
        %v1338 = vadd.f32 %v1295, %v1337
        %v1339 = vpop.f32.mrf.mxu0
        %v1340 = vadd.f32 %v1297, %v1339
        %v1341 = vpop.f32.mrf.mxu0
        %v1342 = vadd.f32 %v1299, %v1341
        %v1343 = vpop.f32.mrf.mxu0
        %v1344 = vadd.f32 %v1301, %v1343
        %1345 = vdwg.mxu0
        %1346 = vmatprep.subr.bf16.mxu0 %v1035
        %1347 = vmatpush1.bf16.msra.mxu0 %v1034
        %1348 = vmatprep.subr.bf16.mxu0 %v1031
        %1349 = vmatpush1.bf16.msra.mxu0 %v1030
        %1350 = vmatprep.subr.bf16.mxu0 %v1027
        %1351 = vmatpush1.bf16.msra.mxu0 %v1026
        %1352 = vmatprep.subr.bf16.mxu0 %v1023
        %1353 = vmatpush1.bf16.msra.mxu0 %v1022
        %1354 = vmatprep.subr.bf16.mxu0 %v1019
        %1355 = vmatpush1.bf16.msra.mxu0 %v1018
        %1356 = vmatprep.subr.bf16.mxu0 %v1015
        %1357 = vmatpush1.bf16.msra.mxu0 %v1014
        %1358 = vmatprep.subr.bf16.mxu0 %v1011
        %1359 = vmatpush1.bf16.msra.mxu0 %v1010
        %1360 = vmatprep.subr.bf16.mxu0 %v1007
        %1361 = vmatpush1.bf16.msra.mxu0 %v1006
        %1362 = vmatprep.subr.bf16.mxu0 %v1067
        %1363 = vmatpush2.bf16.msra.mxu0 %v1066
        %1364 = vmatprep.subr.bf16.mxu0 %v1063
        %1365 = vmatpush2.bf16.msra.mxu0 %v1062
        %1366 = vmatprep.subr.bf16.mxu0 %v1059
        %1367 = vmatpush2.bf16.msra.mxu0 %v1058
        %1368 = vmatprep.subr.bf16.mxu0 %v1055
        %1369 = vmatpush2.bf16.msra.mxu0 %v1054
        %1370 = vmatprep.subr.bf16.mxu0 %v1051
        %1371 = vmatpush2.bf16.msra.mxu0 %v1050
        %1372 = vmatprep.subr.bf16.mxu0 %v1047
        %1373 = vmatpush2.bf16.msra.mxu0 %v1046
        %1374 = vmatprep.subr.bf16.mxu0 %v1043
        %1375 = vmatpush2.bf16.msra.mxu0 %v1042
        %1376 = vmatprep.subr.bf16.mxu0 %v1039
        %1377 = vmatpush2.bf16.msra.mxu0 %v1038
        %1378 = vmatprep.mubr.bf16.mxu0 %v613
        %1379 = vmatmul.mubr.bf16.gmra.mxu0 %v612
        %v1380 = vpop.f32.mrf.mxu0
        %v1381 = vadd.f32 0.0, %v1380
        %v1382 = vpop.f32.mrf.mxu0
        %v1383 = vadd.f32 0.0, %v1382
        %v1384 = vpop.f32.mrf.mxu0
        %v1385 = vadd.f32 0.0, %v1384
        %v1386 = vpop.f32.mrf.mxu0
        %v1387 = vadd.f32 0.0, %v1386
        %1388 = vdwg.mxu0
        %1389 = vmatprep.subr.bf16.mxu0 %v1099
        %1390 = vmatpush1.bf16.msra.mxu0 %v1098
        %1391 = vmatprep.subr.bf16.mxu0 %v1095
        %1392 = vmatpush1.bf16.msra.mxu0 %v1094
        %1393 = vmatprep.subr.bf16.mxu0 %v1091
        %1394 = vmatpush1.bf16.msra.mxu0 %v1090
        %1395 = vmatprep.subr.bf16.mxu0 %v1087
        %1396 = vmatpush1.bf16.msra.mxu0 %v1086
        %1397 = vmatprep.subr.bf16.mxu0 %v1083
        %1398 = vmatpush1.bf16.msra.mxu0 %v1082
        %1399 = vmatprep.subr.bf16.mxu0 %v1079
        %1400 = vmatpush1.bf16.msra.mxu0 %v1078
        %1401 = vmatprep.subr.bf16.mxu0 %v1075
        %1402 = vmatpush1.bf16.msra.mxu0 %v1074
        %1403 = vmatprep.subr.bf16.mxu0 %v1071
        %1404 = vmatpush1.bf16.msra.mxu0 %v1070
        %1405 = vmatprep.subr.bf16.mxu0 %v1131
        %1406 = vmatpush2.bf16.msra.mxu0 %v1130
        %1407 = vmatprep.subr.bf16.mxu0 %v1127
        %1408 = vmatpush2.bf16.msra.mxu0 %v1126
        %1409 = vmatprep.subr.bf16.mxu0 %v1123
        %1410 = vmatpush2.bf16.msra.mxu0 %v1122
        %1411 = vmatprep.subr.bf16.mxu0 %v1119
        %1412 = vmatpush2.bf16.msra.mxu0 %v1118
        %1413 = vmatprep.subr.bf16.mxu0 %v1115
        %1414 = vmatpush2.bf16.msra.mxu0 %v1114
        %1415 = vmatprep.subr.bf16.mxu0 %v1111
        %1416 = vmatpush2.bf16.msra.mxu0 %v1110
        %1417 = vmatprep.subr.bf16.mxu0 %v1107
        %1418 = vmatpush2.bf16.msra.mxu0 %v1106
        %1419 = vmatprep.subr.bf16.mxu0 %v1103
        %1420 = vmatpush2.bf16.msra.mxu0 %v1102
        %1421 = vmatprep.mubr.bf16.mxu0 %v615
        %1422 = vmatmul.mubr.bf16.gmra.mxu0 %v614
        %v1423 = vpop.f32.mrf.mxu0
        %v1424 = vadd.f32 %v1381, %v1423
        %v1425 = vpop.f32.mrf.mxu0
        %v1426 = vadd.f32 %v1383, %v1425
        %v1427 = vpop.f32.mrf.mxu0
        %v1428 = vadd.f32 %v1385, %v1427
        %v1429 = vpop.f32.mrf.mxu0
        %v1430 = vadd.f32 %v1387, %v1429
        %1431 = vdwg.mxu0
        %v1432 = vld [vmem:[%s2] sm:$0xff]
        %v1433 = vld [vmem:[%s2 + $0x8] sm:$0xff]
        %1435 = vset.pattern.permute.xlu0 0
        %1436 = vperm.xlu0 %1435, %v1432
        %v1437 = vpop.permute.xlu0 %1436
        %1440 = vset.pattern.permute.xlu0 0
        %1441 = vperm.xlu0 %1440, %v1433
        %v1442 = vpop.permute.xlu0 %1441
        %v1444 = vmul.f32 %v1338, %v1437
        %v1445 = vmul.f32 %v1340, %v1437
        %v1446 = vmul.f32 %v1424, %v1437
        %v1447 = vmul.f32 %v1426, %v1437
        %v1448 = vmul.f32 %v1342, %v1442
        %v1449 = vmul.f32 %v1344, %v1442
        %v1450 = vmul.f32 %v1428, %v1442
        %v1451 = vmul.f32 %v1430, %v1442
        %v1452 = vld [vmem:[%s3] sm:$0xff]
        %v1453 = vld [vmem:[%s3 + $0x8] sm:$0xff]
        %1455 = vset.pattern.permute.xlu0 0
        %1456 = vperm.xlu0 %1455, %v1452
        %v1457 = vpop.permute.xlu0 %1456
        %1460 = vset.pattern.permute.xlu0 0
        %1461 = vperm.xlu0 %1460, %v1453
        %v1462 = vpop.permute.xlu0 %1461
        %v1464 = vadd.f32 %v1444, %v1457
        %v1465 = vadd.f32 %v1445, %v1457
        %v1466 = vadd.f32 %v1446, %v1457
        %v1467 = vadd.f32 %v1447, %v1457
        %v1468 = vadd.f32 %v1448, %v1462
        %v1469 = vadd.f32 %v1449, %v1462
        %v1470 = vadd.f32 %v1450, %v1462
        %v1471 = vadd.f32 %v1451, %v1462
        %v1472 = vmax.f32 %v1464, 0.0
        %v1473 = vmax.f32 %v1465, 0.0
        %v1474 = vmax.f32 %v1466, 0.0
        %v1475 = vmax.f32 %v1467, 0.0
        %v1476 = vmax.f32 %v1468, 0.0
        %v1477 = vmax.f32 %v1469, 0.0
        %v1478 = vmax.f32 %v1470, 0.0
        %v1479 = vmax.f32 %v1471, 0.0
        %v1480 = vpack.c.bf16 %v1476, %v1472
        %v1481 = vpack.c.bf16 %v1477, %v1473
        %v1482 = vpack.c.bf16 %v1478, %v1474
        %v1483 = vpack.c.bf16 %v1479, %v1475
        %v1488 = vunpack.c.l.b16 %v1480
        %v1489 = vunpack.c.l.b16 %v1481
        %v1490 = vunpack.c.l.b16 %v1482
        %v1491 = vunpack.c.l.b16 %v1483
        %v1492 = vunpack.c.h.b16 %v1480
        %v1493 = vunpack.c.h.b16 %v1481
        %v1494 = vunpack.c.h.b16 %v1482
        %v1495 = vunpack.c.h.b16 %v1483
        %v1496 = vpack.c.b16 %v1489, %v1488
        %v1497 = vpack.c.b16 %v1491, %v1490
        %v1498 = vpack.c.b16 %v1493, %v1492
        %v1499 = vpack.c.b16 %v1495, %v1494
        %1504 = vst [vmem:[%s465] sm:$0xff] %v1496
        %1505 = vst [vmem:[%s465 + $0x8] sm:$0xff] %v1497
        %1506 = vst [vmem:[%s465 + $0x10] sm:$0xff] %v1498
        %1507 = vst [vmem:[%s465 + $0x18] sm:$0xff] %v1499
        %s1508 = sand.u32 %s112, 1
        %s1509 = sand.u32 %s112, 1
        %s1510 = smul.addr %s1509, 32
        %s1511 = scalar_lea.vmem [#allocation3], %s1510
        // Predicated region
        $region60: #{cnn3d_block.2} parent=54 // pred_check
          %p1512 = pneg %p122
        $region61: #{cnn3d_block.2} parent=54 // pred_check_branch
          %1514 = sbr.rel (%p1512) target = $region63
        $region62: #{cnn3d_block.2} parent=54 // pred_region
          %s1515 = smul.u32 4, %s15
          %s1516 = smul.addr %s1515, 4
          %s1517 = scalar_lea.vmem %s4, %s1516
          // Predicated region
          $region64: #{cnn3d_block.2} parent=62 // pred_check
            _
          $region65: #{cnn3d_block.2} parent=62 // pred_check_branch
            %1519 = sbr.rel (0) target = $region67
          $region66: #{cnn3d_block.2} parent=62 // pred_region
            // Predicated region
            $region68: #{cnn3d_block.2} parent=66 // pred_check
              _
            $region69: #{cnn3d_block.2} parent=66 // pred_check_branch
              %1521 = sbr.rel (0) target = $region71
            $region70: #{cnn3d_block.2} parent=66 // pred_region
              loop: start=0, step=1, limit=1
              $region72: #{cnn3d_block.2} parent=70 // loop_pre_header
                _
              $region73: #{cnn3d_block.2} parent=70 // loop_header
                %s1523 = sphi 0, %s1527
                %p1524 = scmp.ge.s32.totalorder %s1523, 1
                %s1528 = sphi %s1511, %s1511
                %s1529 = sphi %s1517, %s1517
              $region74: #{cnn3d_block.2} parent=70 // loop_header_branch
                %1526 = sbr.rel (%p1524) target = $region78
              $region75: #{cnn3d_block.2} parent=70 // loop_body
                %v1530 = vld [vmem:[%s1528] sm:$0xff]
                %1531 = vst [vmem:[%s1529] sm:$0xff] %v1530
                %v1532 = vld [vmem:[%s1528 + $0x8] sm:$0xff]
                %1533 = vst [vmem:[%s1529 + $0x8] sm:$0xff] %v1532
                %v1534 = vld [vmem:[%s1528 + $0x10] sm:$0xff]
                %1535 = vst [vmem:[%s1529 + $0x20] sm:$0xff] %v1534
                %v1536 = vld [vmem:[%s1528 + $0x18] sm:$0xff]
                %1537 = vst [vmem:[%s1529 + $0x28] sm:$0xff] %v1536
              $region76: #{cnn3d_block.2} parent=70 // loop_footer
                %s1527 = sadd.s32 1, %s1523
              $region77: #{cnn3d_block.2} parent=70 // loop_footer_branch
                %1522 = sbr.rel target = $region73
              $region78: #{cnn3d_block.2} parent=70 // loop_exit
                _
            $region71: #{cnn3d_block.2} parent=66 // pred_fallthru
              _
            // Predicated region
            $region79: #{cnn3d_block.2} parent=66 // pred_check
              _
            $region80: #{cnn3d_block.2} parent=66 // pred_check_branch
              %1539 = sbr.rel target = $region82
            $region81: #{cnn3d_block.2} parent=66 // pred_region
              _
            $region82: #{cnn3d_block.2} parent=66 // pred_fallthru
              _
          $region67: #{cnn3d_block.2} parent=62 // pred_fallthru
            _
          %1540 = vnop
        $region63: #{cnn3d_block.2} parent=54 // pred_fallthru
          _
      $region55: #{cnn3d_block.2} parent=5 // pred_fallthru
        _
      %p1541 = scmp.le.s32.totalorder 2, %s10
      // Predicated region
      $region83: #{cnn3d_block.2} parent=5 // pred_check
        %p1542 = pneg %p1541
      $region84: #{cnn3d_block.2} parent=5 // pred_check_branch
        %1544 = sbr.rel (%p1542) target = $region86
      $region85: #{cnn3d_block.2} parent=5 // pred_region
        %s1545 = ssub.s32 %s10, 2
        // Predicated region
        $region87: #{cnn3d_block.2} parent=85 // pred_check
          %p1546 = pneg %p128
        $region88: #{cnn3d_block.2} parent=85 // pred_check_branch
          %1548 = sbr.rel (%p1546) target = $region90
        $region89: #{cnn3d_block.2} parent=85 // pred_region
          %s1549 = sand.u32 %s113, 1
          %s1550 = sand.u32 %s113, 1
          %s1551 = smul.addr %s1550, 32
          %s1552 = scalar_lea.vmem [#allocation3], %s1551
        $region90: #{cnn3d_block.2} parent=85 // pred_fallthru
          _
      $region86: #{cnn3d_block.2} parent=5 // pred_fallthru
        _
    $region6: #{cnn3d_block.2} parent=1 // loop_footer
      %s14 = sadd.s32 1, %s10
    $region7: #{cnn3d_block.2} parent=1 // loop_footer_branch
      %9 = sbr.rel target = $region3
    $region8: #{cnn3d_block.2} parent=1 // loop_exit
      _

// kernel: cnn3d_block.3
$region0: #{cnn3d_block.3}
  #allocation0 [shape = 'u32[]', space=smem, size = 0x4, offset = 0x4, fixed_abs, tag = 'smem constant byte address 0x4 - core index']
  #allocation1 [shape = 'u32[144,128]{1,0:T(1,128)}', space=vmem, size = 0x12000, scoped, tag = 'internal scratch']
  %s0 = inlined_call_operand.vmem [shape: bf16[1024,1024], index: 0, kind: input, shape index: {}]
  %s1 = inlined_call_operand.vmem [shape: bf16[16,1024], index: 1, kind: input, shape index: {}]
  %s2 = inlined_call_operand.vmem [shape: f32[16,1], index: 2, kind: input, shape index: {}]
  %s3 = inlined_call_operand.vmem [shape: f32[16,1], index: 3, kind: input, shape index: {}]
  %s4 = inlined_call_operand.vmem [shape: f32[16,1024], index: 4, kind: output, shape index: {}]
  %s5 = sld [smem:[#allocation0]]
  $region91: #{cnn3d_block.3} parent=0
    _
  %s7 = ssub.s32 1, %s5
  %s8 = scalar_select 0, %s7, %s5
  $region1: #{cnn3d_block.3} parent=0
    #allocation2 [shape = 'u8[2097152]{0}', space=vmem, size = 0x200000, scoped, tag = 'input window, operand 0']
    #allocation3 [shape = 'u8[65536]{0}', space=vmem, size = 0x10000, scoped, tag = 'output window, operand 0']
    loop: start=0, step=1, limit=4
    $region2: #{cnn3d_block.3} parent=1 // loop_pre_header
      _
    $region3: #{cnn3d_block.3} parent=1 // loop_header
      %s10 = sphi 0, %s14
      %p11 = scmp.ge.s32.totalorder %s10, 4
      %s20 = sphi 0, %s22
      %s23 = sphi 0, %s20
      %s24 = sphi 0, %s23
      %s40 = sphi 0, %s24
      %s44 = sphi 0, %s44
      %s46 = sphi 0, %s44
      %s47 = sphi 0, %s46
      %s61 = sphi 0, %s47
      %s65 = sphi 0, %s65
      %s67 = sphi 0, %s65
      %s68 = sphi 0, %s67
      %s82 = sphi 0, %s68
      %s86 = sphi 0, %s86
      %s88 = sphi 0, %s86
      %s89 = sphi 0, %s88
      %s103 = sphi 0, %s89
      %s109 = sphi 0, %s111
      %s112 = sphi 0, %s109
      %s113 = sphi 0, %s112
      %s129 = sphi 0, %s113
    $region4: #{cnn3d_block.3} parent=1 // loop_header_branch
      %13 = sbr.rel (%p11) target = $region8
    $region5: #{cnn3d_block.3} parent=1 // loop_body
      %s15 = ssub.s32 %s10, 1
      %s16 = ssub.s32 %s10, 2
      %s17 = sadd.s32 %s10, 1
      %s18 = ssub.s32 %s10, %s17
      %p19 = scmp.eq.s32.totalorder %s18, 0
      %s21 = sadd.s32 %s20, 1
      %s22 = scalar_select %p19, %s20, %s21
      %p25 = pneg %p19
      %p26 = scmp.eq.s32.totalorder %s10, 1
      %p27 = por %p25, %p26
      %p28 = scmp.ne.s32.totalorder %s20, %s23
      %p29 = scmp.eq.s32.totalorder %s10, 0
      %p30 = por %p28, %p29
      %p31 = scmp.ne.s32.totalorder %s20, %s23
      %p32 = scmp.eq.s32.totalorder %s15, 1
      %p33 = por %p31, %p32
      %p34 = scmp.ne.s32.totalorder %s23, %s24
      %p35 = scmp.eq.s32.totalorder %s15, 0
      %p36 = por %p34, %p35
      %p37 = scmp.ne.s32.totalorder %s23, %s24
      %p38 = scmp.eq.s32.totalorder %s16, 1
      %p39 = por %p37, %p38
      %p41 = scmp.ne.s32.totalorder %s24, %s40
      %p42 = scmp.eq.s32.totalorder %s16, 0
      %p43 = por %p41, %p42
      %s45 = sadd.s32 %s44, 1
      %p48 = scmp.eq.s32.totalorder %s10, 1
      %p49 = scmp.ne.s32.totalorder %s44, %s46
      %p50 = scmp.eq.s32.totalorder %s10, 0
      %p51 = por %p49, %p50
      %p52 = scmp.ne.s32.totalorder %s44, %s46
      %p53 = scmp.eq.s32.totalorder %s15, 1
      %p54 = por %p52, %p53
      %p55 = scmp.ne.s32.totalorder %s46, %s47
      %p56 = scmp.eq.s32.totalorder %s15, 0
      %p57 = por %p55, %p56
      %p58 = scmp.ne.s32.totalorder %s46, %s47
      %p59 = scmp.eq.s32.totalorder %s16, 1
      %p60 = por %p58, %p59
      %p62 = scmp.ne.s32.totalorder %s47, %s61
      %p63 = scmp.eq.s32.totalorder %s16, 0
      %p64 = por %p62, %p63
      %s66 = sadd.s32 %s65, 1
      %p69 = scmp.eq.s32.totalorder %s10, 1
      %p70 = scmp.ne.s32.totalorder %s65, %s67
      %p71 = scmp.eq.s32.totalorder %s10, 0
      %p72 = por %p70, %p71
      %p73 = scmp.ne.s32.totalorder %s65, %s67
      %p74 = scmp.eq.s32.totalorder %s15, 1
      %p75 = por %p73, %p74
      %p76 = scmp.ne.s32.totalorder %s67, %s68
      %p77 = scmp.eq.s32.totalorder %s15, 0
      %p78 = por %p76, %p77
      %p79 = scmp.ne.s32.totalorder %s67, %s68
      %p80 = scmp.eq.s32.totalorder %s16, 1
      %p81 = por %p79, %p80
      %p83 = scmp.ne.s32.totalorder %s68, %s82
      %p84 = scmp.eq.s32.totalorder %s16, 0
      %p85 = por %p83, %p84
      %s87 = sadd.s32 %s86, 1
      %p90 = scmp.eq.s32.totalorder %s10, 1
      %p91 = scmp.ne.s32.totalorder %s86, %s88
      %p92 = scmp.eq.s32.totalorder %s10, 0
      %p93 = por %p91, %p92
      %p94 = scmp.ne.s32.totalorder %s86, %s88
      %p95 = scmp.eq.s32.totalorder %s15, 1
      %p96 = por %p94, %p95
      %p97 = scmp.ne.s32.totalorder %s88, %s89
      %p98 = scmp.eq.s32.totalorder %s15, 0
      %p99 = por %p97, %p98
      %p100 = scmp.ne.s32.totalorder %s88, %s89
      %p101 = scmp.eq.s32.totalorder %s16, 1
      %p102 = por %p100, %p101
      %p104 = scmp.ne.s32.totalorder %s89, %s103
      %p105 = scmp.eq.s32.totalorder %s16, 0
      %p106 = por %p104, %p105
      %s107 = ssub.s32 %s10, %s17
      %p108 = scmp.eq.s32.totalorder %s107, 0
      %s110 = sadd.s32 %s109, 1
      %s111 = scalar_select %p108, %s109, %s110
      %p114 = pneg %p108
      %p115 = scmp.eq.s32.totalorder %s10, 1
      %p116 = por %p114, %p115
      %p117 = scmp.ne.s32.totalorder %s109, %s112
      %p118 = scmp.eq.s32.totalorder %s10, 0
      %p119 = por %p117, %p118
      %p120 = scmp.ne.s32.totalorder %s109, %s112
      %p121 = scmp.eq.s32.totalorder %s15, 1
      %p122 = por %p120, %p121
      %p123 = scmp.ne.s32.totalorder %s112, %s113
      %p124 = scmp.eq.s32.totalorder %s15, 0
      %p125 = por %p123, %p124
      %p126 = scmp.ne.s32.totalorder %s112, %s113
      %p127 = scmp.eq.s32.totalorder %s16, 1
      %p128 = por %p126, %p127
      %p130 = scmp.ne.s32.totalorder %s113, %s129
      %p131 = scmp.eq.s32.totalorder %s16, 0
      %p132 = por %p130, %p131
      %p133 = scmp.le.s32.totalorder 1, %s10
      %p134 = scmp.lt.s32.totalorder %s10, 3
      %p135 = pnand %p133, %p134
      %p136 = pneg %p135
      // Predicated region
      $region9: #{cnn3d_block.3} parent=5 // pred_check
        _
      $region10: #{cnn3d_block.3} parent=5 // pred_check_branch
        %138 = sbr.rel (%p135) target = $region12
      $region11: #{cnn3d_block.3} parent=5 // pred_region
        %s139 = ssub.s32 %s10, 1
        // Predicated region
        $region13: #{cnn3d_block.3} parent=11 // pred_check
          %p140 = pneg %p57
        $region14: #{cnn3d_block.3} parent=11 // pred_check_branch
          %142 = sbr.rel (%p140) target = $region16
        $region15: #{cnn3d_block.3} parent=11 // pred_region
          _
        $region16: #{cnn3d_block.3} parent=11 // pred_fallthru
          _
        // Predicated region
        $region17: #{cnn3d_block.3} parent=11 // pred_check
          %p143 = pneg %p78
        $region18: #{cnn3d_block.3} parent=11 // pred_check_branch
          %145 = sbr.rel (%p143) target = $region20
        $region19: #{cnn3d_block.3} parent=11 // pred_region
          _
        $region20: #{cnn3d_block.3} parent=11 // pred_fallthru
          _
        // Predicated region
        $region21: #{cnn3d_block.3} parent=11 // pred_check
          %p146 = pneg %p99
        $region22: #{cnn3d_block.3} parent=11 // pred_check_branch
          %148 = sbr.rel (%p146) target = $region24
        $region23: #{cnn3d_block.3} parent=11 // pred_region
          _
        $region24: #{cnn3d_block.3} parent=11 // pred_fallthru
          _
      $region12: #{cnn3d_block.3} parent=5 // pred_fallthru
        _
      %p149 = scmp.lt.s32.totalorder %s10, 2
      // Predicated region
      $region25: #{cnn3d_block.3} parent=5 // pred_check
        %p150 = pneg %p149
      $region26: #{cnn3d_block.3} parent=5 // pred_check_branch
        %152 = sbr.rel (%p150) target = $region28
      $region27: #{cnn3d_block.3} parent=5 // pred_region
        // Predicated region
        $region29: #{cnn3d_block.3} parent=27 // pred_check
          %p153 = pneg %p30
        $region30: #{cnn3d_block.3} parent=27 // pred_check_branch
          %155 = sbr.rel (%p153) target = $region32
        $region31: #{cnn3d_block.3} parent=27 // pred_region
          %s156 = sand.u32 %s20, 1
          %s157 = sand.u32 %s20, 1
          %s158 = smul.addr %s157, 2048
          %s159 = scalar_lea.vmem [#allocation2], %s158
          %s160 = smul.u32 4, %s10
          %s161 = smul.addr %s160, 4
          %s162 = scalar_lea.vmem %s0, %s161
          // Predicated region
          $region33: #{cnn3d_block.3} parent=31 // pred_check
            _
          $region34: #{cnn3d_block.3} parent=31 // pred_check_branch
            %164 = sbr.rel (0) target = $region36
          $region35: #{cnn3d_block.3} parent=31 // pred_region
            // Predicated region
            $region37: #{cnn3d_block.3} parent=35 // pred_check
              _
            $region38: #{cnn3d_block.3} parent=35 // pred_check_branch
              %166 = sbr.rel (0) target = $region40
            $region39: #{cnn3d_block.3} parent=35 // pred_region
              loop: start=0, step=1, limit=1
              $region41: #{cnn3d_block.3} parent=39 // loop_pre_header
                _
              $region42: #{cnn3d_block.3} parent=39 // loop_header
                %s168 = sphi 0, %s172
                %p169 = scmp.ge.s32.totalorder %s168, 1
                %s173 = sphi %s162, %s162
                %s174 = sphi %s159, %s159
              $region43: #{cnn3d_block.3} parent=39 // loop_header_branch
                %171 = sbr.rel (%p169) target = $region47
              $region44: #{cnn3d_block.3} parent=39 // loop_body
                %v175 = vld [vmem:[%s173] sm:$0xff]
                %176 = vst [vmem:[%s174] sm:$0xff] %v175
                %v177 = vld [vmem:[%s173 + $0x8] sm:$0xff]
                %178 = vst [vmem:[%s174 + $0x8] sm:$0xff] %v177
                %v179 = vld [vmem:[%s173 + $0x20] sm:$0xff]
                %180 = vst [vmem:[%s174 + $0x10] sm:$0xff] %v179
                %v181 = vld [vmem:[%s173 + $0x28] sm:$0xff]
                %182 = vst [vmem:[%s174 + $0x18] sm:$0xff] %v181
                %v183 = vld [vmem:[%s173 + $0x40] sm:$0xff]
                %184 = vst [vmem:[%s174 + $0x20] sm:$0xff] %v183
                %v185 = vld [vmem:[%s173 + $0x48] sm:$0xff]
                %186 = vst [vmem:[%s174 + $0x28] sm:$0xff] %v185
                %v187 = vld [vmem:[%s173 + $0x60] sm:$0xff]
                %188 = vst [vmem:[%s174 + $0x30] sm:$0xff] %v187
                %v189 = vld [vmem:[%s173 + $0x68] sm:$0xff]
                %190 = vst [vmem:[%s174 + $0x38] sm:$0xff] %v189
                %v191 = vld [vmem:[%s173 + $0x80] sm:$0xff]
                %192 = vst [vmem:[%s174 + $0x40] sm:$0xff] %v191
                %v193 = vld [vmem:[%s173 + $0x88] sm:$0xff]
                %194 = vst [vmem:[%s174 + $0x48] sm:$0xff] %v193
                %v195 = vld [vmem:[%s173 + $0xa0] sm:$0xff]
                %196 = vst [vmem:[%s174 + $0x50] sm:$0xff] %v195
                %v197 = vld [vmem:[%s173 + $0xa8] sm:$0xff]
                %198 = vst [vmem:[%s174 + $0x58] sm:$0xff] %v197
                %v199 = vld [vmem:[%s173 + $0xc0] sm:$0xff]
                %200 = vst [vmem:[%s174 + $0x60] sm:$0xff] %v199
                %v201 = vld [vmem:[%s173 + $0xc8] sm:$0xff]
                %202 = vst [vmem:[%s174 + $0x68] sm:$0xff] %v201
                %v203 = vld [vmem:[%s173 + $0xe0] sm:$0xff]
                %204 = vst [vmem:[%s174 + $0x70] sm:$0xff] %v203
                %v205 = vld [vmem:[%s173 + $0xe8] sm:$0xff]
                %206 = vst [vmem:[%s174 + $0x78] sm:$0xff] %v205
                %v207 = vld [vmem:[%s173 + $0x100] sm:$0xff]
                %208 = vst [vmem:[%s174 + $0x80] sm:$0xff] %v207
                %v209 = vld [vmem:[%s173 + $0x108] sm:$0xff]
                %210 = vst [vmem:[%s174 + $0x88] sm:$0xff] %v209
                %v211 = vld [vmem:[%s173 + $0x120] sm:$0xff]
                %212 = vst [vmem:[%s174 + $0x90] sm:$0xff] %v211
                %v213 = vld [vmem:[%s173 + $0x128] sm:$0xff]
                %214 = vst [vmem:[%s174 + $0x98] sm:$0xff] %v213
                %v215 = vld [vmem:[%s173 + $0x140] sm:$0xff]
                %216 = vst [vmem:[%s174 + $0xa0] sm:$0xff] %v215
                %v217 = vld [vmem:[%s173 + $0x148] sm:$0xff]
                %218 = vst [vmem:[%s174 + $0xa8] sm:$0xff] %v217
                %v219 = vld [vmem:[%s173 + $0x160] sm:$0xff]
                %220 = vst [vmem:[%s174 + $0xb0] sm:$0xff] %v219
                %v221 = vld [vmem:[%s173 + $0x168] sm:$0xff]
                %222 = vst [vmem:[%s174 + $0xb8] sm:$0xff] %v221
                %v223 = vld [vmem:[%s173 + $0x180] sm:$0xff]
                %224 = vst [vmem:[%s174 + $0xc0] sm:$0xff] %v223
                %v225 = vld [vmem:[%s173 + $0x188] sm:$0xff]
                %226 = vst [vmem:[%s174 + $0xc8] sm:$0xff] %v225
                %v227 = vld [vmem:[%s173 + $0x1a0] sm:$0xff]
                %228 = vst [vmem:[%s174 + $0xd0] sm:$0xff] %v227
                %v229 = vld [vmem:[%s173 + $0x1a8] sm:$0xff]
                %230 = vst [vmem:[%s174 + $0xd8] sm:$0xff] %v229
                %v231 = vld [vmem:[%s173 + $0x1c0] sm:$0xff]
                %232 = vst [vmem:[%s174 + $0xe0] sm:$0xff] %v231
                %v233 = vld [vmem:[%s173 + $0x1c8] sm:$0xff]
                %234 = vst [vmem:[%s174 + $0xe8] sm:$0xff] %v233
                %v235 = vld [vmem:[%s173 + $0x1e0] sm:$0xff]
                %236 = vst [vmem:[%s174 + $0xf0] sm:$0xff] %v235
                %v237 = vld [vmem:[%s173 + $0x1e8] sm:$0xff]
                %238 = vst [vmem:[%s174 + $0xf8] sm:$0xff] %v237
                %v239 = vld [vmem:[%s173 + $0x200] sm:$0xff]
                %240 = vst [vmem:[%s174 + $0x100] sm:$0xff] %v239
                %v241 = vld [vmem:[%s173 + $0x208] sm:$0xff]
                %242 = vst [vmem:[%s174 + $0x108] sm:$0xff] %v241
                %v243 = vld [vmem:[%s173 + $0x220] sm:$0xff]
                %244 = vst [vmem:[%s174 + $0x110] sm:$0xff] %v243
                %v245 = vld [vmem:[%s173 + $0x228] sm:$0xff]
                %246 = vst [vmem:[%s174 + $0x118] sm:$0xff] %v245
                %v247 = vld [vmem:[%s173 + $0x240] sm:$0xff]
                %248 = vst [vmem:[%s174 + $0x120] sm:$0xff] %v247
                %v249 = vld [vmem:[%s173 + $0x248] sm:$0xff]
                %250 = vst [vmem:[%s174 + $0x128] sm:$0xff] %v249
                %v251 = vld [vmem:[%s173 + $0x260] sm:$0xff]
                %252 = vst [vmem:[%s174 + $0x130] sm:$0xff] %v251
                %v253 = vld [vmem:[%s173 + $0x268] sm:$0xff]
                %254 = vst [vmem:[%s174 + $0x138] sm:$0xff] %v253
                %v255 = vld [vmem:[%s173 + $0x280] sm:$0xff]
                %256 = vst [vmem:[%s174 + $0x140] sm:$0xff] %v255
                %v257 = vld [vmem:[%s173 + $0x288] sm:$0xff]
                %258 = vst [vmem:[%s174 + $0x148] sm:$0xff] %v257
                %v259 = vld [vmem:[%s173 + $0x2a0] sm:$0xff]
                %260 = vst [vmem:[%s174 + $0x150] sm:$0xff] %v259
                %v261 = vld [vmem:[%s173 + $0x2a8] sm:$0xff]
                %262 = vst [vmem:[%s174 + $0x158] sm:$0xff] %v261
                %v263 = vld [vmem:[%s173 + $0x2c0] sm:$0xff]
                %264 = vst [vmem:[%s174 + $0x160] sm:$0xff] %v263
                %v265 = vld [vmem:[%s173 + $0x2c8] sm:$0xff]
                %266 = vst [vmem:[%s174 + $0x168] sm:$0xff] %v265
                %v267 = vld [vmem:[%s173 + $0x2e0] sm:$0xff]
                %268 = vst [vmem:[%s174 + $0x170] sm:$0xff] %v267
                %v269 = vld [vmem:[%s173 + $0x2e8] sm:$0xff]
                %270 = vst [vmem:[%s174 + $0x178] sm:$0xff] %v269
                %v271 = vld [vmem:[%s173 + $0x300] sm:$0xff]
                %272 = vst [vmem:[%s174 + $0x180] sm:$0xff] %v271
                %v273 = vld [vmem:[%s173 + $0x308] sm:$0xff]
                %274 = vst [vmem:[%s174 + $0x188] sm:$0xff] %v273
                %v275 = vld [vmem:[%s173 + $0x320] sm:$0xff]
                %276 = vst [vmem:[%s174 + $0x190] sm:$0xff] %v275
                %v277 = vld [vmem:[%s173 + $0x328] sm:$0xff]
                %278 = vst [vmem:[%s174 + $0x198] sm:$0xff] %v277
                %v279 = vld [vmem:[%s173 + $0x340] sm:$0xff]
                %280 = vst [vmem:[%s174 + $0x1a0] sm:$0xff] %v279
                %v281 = vld [vmem:[%s173 + $0x348] sm:$0xff]
                %282 = vst [vmem:[%s174 + $0x1a8] sm:$0xff] %v281
                %v283 = vld [vmem:[%s173 + $0x360] sm:$0xff]
                %284 = vst [vmem:[%s174 + $0x1b0] sm:$0xff] %v283
                %v285 = vld [vmem:[%s173 + $0x368] sm:$0xff]
                %286 = vst [vmem:[%s174 + $0x1b8] sm:$0xff] %v285
                %v287 = vld [vmem:[%s173 + $0x380] sm:$0xff]
                %288 = vst [vmem:[%s174 + $0x1c0] sm:$0xff] %v287
                %v289 = vld [vmem:[%s173 + $0x388] sm:$0xff]
                %290 = vst [vmem:[%s174 + $0x1c8] sm:$0xff] %v289
                %v291 = vld [vmem:[%s173 + $0x3a0] sm:$0xff]
                %292 = vst [vmem:[%s174 + $0x1d0] sm:$0xff] %v291
                %v293 = vld [vmem:[%s173 + $0x3a8] sm:$0xff]
                %294 = vst [vmem:[%s174 + $0x1d8] sm:$0xff] %v293
                %v295 = vld [vmem:[%s173 + $0x3c0] sm:$0xff]
                %296 = vst [vmem:[%s174 + $0x1e0] sm:$0xff] %v295
                %v297 = vld [vmem:[%s173 + $0x3c8] sm:$0xff]
                %298 = vst [vmem:[%s174 + $0x1e8] sm:$0xff] %v297
                %v299 = vld [vmem:[%s173 + $0x3e0] sm:$0xff]
                %300 = vst [vmem:[%s174 + $0x1f0] sm:$0xff] %v299
                %v301 = vld [vmem:[%s173 + $0x3e8] sm:$0xff]
                %302 = vst [vmem:[%s174 + $0x1f8] sm:$0xff] %v301
                %v303 = vld [vmem:[%s173 + $0x400] sm:$0xff]
                %304 = vst [vmem:[%s174 + $0x200] sm:$0xff] %v303
                %v305 = vld [vmem:[%s173 + $0x408] sm:$0xff]
                %306 = vst [vmem:[%s174 + $0x208] sm:$0xff] %v305
                %v307 = vld [vmem:[%s173 + $0x420] sm:$0xff]
                %308 = vst [vmem:[%s174 + $0x210] sm:$0xff] %v307
                %v309 = vld [vmem:[%s173 + $0x428] sm:$0xff]
                %310 = vst [vmem:[%s174 + $0x218] sm:$0xff] %v309
                %v311 = vld [vmem:[%s173 + $0x440] sm:$0xff]
                %312 = vst [vmem:[%s174 + $0x220] sm:$0xff] %v311
                %v313 = vld [vmem:[%s173 + $0x448] sm:$0xff]
                %314 = vst [vmem:[%s174 + $0x228] sm:$0xff] %v313
                %v315 = vld [vmem:[%s173 + $0x460] sm:$0xff]
                %316 = vst [vmem:[%s174 + $0x230] sm:$0xff] %v315
                %v317 = vld [vmem:[%s173 + $0x468] sm:$0xff]
                %318 = vst [vmem:[%s174 + $0x238] sm:$0xff] %v317
                %v319 = vld [vmem:[%s173 + $0x480] sm:$0xff]
                %320 = vst [vmem:[%s174 + $0x240] sm:$0xff] %v319
                %v321 = vld [vmem:[%s173 + $0x488] sm:$0xff]
                %322 = vst [vmem:[%s174 + $0x248] sm:$0xff] %v321
                %v323 = vld [vmem:[%s173 + $0x4a0] sm:$0xff]
                %324 = vst [vmem:[%s174 + $0x250] sm:$0xff] %v323
                %v325 = vld [vmem:[%s173 + $0x4a8] sm:$0xff]
                %326 = vst [vmem:[%s174 + $0x258] sm:$0xff] %v325
                %v327 = vld [vmem:[%s173 + $0x4c0] sm:$0xff]
                %328 = vst [vmem:[%s174 + $0x260] sm:$0xff] %v327
                %v329 = vld [vmem:[%s173 + $0x4c8] sm:$0xff]
                %330 = vst [vmem:[%s174 + $0x268] sm:$0xff] %v329
                %v331 = vld [vmem:[%s173 + $0x4e0] sm:$0xff]
                %332 = vst [vmem:[%s174 + $0x270] sm:$0xff] %v331
                %v333 = vld [vmem:[%s173 + $0x4e8] sm:$0xff]
                %334 = vst [vmem:[%s174 + $0x278] sm:$0xff] %v333
                %v335 = vld [vmem:[%s173 + $0x500] sm:$0xff]
                %336 = vst [vmem:[%s174 + $0x280] sm:$0xff] %v335
                %v337 = vld [vmem:[%s173 + $0x508] sm:$0xff]
                %338 = vst [vmem:[%s174 + $0x288] sm:$0xff] %v337
                %v339 = vld [vmem:[%s173 + $0x520] sm:$0xff]
                %340 = vst [vmem:[%s174 + $0x290] sm:$0xff] %v339
                %v341 = vld [vmem:[%s173 + $0x528] sm:$0xff]
                %342 = vst [vmem:[%s174 + $0x298] sm:$0xff] %v341
                %v343 = vld [vmem:[%s173 + $0x540] sm:$0xff]
                %344 = vst [vmem:[%s174 + $0x2a0] sm:$0xff] %v343
                %v345 = vld [vmem:[%s173 + $0x548] sm:$0xff]
                %346 = vst [vmem:[%s174 + $0x2a8] sm:$0xff] %v345
                %v347 = vld [vmem:[%s173 + $0x560] sm:$0xff]
                %348 = vst [vmem:[%s174 + $0x2b0] sm:$0xff] %v347
                %v349 = vld [vmem:[%s173 + $0x568] sm:$0xff]
                %350 = vst [vmem:[%s174 + $0x2b8] sm:$0xff] %v349
                %v351 = vld [vmem:[%s173 + $0x580] sm:$0xff]
                %352 = vst [vmem:[%s174 + $0x2c0] sm:$0xff] %v351
                %v353 = vld [vmem:[%s173 + $0x588] sm:$0xff]
                %354 = vst [vmem:[%s174 + $0x2c8] sm:$0xff] %v353
                %v355 = vld [vmem:[%s173 + $0x5a0] sm:$0xff]
                %356 = vst [vmem:[%s174 + $0x2d0] sm:$0xff] %v355
                %v357 = vld [vmem:[%s173 + $0x5a8] sm:$0xff]
                %358 = vst [vmem:[%s174 + $0x2d8] sm:$0xff] %v357
                %v359 = vld [vmem:[%s173 + $0x5c0] sm:$0xff]
                %360 = vst [vmem:[%s174 + $0x2e0] sm:$0xff] %v359
                %v361 = vld [vmem:[%s173 + $0x5c8] sm:$0xff]
                %362 = vst [vmem:[%s174 + $0x2e8] sm:$0xff] %v361
                %v363 = vld [vmem:[%s173 + $0x5e0] sm:$0xff]
                %364 = vst [vmem:[%s174 + $0x2f0] sm:$0xff] %v363
                %v365 = vld [vmem:[%s173 + $0x5e8] sm:$0xff]
                %366 = vst [vmem:[%s174 + $0x2f8] sm:$0xff] %v365
                %v367 = vld [vmem:[%s173 + $0x600] sm:$0xff]
                %368 = vst [vmem:[%s174 + $0x300] sm:$0xff] %v367
                %v369 = vld [vmem:[%s173 + $0x608] sm:$0xff]
                %370 = vst [vmem:[%s174 + $0x308] sm:$0xff] %v369
                %v371 = vld [vmem:[%s173 + $0x620] sm:$0xff]
                %372 = vst [vmem:[%s174 + $0x310] sm:$0xff] %v371
                %v373 = vld [vmem:[%s173 + $0x628] sm:$0xff]
                %374 = vst [vmem:[%s174 + $0x318] sm:$0xff] %v373
                %v375 = vld [vmem:[%s173 + $0x640] sm:$0xff]
                %376 = vst [vmem:[%s174 + $0x320] sm:$0xff] %v375
                %v377 = vld [vmem:[%s173 + $0x648] sm:$0xff]
                %378 = vst [vmem:[%s174 + $0x328] sm:$0xff] %v377
                %v379 = vld [vmem:[%s173 + $0x660] sm:$0xff]
                %380 = vst [vmem:[%s174 + $0x330] sm:$0xff] %v379
                %v381 = vld [vmem:[%s173 + $0x668] sm:$0xff]
                %382 = vst [vmem:[%s174 + $0x338] sm:$0xff] %v381
                %v383 = vld [vmem:[%s173 + $0x680] sm:$0xff]
                %384 = vst [vmem:[%s174 + $0x340] sm:$0xff] %v383
                %v385 = vld [vmem:[%s173 + $0x688] sm:$0xff]
                %386 = vst [vmem:[%s174 + $0x348] sm:$0xff] %v385
                %v387 = vld [vmem:[%s173 + $0x6a0] sm:$0xff]
                %388 = vst [vmem:[%s174 + $0x350] sm:$0xff] %v387
                %v389 = vld [vmem:[%s173 + $0x6a8] sm:$0xff]
                %390 = vst [vmem:[%s174 + $0x358] sm:$0xff] %v389
                %v391 = vld [vmem:[%s173 + $0x6c0] sm:$0xff]
                %392 = vst [vmem:[%s174 + $0x360] sm:$0xff] %v391
                %v393 = vld [vmem:[%s173 + $0x6c8] sm:$0xff]
                %394 = vst [vmem:[%s174 + $0x368] sm:$0xff] %v393
                %v395 = vld [vmem:[%s173 + $0x6e0] sm:$0xff]
                %396 = vst [vmem:[%s174 + $0x370] sm:$0xff] %v395
                %v397 = vld [vmem:[%s173 + $0x6e8] sm:$0xff]
                %398 = vst [vmem:[%s174 + $0x378] sm:$0xff] %v397
                %v399 = vld [vmem:[%s173 + $0x700] sm:$0xff]
                %400 = vst [vmem:[%s174 + $0x380] sm:$0xff] %v399
                %v401 = vld [vmem:[%s173 + $0x708] sm:$0xff]
                %402 = vst [vmem:[%s174 + $0x388] sm:$0xff] %v401
                %v403 = vld [vmem:[%s173 + $0x720] sm:$0xff]
                %404 = vst [vmem:[%s174 + $0x390] sm:$0xff] %v403
                %v405 = vld [vmem:[%s173 + $0x728] sm:$0xff]
                %406 = vst [vmem:[%s174 + $0x398] sm:$0xff] %v405
                %v407 = vld [vmem:[%s173 + $0x740] sm:$0xff]
                %408 = vst [vmem:[%s174 + $0x3a0] sm:$0xff] %v407
                %v409 = vld [vmem:[%s173 + $0x748] sm:$0xff]
                %410 = vst [vmem:[%s174 + $0x3a8] sm:$0xff] %v409
                %v411 = vld [vmem:[%s173 + $0x760] sm:$0xff]
                %412 = vst [vmem:[%s174 + $0x3b0] sm:$0xff] %v411
                %v413 = vld [vmem:[%s173 + $0x768] sm:$0xff]
                %414 = vst [vmem:[%s174 + $0x3b8] sm:$0xff] %v413
                %v415 = vld [vmem:[%s173 + $0x780] sm:$0xff]
                %416 = vst [vmem:[%s174 + $0x3c0] sm:$0xff] %v415
                %v417 = vld [vmem:[%s173 + $0x788] sm:$0xff]
                %418 = vst [vmem:[%s174 + $0x3c8] sm:$0xff] %v417
                %v419 = vld [vmem:[%s173 + $0x7a0] sm:$0xff]
                %420 = vst [vmem:[%s174 + $0x3d0] sm:$0xff] %v419
                %v421 = vld [vmem:[%s173 + $0x7a8] sm:$0xff]
                %422 = vst [vmem:[%s174 + $0x3d8] sm:$0xff] %v421
                %v423 = vld [vmem:[%s173 + $0x7c0] sm:$0xff]
                %424 = vst [vmem:[%s174 + $0x3e0] sm:$0xff] %v423
                %v425 = vld [vmem:[%s173 + $0x7c8] sm:$0xff]
                %426 = vst [vmem:[%s174 + $0x3e8] sm:$0xff] %v425
                %v427 = vld [vmem:[%s173 + $0x7e0] sm:$0xff]
                %428 = vst [vmem:[%s174 + $0x3f0] sm:$0xff] %v427
                %v429 = vld [vmem:[%s173 + $0x7e8] sm:$0xff]
                %430 = vst [vmem:[%s174 + $0x3f8] sm:$0xff] %v429
                %v431 = vld [vmem:[%s173 + $0x800] sm:$0xff]
                %432 = vst [vmem:[%s174 + $0x400] sm:$0xff] %v431
                %v433 = vld [vmem:[%s173 + $0x808] sm:$0xff]
                %434 = vst [vmem:[%s174 + $0x408] sm:$0xff] %v433
                %v435 = vld [vmem:[%s173 + $0x820] sm:$0xff]
                %436 = vst [vmem:[%s174 + $0x410] sm:$0xff] %v435
                %v437 = vld [vmem:[%s173 + $0x828] sm:$0xff]
                %438 = vst [vmem:[%s174 + $0x418] sm:$0xff] %v437
                %v439 = vld [vmem:[%s173 + $0x840] sm:$0xff]
                %440 = vst [vmem:[%s174 + $0x420] sm:$0xff] %v439
                %v441 = vld [vmem:[%s173 + $0x848] sm:$0xff]
                %442 = vst [vmem:[%s174 + $0x428] sm:$0xff] %v441
                %v443 = vld [vmem:[%s173 + $0x860] sm:$0xff]
                %444 = vst [vmem:[%s174 + $0x430] sm:$0xff] %v443
                %v445 = vld [vmem:[%s173 + $0x868] sm:$0xff]
                %446 = vst [vmem:[%s174 + $0x438] sm:$0xff] %v445
                %v447 = vld [vmem:[%s173 + $0x880] sm:$0xff]
                %448 = vst [vmem:[%s174 + $0x440] sm:$0xff] %v447
                %v449 = vld [vmem:[%s173 + $0x888] sm:$0xff]
                %450 = vst [vmem:[%s174 + $0x448] sm:$0xff] %v449
                %v451 = vld [vmem:[%s173 + $0x8a0] sm:$0xff]
                %452 = vst [vmem:[%s174 + $0x450] sm:$0xff] %v451
                %v453 = vld [vmem:[%s173 + $0x8a8] sm:$0xff]
                %454 = vst [vmem:[%s174 + $0x458] sm:$0xff] %v453
                %v455 = vld [vmem:[%s173 + $0x8c0] sm:$0xff]
                %456 = vst [vmem:[%s174 + $0x460] sm:$0xff] %v455
                %v457 = vld [vmem:[%s173 + $0x8c8] sm:$0xff]
                %458 = vst [vmem:[%s174 + $0x468] sm:$0xff] %v457
                %v459 = vld [vmem:[%s173 + $0x8e0] sm:$0xff]
                %460 = vst [vmem:[%s174 + $0x470] sm:$0xff] %v459
                %v461 = vld [vmem:[%s173 + $0x8e8] sm:$0xff]
                %462 = vst [vmem:[%s174 + $0x478] sm:$0xff] %v461
                %v463 = vld [vmem:[%s173 + $0x900] sm:$0xff]
                %464 = vst [vmem:[%s174 + $0x480] sm:$0xff] %v463
                %v465 = vld [vmem:[%s173 + $0x908] sm:$0xff]
                %466 = vst [vmem:[%s174 + $0x488] sm:$0xff] %v465
                %v467 = vld [vmem:[%s173 + $0x920] sm:$0xff]
                %468 = vst [vmem:[%s174 + $0x490] sm:$0xff] %v467
                %v469 = vld [vmem:[%s173 + $0x928] sm:$0xff]
                %470 = vst [vmem:[%s174 + $0x498] sm:$0xff] %v469
                %v471 = vld [vmem:[%s173 + $0x940] sm:$0xff]
                %472 = vst [vmem:[%s174 + $0x4a0] sm:$0xff] %v471
                %v473 = vld [vmem:[%s173 + $0x948] sm:$0xff]
                %474 = vst [vmem:[%s174 + $0x4a8] sm:$0xff] %v473
                %v475 = vld [vmem:[%s173 + $0x960] sm:$0xff]
                %476 = vst [vmem:[%s174 + $0x4b0] sm:$0xff] %v475
                %v477 = vld [vmem:[%s173 + $0x968] sm:$0xff]
                %478 = vst [vmem:[%s174 + $0x4b8] sm:$0xff] %v477
                %v479 = vld [vmem:[%s173 + $0x980] sm:$0xff]
                %480 = vst [vmem:[%s174 + $0x4c0] sm:$0xff] %v479
                %v481 = vld [vmem:[%s173 + $0x988] sm:$0xff]
                %482 = vst [vmem:[%s174 + $0x4c8] sm:$0xff] %v481
                %v483 = vld [vmem:[%s173 + $0x9a0] sm:$0xff]
                %484 = vst [vmem:[%s174 + $0x4d0] sm:$0xff] %v483
                %v485 = vld [vmem:[%s173 + $0x9a8] sm:$0xff]
                %486 = vst [vmem:[%s174 + $0x4d8] sm:$0xff] %v485
                %v487 = vld [vmem:[%s173 + $0x9c0] sm:$0xff]
                %488 = vst [vmem:[%s174 + $0x4e0] sm:$0xff] %v487
                %v489 = vld [vmem:[%s173 + $0x9c8] sm:$0xff]
                %490 = vst [vmem:[%s174 + $0x4e8] sm:$0xff] %v489
                %v491 = vld [vmem:[%s173 + $0x9e0] sm:$0xff]
                %492 = vst [vmem:[%s174 + $0x4f0] sm:$0xff] %v491
                %v493 = vld [vmem:[%s173 + $0x9e8] sm:$0xff]
                %494 = vst [vmem:[%s174 + $0x4f8] sm:$0xff] %v493
                %v495 = vld [vmem:[%s173 + $0xa00] sm:$0xff]
                %496 = vst [vmem:[%s174 + $0x500] sm:$0xff] %v495
                %v497 = vld [vmem:[%s173 + $0xa08] sm:$0xff]
                %498 = vst [vmem:[%s174 + $0x508] sm:$0xff] %v497
                %v499 = vld [vmem:[%s173 + $0xa20] sm:$0xff]
                %500 = vst [vmem:[%s174 + $0x510] sm:$0xff] %v499
                %v501 = vld [vmem:[%s173 + $0xa28] sm:$0xff]
                %502 = vst [vmem:[%s174 + $0x518] sm:$0xff] %v501
                %v503 = vld [vmem:[%s173 + $0xa40] sm:$0xff]
                %504 = vst [vmem:[%s174 + $0x520] sm:$0xff] %v503
                %v505 = vld [vmem:[%s173 + $0xa48] sm:$0xff]
                %506 = vst [vmem:[%s174 + $0x528] sm:$0xff] %v505
                %v507 = vld [vmem:[%s173 + $0xa60] sm:$0xff]
                %508 = vst [vmem:[%s174 + $0x530] sm:$0xff] %v507
                %v509 = vld [vmem:[%s173 + $0xa68] sm:$0xff]
                %510 = vst [vmem:[%s174 + $0x538] sm:$0xff] %v509
                %v511 = vld [vmem:[%s173 + $0xa80] sm:$0xff]
                %512 = vst [vmem:[%s174 + $0x540] sm:$0xff] %v511
                %v513 = vld [vmem:[%s173 + $0xa88] sm:$0xff]
                %514 = vst [vmem:[%s174 + $0x548] sm:$0xff] %v513
                %v515 = vld [vmem:[%s173 + $0xaa0] sm:$0xff]
                %516 = vst [vmem:[%s174 + $0x550] sm:$0xff] %v515
                %v517 = vld [vmem:[%s173 + $0xaa8] sm:$0xff]
                %518 = vst [vmem:[%s174 + $0x558] sm:$0xff] %v517
                %v519 = vld [vmem:[%s173 + $0xac0] sm:$0xff]
                %520 = vst [vmem:[%s174 + $0x560] sm:$0xff] %v519
                %v521 = vld [vmem:[%s173 + $0xac8] sm:$0xff]
                %522 = vst [vmem:[%s174 + $0x568] sm:$0xff] %v521
                %v523 = vld [vmem:[%s173 + $0xae0] sm:$0xff]
                %524 = vst [vmem:[%s174 + $0x570] sm:$0xff] %v523
                %v525 = vld [vmem:[%s173 + $0xae8] sm:$0xff]
                %526 = vst [vmem:[%s174 + $0x578] sm:$0xff] %v525
                %v527 = vld [vmem:[%s173 + $0xb00] sm:$0xff]
                %528 = vst [vmem:[%s174 + $0x580] sm:$0xff] %v527
                %v529 = vld [vmem:[%s173 + $0xb08] sm:$0xff]
                %530 = vst [vmem:[%s174 + $0x588] sm:$0xff] %v529
                %v531 = vld [vmem:[%s173 + $0xb20] sm:$0xff]
                %532 = vst [vmem:[%s174 + $0x590] sm:$0xff] %v531
                %v533 = vld [vmem:[%s173 + $0xb28] sm:$0xff]
                %534 = vst [vmem:[%s174 + $0x598] sm:$0xff] %v533
                %v535 = vld [vmem:[%s173 + $0xb40] sm:$0xff]
                %536 = vst [vmem:[%s174 + $0x5a0] sm:$0xff] %v535
                %v537 = vld [vmem:[%s173 + $0xb48] sm:$0xff]
                %538 = vst [vmem:[%s174 + $0x5a8] sm:$0xff] %v537
                %v539 = vld [vmem:[%s173 + $0xb60] sm:$0xff]
                %540 = vst [vmem:[%s174 + $0x5b0] sm:$0xff] %v539
                %v541 = vld [vmem:[%s173 + $0xb68] sm:$0xff]
                %542 = vst [vmem:[%s174 + $0x5b8] sm:$0xff] %v541
                %v543 = vld [vmem:[%s173 + $0xb80] sm:$0xff]
                %544 = vst [vmem:[%s174 + $0x5c0] sm:$0xff] %v543
                %v545 = vld [vmem:[%s173 + $0xb88] sm:$0xff]
                %546 = vst [vmem:[%s174 + $0x5c8] sm:$0xff] %v545
                %v547 = vld [vmem:[%s173 + $0xba0] sm:$0xff]
                %548 = vst [vmem:[%s174 + $0x5d0] sm:$0xff] %v547
                %v549 = vld [vmem:[%s173 + $0xba8] sm:$0xff]
                %550 = vst [vmem:[%s174 + $0x5d8] sm:$0xff] %v549
                %v551 = vld [vmem:[%s173 + $0xbc0] sm:$0xff]
                %552 = vst [vmem:[%s174 + $0x5e0] sm:$0xff] %v551
                %v553 = vld [vmem:[%s173 + $0xbc8] sm:$0xff]
                %554 = vst [vmem:[%s174 + $0x5e8] sm:$0xff] %v553
                %v555 = vld [vmem:[%s173 + $0xbe0] sm:$0xff]
                %556 = vst [vmem:[%s174 + $0x5f0] sm:$0xff] %v555
                %v557 = vld [vmem:[%s173 + $0xbe8] sm:$0xff]
                %558 = vst [vmem:[%s174 + $0x5f8] sm:$0xff] %v557
                %v559 = vld [vmem:[%s173 + $0xc00] sm:$0xff]
                %560 = vst [vmem:[%s174 + $0x600] sm:$0xff] %v559
                %v561 = vld [vmem:[%s173 + $0xc08] sm:$0xff]
                %562 = vst [vmem:[%s174 + $0x608] sm:$0xff] %v561
                %v563 = vld [vmem:[%s173 + $0xc20] sm:$0xff]
                %564 = vst [vmem:[%s174 + $0x610] sm:$0xff] %v563
                %v565 = vld [vmem:[%s173 + $0xc28] sm:$0xff]
                %566 = vst [vmem:[%s174 + $0x618] sm:$0xff] %v565
                %v567 = vld [vmem:[%s173 + $0xc40] sm:$0xff]
                %568 = vst [vmem:[%s174 + $0x620] sm:$0xff] %v567
                %v569 = vld [vmem:[%s173 + $0xc48] sm:$0xff]
                %570 = vst [vmem:[%s174 + $0x628] sm:$0xff] %v569
                %v571 = vld [vmem:[%s173 + $0xc60] sm:$0xff]
                %572 = vst [vmem:[%s174 + $0x630] sm:$0xff] %v571
                %v573 = vld [vmem:[%s173 + $0xc68] sm:$0xff]
                %574 = vst [vmem:[%s174 + $0x638] sm:$0xff] %v573
                %v575 = vld [vmem:[%s173 + $0xc80] sm:$0xff]
                %576 = vst [vmem:[%s174 + $0x640] sm:$0xff] %v575
                %v577 = vld [vmem:[%s173 + $0xc88] sm:$0xff]
                %578 = vst [vmem:[%s174 + $0x648] sm:$0xff] %v577
                %v579 = vld [vmem:[%s173 + $0xca0] sm:$0xff]
                %580 = vst [vmem:[%s174 + $0x650] sm:$0xff] %v579
                %v581 = vld [vmem:[%s173 + $0xca8] sm:$0xff]
                %582 = vst [vmem:[%s174 + $0x658] sm:$0xff] %v581
                %v583 = vld [vmem:[%s173 + $0xcc0] sm:$0xff]
                %584 = vst [vmem:[%s174 + $0x660] sm:$0xff] %v583
                %v585 = vld [vmem:[%s173 + $0xcc8] sm:$0xff]
                %586 = vst [vmem:[%s174 + $0x668] sm:$0xff] %v585
                %v587 = vld [vmem:[%s173 + $0xce0] sm:$0xff]
                %588 = vst [vmem:[%s174 + $0x670] sm:$0xff] %v587
                %v589 = vld [vmem:[%s173 + $0xce8] sm:$0xff]
                %590 = vst [vmem:[%s174 + $0x678] sm:$0xff] %v589
                %v591 = vld [vmem:[%s173 + $0xd00] sm:$0xff]
                %592 = vst [vmem:[%s174 + $0x680] sm:$0xff] %v591
                %v593 = vld [vmem:[%s173 + $0xd08] sm:$0xff]
                %594 = vst [vmem:[%s174 + $0x688] sm:$0xff] %v593
                %v595 = vld [vmem:[%s173 + $0xd20] sm:$0xff]
                %596 = vst [vmem:[%s174 + $0x690] sm:$0xff] %v595
                %v597 = vld [vmem:[%s173 + $0xd28] sm:$0xff]
                %598 = vst [vmem:[%s174 + $0x698] sm:$0xff] %v597
                %v599 = vld [vmem:[%s173 + $0xd40] sm:$0xff]
                %600 = vst [vmem:[%s174 + $0x6a0] sm:$0xff] %v599
                %v601 = vld [vmem:[%s173 + $0xd48] sm:$0xff]
                %602 = vst [vmem:[%s174 + $0x6a8] sm:$0xff] %v601
                %v603 = vld [vmem:[%s173 + $0xd60] sm:$0xff]
                %604 = vst [vmem:[%s174 + $0x6b0] sm:$0xff] %v603
                %v605 = vld [vmem:[%s173 + $0xd68] sm:$0xff]
                %606 = vst [vmem:[%s174 + $0x6b8] sm:$0xff] %v605
                %v607 = vld [vmem:[%s173 + $0xd80] sm:$0xff]
                %608 = vst [vmem:[%s174 + $0x6c0] sm:$0xff] %v607
                %v609 = vld [vmem:[%s173 + $0xd88] sm:$0xff]
                %610 = vst [vmem:[%s174 + $0x6c8] sm:$0xff] %v609
                %v611 = vld [vmem:[%s173 + $0xda0] sm:$0xff]
                %612 = vst [vmem:[%s174 + $0x6d0] sm:$0xff] %v611
                %v613 = vld [vmem:[%s173 + $0xda8] sm:$0xff]
                %614 = vst [vmem:[%s174 + $0x6d8] sm:$0xff] %v613
                %v615 = vld [vmem:[%s173 + $0xdc0] sm:$0xff]
                %616 = vst [vmem:[%s174 + $0x6e0] sm:$0xff] %v615
                %v617 = vld [vmem:[%s173 + $0xdc8] sm:$0xff]
                %618 = vst [vmem:[%s174 + $0x6e8] sm:$0xff] %v617
                %v619 = vld [vmem:[%s173 + $0xde0] sm:$0xff]
                %620 = vst [vmem:[%s174 + $0x6f0] sm:$0xff] %v619
                %v621 = vld [vmem:[%s173 + $0xde8] sm:$0xff]
                %622 = vst [vmem:[%s174 + $0x6f8] sm:$0xff] %v621
                %v623 = vld [vmem:[%s173 + $0xe00] sm:$0xff]
                %624 = vst [vmem:[%s174 + $0x700] sm:$0xff] %v623
                %v625 = vld [vmem:[%s173 + $0xe08] sm:$0xff]
                %626 = vst [vmem:[%s174 + $0x708] sm:$0xff] %v625
                %v627 = vld [vmem:[%s173 + $0xe20] sm:$0xff]
                %628 = vst [vmem:[%s174 + $0x710] sm:$0xff] %v627
                %v629 = vld [vmem:[%s173 + $0xe28] sm:$0xff]
                %630 = vst [vmem:[%s174 + $0x718] sm:$0xff] %v629
                %v631 = vld [vmem:[%s173 + $0xe40] sm:$0xff]
                %632 = vst [vmem:[%s174 + $0x720] sm:$0xff] %v631
                %v633 = vld [vmem:[%s173 + $0xe48] sm:$0xff]
                %634 = vst [vmem:[%s174 + $0x728] sm:$0xff] %v633
                %v635 = vld [vmem:[%s173 + $0xe60] sm:$0xff]
                %636 = vst [vmem:[%s174 + $0x730] sm:$0xff] %v635
                %v637 = vld [vmem:[%s173 + $0xe68] sm:$0xff]
                %638 = vst [vmem:[%s174 + $0x738] sm:$0xff] %v637
                %v639 = vld [vmem:[%s173 + $0xe80] sm:$0xff]
                %640 = vst [vmem:[%s174 + $0x740] sm:$0xff] %v639
                %v641 = vld [vmem:[%s173 + $0xe88] sm:$0xff]
                %642 = vst [vmem:[%s174 + $0x748] sm:$0xff] %v641
                %v643 = vld [vmem:[%s173 + $0xea0] sm:$0xff]
                %644 = vst [vmem:[%s174 + $0x750] sm:$0xff] %v643
                %v645 = vld [vmem:[%s173 + $0xea8] sm:$0xff]
                %646 = vst [vmem:[%s174 + $0x758] sm:$0xff] %v645
                %v647 = vld [vmem:[%s173 + $0xec0] sm:$0xff]
                %648 = vst [vmem:[%s174 + $0x760] sm:$0xff] %v647
                %v649 = vld [vmem:[%s173 + $0xec8] sm:$0xff]
                %650 = vst [vmem:[%s174 + $0x768] sm:$0xff] %v649
                %v651 = vld [vmem:[%s173 + $0xee0] sm:$0xff]
                %652 = vst [vmem:[%s174 + $0x770] sm:$0xff] %v651
                %v653 = vld [vmem:[%s173 + $0xee8] sm:$0xff]
                %654 = vst [vmem:[%s174 + $0x778] sm:$0xff] %v653
                %v655 = vld [vmem:[%s173 + $0xf00] sm:$0xff]
                %656 = vst [vmem:[%s174 + $0x780] sm:$0xff] %v655
                %v657 = vld [vmem:[%s173 + $0xf08] sm:$0xff]
                %658 = vst [vmem:[%s174 + $0x788] sm:$0xff] %v657
                %v659 = vld [vmem:[%s173 + $0xf20] sm:$0xff]
                %660 = vst [vmem:[%s174 + $0x790] sm:$0xff] %v659
                %v661 = vld [vmem:[%s173 + $0xf28] sm:$0xff]
                %662 = vst [vmem:[%s174 + $0x798] sm:$0xff] %v661
                %v663 = vld [vmem:[%s173 + $0xf40] sm:$0xff]
                %664 = vst [vmem:[%s174 + $0x7a0] sm:$0xff] %v663
                %v665 = vld [vmem:[%s173 + $0xf48] sm:$0xff]
                %666 = vst [vmem:[%s174 + $0x7a8] sm:$0xff] %v665
                %v667 = vld [vmem:[%s173 + $0xf60] sm:$0xff]
                %668 = vst [vmem:[%s174 + $0x7b0] sm:$0xff] %v667
                %v669 = vld [vmem:[%s173 + $0xf68] sm:$0xff]
                %670 = vst [vmem:[%s174 + $0x7b8] sm:$0xff] %v669
                %v671 = vld [vmem:[%s173 + $0xf80] sm:$0xff]
                %672 = vst [vmem:[%s174 + $0x7c0] sm:$0xff] %v671
                %v673 = vld [vmem:[%s173 + $0xf88] sm:$0xff]
                %674 = vst [vmem:[%s174 + $0x7c8] sm:$0xff] %v673
                %v675 = vld [vmem:[%s173 + $0xfa0] sm:$0xff]
                %676 = vst [vmem:[%s174 + $0x7d0] sm:$0xff] %v675
                %v677 = vld [vmem:[%s173 + $0xfa8] sm:$0xff]
                %678 = vst [vmem:[%s174 + $0x7d8] sm:$0xff] %v677
                %v679 = vld [vmem:[%s173 + $0xfc0] sm:$0xff]
                %680 = vst [vmem:[%s174 + $0x7e0] sm:$0xff] %v679
                %v681 = vld [vmem:[%s173 + $0xfc8] sm:$0xff]
                %682 = vst [vmem:[%s174 + $0x7e8] sm:$0xff] %v681
                %v683 = vld [vmem:[%s173 + $0xfe0] sm:$0xff]
                %684 = vst [vmem:[%s174 + $0x7f0] sm:$0xff] %v683
                %v685 = vld [vmem:[%s173 + $0xfe8] sm:$0xff]
                %686 = vst [vmem:[%s174 + $0x7f8] sm:$0xff] %v685
              $region45: #{cnn3d_block.3} parent=39 // loop_footer
                %s172 = sadd.s32 1, %s168
              $region46: #{cnn3d_block.3} parent=39 // loop_footer_branch
                %167 = sbr.rel target = $region42
              $region47: #{cnn3d_block.3} parent=39 // loop_exit
                _
            $region40: #{cnn3d_block.3} parent=35 // pred_fallthru
              _
            // Predicated region
            $region48: #{cnn3d_block.3} parent=35 // pred_check
              _
            $region49: #{cnn3d_block.3} parent=35 // pred_check_branch
              %688 = sbr.rel target = $region51
            $region50: #{cnn3d_block.3} parent=35 // pred_region
              _
            $region51: #{cnn3d_block.3} parent=35 // pred_fallthru
              _
          $region36: #{cnn3d_block.3} parent=31 // pred_fallthru
            _
          %689 = vnop
        $region32: #{cnn3d_block.3} parent=27 // pred_fallthru
          _
      $region28: #{cnn3d_block.3} parent=5 // pred_fallthru
        _
      %p690 = scmp.le.s32.totalorder 1, %s10
      %p691 = scmp.lt.s32.totalorder %s10, 3
      %p692 = pnand %p690, %p691
      %p693 = pneg %p692
      // Predicated region
      $region52: #{cnn3d_block.3} parent=5 // pred_check
        _
      $region53: #{cnn3d_block.3} parent=5 // pred_check_branch
        %695 = sbr.rel (%p692) target = $region55
      $region54: #{cnn3d_block.3} parent=5 // pred_region
        %s696 = ssub.s32 %s10, 1
        %s697 = sand.u32 %s23, 1
        %s698 = sand.u32 %s23, 1
        %s699 = smul.addr %s698, 2048
        %s700 = scalar_lea.vmem [#allocation2], %s699
        // Predicated region
        $region56: #{cnn3d_block.3} parent=54 // pred_check
          %p701 = pneg %p36
        $region57: #{cnn3d_block.3} parent=54 // pred_check_branch
          %703 = sbr.rel (%p701) target = $region59
        $region58: #{cnn3d_block.3} parent=54 // pred_region
          _
        $region59: #{cnn3d_block.3} parent=54 // pred_fallthru
          _
        %s704 = sand.u32 %s23, 1
        %s705 = sand.u32 %s23, 1
        %s706 = smul.addr %s705, 2048
        %s707 = scalar_lea.vmem [#allocation2], %s706
        %p708 = pneg %p36
        %p709 = pneg %p33
        %p710 = pneg %p57
        %p711 = pneg %p54
        %p712 = pneg %p78
        %p713 = pneg %p75
        %p714 = pneg %p99
        %p715 = pneg %p96
        %p716 = pneg %p125
        %p717 = pneg %p122
        %s718 = sand.u32 %s112, 1
        %s719 = sand.u32 %s112, 1
        %s720 = smul.addr %s719, 64
        %s721 = scalar_lea.vmem [#allocation3], %s720
        %s722 = smul.u32 4, %s15
        %s723 = smul.u32 4, %s15
        %v724 = vld [vmem:[%s1] sm:$0xff]
        %v725 = vld [vmem:[%s1 + $0x8] sm:$0xff]
        %v726 = vld [vmem:[%s1 + $0x10] sm:$0xff]
        %v727 = vld [vmem:[%s1 + $0x18] sm:$0xff]
        %v728 = vld [vmem:[%s1 + $0x20] sm:$0xff]
        %v729 = vld [vmem:[%s1 + $0x28] sm:$0xff]
        %v730 = vld [vmem:[%s1 + $0x30] sm:$0xff]
        %v731 = vld [vmem:[%s1 + $0x38] sm:$0xff]
        %v732 = vld [vmem:[%s700] sm:$0xff]
        %v733 = vld [vmem:[%s700 + $0x8] sm:$0xff]
        %v734 = vld [vmem:[%s700 + $0x10] sm:$0xff]
        %v735 = vld [vmem:[%s700 + $0x18] sm:$0xff]
        %v736 = vld [vmem:[%s700 + $0x20] sm:$0xff]
        %v737 = vld [vmem:[%s700 + $0x28] sm:$0xff]
        %v738 = vld [vmem:[%s700 + $0x30] sm:$0xff]
        %v739 = vld [vmem:[%s700 + $0x38] sm:$0xff]
        %v740 = vld [vmem:[%s700 + $0x40] sm:$0xff]
        %v741 = vld [vmem:[%s700 + $0x48] sm:$0xff]
        %v742 = vld [vmem:[%s700 + $0x50] sm:$0xff]
        %v743 = vld [vmem:[%s700 + $0x58] sm:$0xff]
        %v744 = vld [vmem:[%s700 + $0x60] sm:$0xff]
        %v745 = vld [vmem:[%s700 + $0x68] sm:$0xff]
        %v746 = vld [vmem:[%s700 + $0x70] sm:$0xff]
        %v747 = vld [vmem:[%s700 + $0x78] sm:$0xff]
        %v748 = vld [vmem:[%s700 + $0x80] sm:$0xff]
        %v749 = vld [vmem:[%s700 + $0x88] sm:$0xff]
        %v750 = vld [vmem:[%s700 + $0x90] sm:$0xff]
        %v751 = vld [vmem:[%s700 + $0x98] sm:$0xff]
        %v752 = vld [vmem:[%s700 + $0xa0] sm:$0xff]
        %v753 = vld [vmem:[%s700 + $0xa8] sm:$0xff]
        %v754 = vld [vmem:[%s700 + $0xb0] sm:$0xff]
        %v755 = vld [vmem:[%s700 + $0xb8] sm:$0xff]
        %v756 = vld [vmem:[%s700 + $0xc0] sm:$0xff]
        %v757 = vld [vmem:[%s700 + $0xc8] sm:$0xff]
        %v758 = vld [vmem:[%s700 + $0xd0] sm:$0xff]
        %v759 = vld [vmem:[%s700 + $0xd8] sm:$0xff]
        %v760 = vld [vmem:[%s700 + $0xe0] sm:$0xff]
        %v761 = vld [vmem:[%s700 + $0xe8] sm:$0xff]
        %v762 = vld [vmem:[%s700 + $0xf0] sm:$0xff]
        %v763 = vld [vmem:[%s700 + $0xf8] sm:$0xff]
        %v764 = vld [vmem:[%s700 + $0x100] sm:$0xff]
        %v765 = vld [vmem:[%s700 + $0x108] sm:$0xff]
        %v766 = vld [vmem:[%s700 + $0x110] sm:$0xff]
        %v767 = vld [vmem:[%s700 + $0x118] sm:$0xff]
        %v768 = vld [vmem:[%s700 + $0x120] sm:$0xff]
        %v769 = vld [vmem:[%s700 + $0x128] sm:$0xff]
        %v770 = vld [vmem:[%s700 + $0x130] sm:$0xff]
        %v771 = vld [vmem:[%s700 + $0x138] sm:$0xff]
        %v772 = vld [vmem:[%s700 + $0x140] sm:$0xff]
        %v773 = vld [vmem:[%s700 + $0x148] sm:$0xff]
        %v774 = vld [vmem:[%s700 + $0x150] sm:$0xff]
        %v775 = vld [vmem:[%s700 + $0x158] sm:$0xff]
        %v776 = vld [vmem:[%s700 + $0x160] sm:$0xff]
        %v777 = vld [vmem:[%s700 + $0x168] sm:$0xff]
        %v778 = vld [vmem:[%s700 + $0x170] sm:$0xff]
        %v779 = vld [vmem:[%s700 + $0x178] sm:$0xff]
        %v780 = vld [vmem:[%s700 + $0x180] sm:$0xff]
        %v781 = vld [vmem:[%s700 + $0x188] sm:$0xff]
        %v782 = vld [vmem:[%s700 + $0x190] sm:$0xff]
        %v783 = vld [vmem:[%s700 + $0x198] sm:$0xff]
        %v784 = vld [vmem:[%s700 + $0x1a0] sm:$0xff]
        %v785 = vld [vmem:[%s700 + $0x1a8] sm:$0xff]
        %v786 = vld [vmem:[%s700 + $0x1b0] sm:$0xff]
        %v787 = vld [vmem:[%s700 + $0x1b8] sm:$0xff]
        %v788 = vld [vmem:[%s700 + $0x1c0] sm:$0xff]
        %v789 = vld [vmem:[%s700 + $0x1c8] sm:$0xff]
        %v790 = vld [vmem:[%s700 + $0x1d0] sm:$0xff]
        %v791 = vld [vmem:[%s700 + $0x1d8] sm:$0xff]
        %v792 = vld [vmem:[%s700 + $0x1e0] sm:$0xff]
        %v793 = vld [vmem:[%s700 + $0x1e8] sm:$0xff]
        %v794 = vld [vmem:[%s700 + $0x1f0] sm:$0xff]
        %v795 = vld [vmem:[%s700 + $0x1f8] sm:$0xff]
        %v796 = vld [vmem:[%s700 + $0x200] sm:$0xff]
        %v797 = vld [vmem:[%s700 + $0x208] sm:$0xff]
        %v798 = vld [vmem:[%s700 + $0x210] sm:$0xff]
        %v799 = vld [vmem:[%s700 + $0x218] sm:$0xff]
        %v800 = vld [vmem:[%s700 + $0x220] sm:$0xff]
        %v801 = vld [vmem:[%s700 + $0x228] sm:$0xff]
        %v802 = vld [vmem:[%s700 + $0x230] sm:$0xff]
        %v803 = vld [vmem:[%s700 + $0x238] sm:$0xff]
        %v804 = vld [vmem:[%s700 + $0x240] sm:$0xff]
        %v805 = vld [vmem:[%s700 + $0x248] sm:$0xff]
        %v806 = vld [vmem:[%s700 + $0x250] sm:$0xff]
        %v807 = vld [vmem:[%s700 + $0x258] sm:$0xff]
        %v808 = vld [vmem:[%s700 + $0x260] sm:$0xff]
        %v809 = vld [vmem:[%s700 + $0x268] sm:$0xff]
        %v810 = vld [vmem:[%s700 + $0x270] sm:$0xff]
        %v811 = vld [vmem:[%s700 + $0x278] sm:$0xff]
        %v812 = vld [vmem:[%s700 + $0x280] sm:$0xff]
        %v813 = vld [vmem:[%s700 + $0x288] sm:$0xff]
        %v814 = vld [vmem:[%s700 + $0x290] sm:$0xff]
        %v815 = vld [vmem:[%s700 + $0x298] sm:$0xff]
        %v816 = vld [vmem:[%s700 + $0x2a0] sm:$0xff]
        %v817 = vld [vmem:[%s700 + $0x2a8] sm:$0xff]
        %v818 = vld [vmem:[%s700 + $0x2b0] sm:$0xff]
        %v819 = vld [vmem:[%s700 + $0x2b8] sm:$0xff]
        %v820 = vld [vmem:[%s700 + $0x2c0] sm:$0xff]
        %v821 = vld [vmem:[%s700 + $0x2c8] sm:$0xff]
        %v822 = vld [vmem:[%s700 + $0x2d0] sm:$0xff]
        %v823 = vld [vmem:[%s700 + $0x2d8] sm:$0xff]
        %v824 = vld [vmem:[%s700 + $0x2e0] sm:$0xff]
        %v825 = vld [vmem:[%s700 + $0x2e8] sm:$0xff]
        %v826 = vld [vmem:[%s700 + $0x2f0] sm:$0xff]
        %v827 = vld [vmem:[%s700 + $0x2f8] sm:$0xff]
        %v828 = vld [vmem:[%s700 + $0x300] sm:$0xff]
        %v829 = vld [vmem:[%s700 + $0x308] sm:$0xff]
        %v830 = vld [vmem:[%s700 + $0x310] sm:$0xff]
        %v831 = vld [vmem:[%s700 + $0x318] sm:$0xff]
        %v832 = vld [vmem:[%s700 + $0x320] sm:$0xff]
        %v833 = vld [vmem:[%s700 + $0x328] sm:$0xff]
        %v834 = vld [vmem:[%s700 + $0x330] sm:$0xff]
        %v835 = vld [vmem:[%s700 + $0x338] sm:$0xff]
        %v836 = vld [vmem:[%s700 + $0x340] sm:$0xff]
        %v837 = vld [vmem:[%s700 + $0x348] sm:$0xff]
        %v838 = vld [vmem:[%s700 + $0x350] sm:$0xff]
        %v839 = vld [vmem:[%s700 + $0x358] sm:$0xff]
        %v840 = vld [vmem:[%s700 + $0x360] sm:$0xff]
        %v841 = vld [vmem:[%s700 + $0x368] sm:$0xff]
        %v842 = vld [vmem:[%s700 + $0x370] sm:$0xff]
        %v843 = vld [vmem:[%s700 + $0x378] sm:$0xff]
        %v844 = vld [vmem:[%s700 + $0x380] sm:$0xff]
        %v845 = vld [vmem:[%s700 + $0x388] sm:$0xff]
        %v846 = vld [vmem:[%s700 + $0x390] sm:$0xff]
        %v847 = vld [vmem:[%s700 + $0x398] sm:$0xff]
        %v848 = vld [vmem:[%s700 + $0x3a0] sm:$0xff]
        %v849 = vld [vmem:[%s700 + $0x3a8] sm:$0xff]
        %v850 = vld [vmem:[%s700 + $0x3b0] sm:$0xff]
        %v851 = vld [vmem:[%s700 + $0x3b8] sm:$0xff]
        %v852 = vld [vmem:[%s700 + $0x3c0] sm:$0xff]
        %v853 = vld [vmem:[%s700 + $0x3c8] sm:$0xff]
        %v854 = vld [vmem:[%s700 + $0x3d0] sm:$0xff]
        %v855 = vld [vmem:[%s700 + $0x3d8] sm:$0xff]
        %v856 = vld [vmem:[%s700 + $0x3e0] sm:$0xff]
        %v857 = vld [vmem:[%s700 + $0x3e8] sm:$0xff]
        %v858 = vld [vmem:[%s700 + $0x3f0] sm:$0xff]
        %v859 = vld [vmem:[%s700 + $0x3f8] sm:$0xff]
        %v860 = vld [vmem:[%s700 + $0x400] sm:$0xff]
        %v861 = vld [vmem:[%s700 + $0x408] sm:$0xff]
        %v862 = vld [vmem:[%s700 + $0x410] sm:$0xff]
        %v863 = vld [vmem:[%s700 + $0x418] sm:$0xff]
        %v864 = vld [vmem:[%s700 + $0x420] sm:$0xff]
        %v865 = vld [vmem:[%s700 + $0x428] sm:$0xff]
        %v866 = vld [vmem:[%s700 + $0x430] sm:$0xff]
        %v867 = vld [vmem:[%s700 + $0x438] sm:$0xff]
        %v868 = vld [vmem:[%s700 + $0x440] sm:$0xff]
        %v869 = vld [vmem:[%s700 + $0x448] sm:$0xff]
        %v870 = vld [vmem:[%s700 + $0x450] sm:$0xff]
        %v871 = vld [vmem:[%s700 + $0x458] sm:$0xff]
        %v872 = vld [vmem:[%s700 + $0x460] sm:$0xff]
        %v873 = vld [vmem:[%s700 + $0x468] sm:$0xff]
        %v874 = vld [vmem:[%s700 + $0x470] sm:$0xff]
        %v875 = vld [vmem:[%s700 + $0x478] sm:$0xff]
        %v876 = vld [vmem:[%s700 + $0x480] sm:$0xff]
        %v877 = vld [vmem:[%s700 + $0x488] sm:$0xff]
        %v878 = vld [vmem:[%s700 + $0x490] sm:$0xff]
        %v879 = vld [vmem:[%s700 + $0x498] sm:$0xff]
        %v880 = vld [vmem:[%s700 + $0x4a0] sm:$0xff]
        %v881 = vld [vmem:[%s700 + $0x4a8] sm:$0xff]
        %v882 = vld [vmem:[%s700 + $0x4b0] sm:$0xff]
        %v883 = vld [vmem:[%s700 + $0x4b8] sm:$0xff]
        %v884 = vld [vmem:[%s700 + $0x4c0] sm:$0xff]
        %v885 = vld [vmem:[%s700 + $0x4c8] sm:$0xff]
        %v886 = vld [vmem:[%s700 + $0x4d0] sm:$0xff]
        %v887 = vld [vmem:[%s700 + $0x4d8] sm:$0xff]
        %v888 = vld [vmem:[%s700 + $0x4e0] sm:$0xff]
        %v889 = vld [vmem:[%s700 + $0x4e8] sm:$0xff]
        %v890 = vld [vmem:[%s700 + $0x4f0] sm:$0xff]
        %v891 = vld [vmem:[%s700 + $0x4f8] sm:$0xff]
        %v892 = vld [vmem:[%s700 + $0x500] sm:$0xff]
        %v893 = vld [vmem:[%s700 + $0x508] sm:$0xff]
        %v894 = vld [vmem:[%s700 + $0x510] sm:$0xff]
        %v895 = vld [vmem:[%s700 + $0x518] sm:$0xff]
        %v896 = vld [vmem:[%s700 + $0x520] sm:$0xff]
        %v897 = vld [vmem:[%s700 + $0x528] sm:$0xff]
        %v898 = vld [vmem:[%s700 + $0x530] sm:$0xff]
        %v899 = vld [vmem:[%s700 + $0x538] sm:$0xff]
        %v900 = vld [vmem:[%s700 + $0x540] sm:$0xff]
        %v901 = vld [vmem:[%s700 + $0x548] sm:$0xff]
        %v902 = vld [vmem:[%s700 + $0x550] sm:$0xff]
        %v903 = vld [vmem:[%s700 + $0x558] sm:$0xff]
        %v904 = vld [vmem:[%s700 + $0x560] sm:$0xff]
        %v905 = vld [vmem:[%s700 + $0x568] sm:$0xff]
        %v906 = vld [vmem:[%s700 + $0x570] sm:$0xff]
        %v907 = vld [vmem:[%s700 + $0x578] sm:$0xff]
        %v908 = vld [vmem:[%s700 + $0x580] sm:$0xff]
        %v909 = vld [vmem:[%s700 + $0x588] sm:$0xff]
        %v910 = vld [vmem:[%s700 + $0x590] sm:$0xff]
        %v911 = vld [vmem:[%s700 + $0x598] sm:$0xff]
        %v912 = vld [vmem:[%s700 + $0x5a0] sm:$0xff]
        %v913 = vld [vmem:[%s700 + $0x5a8] sm:$0xff]
        %v914 = vld [vmem:[%s700 + $0x5b0] sm:$0xff]
        %v915 = vld [vmem:[%s700 + $0x5b8] sm:$0xff]
        %v916 = vld [vmem:[%s700 + $0x5c0] sm:$0xff]
        %v917 = vld [vmem:[%s700 + $0x5c8] sm:$0xff]
        %v918 = vld [vmem:[%s700 + $0x5d0] sm:$0xff]
        %v919 = vld [vmem:[%s700 + $0x5d8] sm:$0xff]
        %v920 = vld [vmem:[%s700 + $0x5e0] sm:$0xff]
        %v921 = vld [vmem:[%s700 + $0x5e8] sm:$0xff]
        %v922 = vld [vmem:[%s700 + $0x5f0] sm:$0xff]
        %v923 = vld [vmem:[%s700 + $0x5f8] sm:$0xff]
        %v924 = vld [vmem:[%s700 + $0x600] sm:$0xff]
        %v925 = vld [vmem:[%s700 + $0x608] sm:$0xff]
        %v926 = vld [vmem:[%s700 + $0x610] sm:$0xff]
        %v927 = vld [vmem:[%s700 + $0x618] sm:$0xff]
        %v928 = vld [vmem:[%s700 + $0x620] sm:$0xff]
        %v929 = vld [vmem:[%s700 + $0x628] sm:$0xff]
        %v930 = vld [vmem:[%s700 + $0x630] sm:$0xff]
        %v931 = vld [vmem:[%s700 + $0x638] sm:$0xff]
        %v932 = vld [vmem:[%s700 + $0x640] sm:$0xff]
        %v933 = vld [vmem:[%s700 + $0x648] sm:$0xff]
        %v934 = vld [vmem:[%s700 + $0x650] sm:$0xff]
        %v935 = vld [vmem:[%s700 + $0x658] sm:$0xff]
        %v936 = vld [vmem:[%s700 + $0x660] sm:$0xff]
        %v937 = vld [vmem:[%s700 + $0x668] sm:$0xff]
        %v938 = vld [vmem:[%s700 + $0x670] sm:$0xff]
        %v939 = vld [vmem:[%s700 + $0x678] sm:$0xff]
        %v940 = vld [vmem:[%s700 + $0x680] sm:$0xff]
        %v941 = vld [vmem:[%s700 + $0x688] sm:$0xff]
        %v942 = vld [vmem:[%s700 + $0x690] sm:$0xff]
        %v943 = vld [vmem:[%s700 + $0x698] sm:$0xff]
        %v944 = vld [vmem:[%s700 + $0x6a0] sm:$0xff]
        %v945 = vld [vmem:[%s700 + $0x6a8] sm:$0xff]
        %v946 = vld [vmem:[%s700 + $0x6b0] sm:$0xff]
        %v947 = vld [vmem:[%s700 + $0x6b8] sm:$0xff]
        %v948 = vld [vmem:[%s700 + $0x6c0] sm:$0xff]
        %v949 = vld [vmem:[%s700 + $0x6c8] sm:$0xff]
        %v950 = vld [vmem:[%s700 + $0x6d0] sm:$0xff]
        %v951 = vld [vmem:[%s700 + $0x6d8] sm:$0xff]
        %v952 = vld [vmem:[%s700 + $0x6e0] sm:$0xff]
        %v953 = vld [vmem:[%s700 + $0x6e8] sm:$0xff]
        %v954 = vld [vmem:[%s700 + $0x6f0] sm:$0xff]
        %v955 = vld [vmem:[%s700 + $0x6f8] sm:$0xff]
        %v956 = vld [vmem:[%s700 + $0x700] sm:$0xff]
        %v957 = vld [vmem:[%s700 + $0x708] sm:$0xff]
        %v958 = vld [vmem:[%s700 + $0x710] sm:$0xff]
        %v959 = vld [vmem:[%s700 + $0x718] sm:$0xff]
        %v960 = vld [vmem:[%s700 + $0x720] sm:$0xff]
        %v961 = vld [vmem:[%s700 + $0x728] sm:$0xff]
        %v962 = vld [vmem:[%s700 + $0x730] sm:$0xff]
        %v963 = vld [vmem:[%s700 + $0x738] sm:$0xff]
        %v964 = vld [vmem:[%s700 + $0x740] sm:$0xff]
        %v965 = vld [vmem:[%s700 + $0x748] sm:$0xff]
        %v966 = vld [vmem:[%s700 + $0x750] sm:$0xff]
        %v967 = vld [vmem:[%s700 + $0x758] sm:$0xff]
        %v968 = vld [vmem:[%s700 + $0x760] sm:$0xff]
        %v969 = vld [vmem:[%s700 + $0x768] sm:$0xff]
        %v970 = vld [vmem:[%s700 + $0x770] sm:$0xff]
        %v971 = vld [vmem:[%s700 + $0x778] sm:$0xff]
        %v972 = vld [vmem:[%s700 + $0x780] sm:$0xff]
        %v973 = vld [vmem:[%s700 + $0x788] sm:$0xff]
        %v974 = vld [vmem:[%s700 + $0x790] sm:$0xff]
        %v975 = vld [vmem:[%s700 + $0x798] sm:$0xff]
        %v976 = vld [vmem:[%s700 + $0x7a0] sm:$0xff]
        %v977 = vld [vmem:[%s700 + $0x7a8] sm:$0xff]
        %v978 = vld [vmem:[%s700 + $0x7b0] sm:$0xff]
        %v979 = vld [vmem:[%s700 + $0x7b8] sm:$0xff]
        %v980 = vld [vmem:[%s700 + $0x7c0] sm:$0xff]
        %v981 = vld [vmem:[%s700 + $0x7c8] sm:$0xff]
        %v982 = vld [vmem:[%s700 + $0x7d0] sm:$0xff]
        %v983 = vld [vmem:[%s700 + $0x7d8] sm:$0xff]
        %v984 = vld [vmem:[%s700 + $0x7e0] sm:$0xff]
        %v985 = vld [vmem:[%s700 + $0x7e8] sm:$0xff]
        %v986 = vld [vmem:[%s700 + $0x7f0] sm:$0xff]
        %v987 = vld [vmem:[%s700 + $0x7f8] sm:$0xff]
        %v996 = vunpack.c.l.b16 %v724
        %v997 = vunpack.c.h.b16 %v724
        %v998 = vunpack.c.l.b16 %v725
        %v999 = vunpack.c.h.b16 %v725
        %v1000 = vunpack.c.l.b16 %v726
        %v1001 = vunpack.c.h.b16 %v726
        %v1002 = vunpack.c.l.b16 %v727
        %v1003 = vunpack.c.h.b16 %v727
        %v1004 = vunpack.c.l.b16 %v728
        %v1005 = vunpack.c.h.b16 %v728
        %v1006 = vunpack.c.l.b16 %v729
        %v1007 = vunpack.c.h.b16 %v729
        %v1008 = vunpack.c.l.b16 %v730
        %v1009 = vunpack.c.h.b16 %v730
        %v1010 = vunpack.c.l.b16 %v731
        %v1011 = vunpack.c.h.b16 %v731
        %v1012 = vpack.c.b16 %v1004, %v996
        %v1013 = vpack.c.b16 %v1005, %v997
        %v1014 = vpack.c.b16 %v1006, %v998
        %v1015 = vpack.c.b16 %v1007, %v999
        %v1016 = vpack.c.b16 %v1008, %v1000
        %v1017 = vpack.c.b16 %v1009, %v1001
        %v1018 = vpack.c.b16 %v1010, %v1002
        %v1019 = vpack.c.b16 %v1011, %v1003
        %v1284 = vunpack.c.l.b16 %v732
        %v1285 = vunpack.c.h.b16 %v732
        %v1286 = vunpack.c.l.b16 %v733
        %v1287 = vunpack.c.h.b16 %v733
        %v1288 = vunpack.c.l.b16 %v734
        %v1289 = vunpack.c.h.b16 %v734
        %v1290 = vunpack.c.l.b16 %v735
        %v1291 = vunpack.c.h.b16 %v735
        %v1292 = vunpack.c.l.b16 %v736
        %v1293 = vunpack.c.h.b16 %v736
        %v1294 = vunpack.c.l.b16 %v737
        %v1295 = vunpack.c.h.b16 %v737
        %v1296 = vunpack.c.l.b16 %v738
        %v1297 = vunpack.c.h.b16 %v738
        %v1298 = vunpack.c.l.b16 %v739
        %v1299 = vunpack.c.h.b16 %v739
        %v1300 = vunpack.c.l.b16 %v740
        %v1301 = vunpack.c.h.b16 %v740
        %v1302 = vunpack.c.l.b16 %v741
        %v1303 = vunpack.c.h.b16 %v741
        %v1304 = vunpack.c.l.b16 %v742
        %v1305 = vunpack.c.h.b16 %v742
        %v1306 = vunpack.c.l.b16 %v743
        %v1307 = vunpack.c.h.b16 %v743
        %v1308 = vunpack.c.l.b16 %v744
        %v1309 = vunpack.c.h.b16 %v744
        %v1310 = vunpack.c.l.b16 %v745
        %v1311 = vunpack.c.h.b16 %v745
        %v1312 = vunpack.c.l.b16 %v746
        %v1313 = vunpack.c.h.b16 %v746
        %v1314 = vunpack.c.l.b16 %v747
        %v1315 = vunpack.c.h.b16 %v747
        %v1316 = vunpack.c.l.b16 %v748
        %v1317 = vunpack.c.h.b16 %v748
        %v1318 = vunpack.c.l.b16 %v749
        %v1319 = vunpack.c.h.b16 %v749
        %v1320 = vunpack.c.l.b16 %v750
        %v1321 = vunpack.c.h.b16 %v750
        %v1322 = vunpack.c.l.b16 %v751
        %v1323 = vunpack.c.h.b16 %v751
        %v1324 = vunpack.c.l.b16 %v752
        %v1325 = vunpack.c.h.b16 %v752
        %v1326 = vunpack.c.l.b16 %v753
        %v1327 = vunpack.c.h.b16 %v753
        %v1328 = vunpack.c.l.b16 %v754
        %v1329 = vunpack.c.h.b16 %v754
        %v1330 = vunpack.c.l.b16 %v755
        %v1331 = vunpack.c.h.b16 %v755
        %v1332 = vunpack.c.l.b16 %v756
        %v1333 = vunpack.c.h.b16 %v756
        %v1334 = vunpack.c.l.b16 %v757
        %v1335 = vunpack.c.h.b16 %v757
        %v1336 = vunpack.c.l.b16 %v758
        %v1337 = vunpack.c.h.b16 %v758
        %v1338 = vunpack.c.l.b16 %v759
        %v1339 = vunpack.c.h.b16 %v759
        %v1340 = vunpack.c.l.b16 %v760
        %v1341 = vunpack.c.h.b16 %v760
        %v1342 = vunpack.c.l.b16 %v761
        %v1343 = vunpack.c.h.b16 %v761
        %v1344 = vunpack.c.l.b16 %v762
        %v1345 = vunpack.c.h.b16 %v762
        %v1346 = vunpack.c.l.b16 %v763
        %v1347 = vunpack.c.h.b16 %v763
        %v1348 = vunpack.c.l.b16 %v764
        %v1349 = vunpack.c.h.b16 %v764
        %v1350 = vunpack.c.l.b16 %v765
        %v1351 = vunpack.c.h.b16 %v765
        %v1352 = vunpack.c.l.b16 %v766
        %v1353 = vunpack.c.h.b16 %v766
        %v1354 = vunpack.c.l.b16 %v767
        %v1355 = vunpack.c.h.b16 %v767
        %v1356 = vunpack.c.l.b16 %v768
        %v1357 = vunpack.c.h.b16 %v768
        %v1358 = vunpack.c.l.b16 %v769
        %v1359 = vunpack.c.h.b16 %v769
        %v1360 = vunpack.c.l.b16 %v770
        %v1361 = vunpack.c.h.b16 %v770
        %v1362 = vunpack.c.l.b16 %v771
        %v1363 = vunpack.c.h.b16 %v771
        %v1364 = vunpack.c.l.b16 %v772
        %v1365 = vunpack.c.h.b16 %v772
        %v1366 = vunpack.c.l.b16 %v773
        %v1367 = vunpack.c.h.b16 %v773
        %v1368 = vunpack.c.l.b16 %v774
        %v1369 = vunpack.c.h.b16 %v774
        %v1370 = vunpack.c.l.b16 %v775
        %v1371 = vunpack.c.h.b16 %v775
        %v1372 = vunpack.c.l.b16 %v776
        %v1373 = vunpack.c.h.b16 %v776
        %v1374 = vunpack.c.l.b16 %v777
        %v1375 = vunpack.c.h.b16 %v777
        %v1376 = vunpack.c.l.b16 %v778
        %v1377 = vunpack.c.h.b16 %v778
        %v1378 = vunpack.c.l.b16 %v779
        %v1379 = vunpack.c.h.b16 %v779
        %v1380 = vunpack.c.l.b16 %v780
        %v1381 = vunpack.c.h.b16 %v780
        %v1382 = vunpack.c.l.b16 %v781
        %v1383 = vunpack.c.h.b16 %v781
        %v1384 = vunpack.c.l.b16 %v782
        %v1385 = vunpack.c.h.b16 %v782
        %v1386 = vunpack.c.l.b16 %v783
        %v1387 = vunpack.c.h.b16 %v783
        %v1388 = vunpack.c.l.b16 %v784
        %v1389 = vunpack.c.h.b16 %v784
        %v1390 = vunpack.c.l.b16 %v785
        %v1391 = vunpack.c.h.b16 %v785
        %v1392 = vunpack.c.l.b16 %v786
        %v1393 = vunpack.c.h.b16 %v786
        %v1394 = vunpack.c.l.b16 %v787
        %v1395 = vunpack.c.h.b16 %v787
        %v1396 = vunpack.c.l.b16 %v788
        %v1397 = vunpack.c.h.b16 %v788
        %v1398 = vunpack.c.l.b16 %v789
        %v1399 = vunpack.c.h.b16 %v789
        %v1400 = vunpack.c.l.b16 %v790
        %v1401 = vunpack.c.h.b16 %v790
        %v1402 = vunpack.c.l.b16 %v791
        %v1403 = vunpack.c.h.b16 %v791
        %v1404 = vunpack.c.l.b16 %v792
        %v1405 = vunpack.c.h.b16 %v792
        %v1406 = vunpack.c.l.b16 %v793
        %v1407 = vunpack.c.h.b16 %v793
        %v1408 = vunpack.c.l.b16 %v794
        %v1409 = vunpack.c.h.b16 %v794
        %v1410 = vunpack.c.l.b16 %v795
        %v1411 = vunpack.c.h.b16 %v795
        %v1412 = vunpack.c.l.b16 %v796
        %v1413 = vunpack.c.h.b16 %v796
        %v1414 = vunpack.c.l.b16 %v797
        %v1415 = vunpack.c.h.b16 %v797
        %v1416 = vunpack.c.l.b16 %v798
        %v1417 = vunpack.c.h.b16 %v798
        %v1418 = vunpack.c.l.b16 %v799
        %v1419 = vunpack.c.h.b16 %v799
        %v1420 = vunpack.c.l.b16 %v800
        %v1421 = vunpack.c.h.b16 %v800
        %v1422 = vunpack.c.l.b16 %v801
        %v1423 = vunpack.c.h.b16 %v801
        %v1424 = vunpack.c.l.b16 %v802
        %v1425 = vunpack.c.h.b16 %v802
        %v1426 = vunpack.c.l.b16 %v803
        %v1427 = vunpack.c.h.b16 %v803
        %v1428 = vunpack.c.l.b16 %v804
        %v1429 = vunpack.c.h.b16 %v804
        %v1430 = vunpack.c.l.b16 %v805
        %v1431 = vunpack.c.h.b16 %v805
        %v1432 = vunpack.c.l.b16 %v806
        %v1433 = vunpack.c.h.b16 %v806
        %v1434 = vunpack.c.l.b16 %v807
        %v1435 = vunpack.c.h.b16 %v807
        %v1436 = vunpack.c.l.b16 %v808
        %v1437 = vunpack.c.h.b16 %v808
        %v1438 = vunpack.c.l.b16 %v809
        %v1439 = vunpack.c.h.b16 %v809
        %v1440 = vunpack.c.l.b16 %v810
        %v1441 = vunpack.c.h.b16 %v810
        %v1442 = vunpack.c.l.b16 %v811
        %v1443 = vunpack.c.h.b16 %v811
        %v1444 = vunpack.c.l.b16 %v812
        %v1445 = vunpack.c.h.b16 %v812
        %v1446 = vunpack.c.l.b16 %v813
        %v1447 = vunpack.c.h.b16 %v813
        %v1448 = vunpack.c.l.b16 %v814
        %v1449 = vunpack.c.h.b16 %v814
        %v1450 = vunpack.c.l.b16 %v815
        %v1451 = vunpack.c.h.b16 %v815
        %v1452 = vunpack.c.l.b16 %v816
        %v1453 = vunpack.c.h.b16 %v816
        %v1454 = vunpack.c.l.b16 %v817
        %v1455 = vunpack.c.h.b16 %v817
        %v1456 = vunpack.c.l.b16 %v818
        %v1457 = vunpack.c.h.b16 %v818
        %v1458 = vunpack.c.l.b16 %v819
        %v1459 = vunpack.c.h.b16 %v819
        %v1460 = vunpack.c.l.b16 %v820
        %v1461 = vunpack.c.h.b16 %v820
        %v1462 = vunpack.c.l.b16 %v821
        %v1463 = vunpack.c.h.b16 %v821
        %v1464 = vunpack.c.l.b16 %v822
        %v1465 = vunpack.c.h.b16 %v822
        %v1466 = vunpack.c.l.b16 %v823
        %v1467 = vunpack.c.h.b16 %v823
        %v1468 = vunpack.c.l.b16 %v824
        %v1469 = vunpack.c.h.b16 %v824
        %v1470 = vunpack.c.l.b16 %v825
        %v1471 = vunpack.c.h.b16 %v825
        %v1472 = vunpack.c.l.b16 %v826
        %v1473 = vunpack.c.h.b16 %v826
        %v1474 = vunpack.c.l.b16 %v827
        %v1475 = vunpack.c.h.b16 %v827
        %v1476 = vunpack.c.l.b16 %v828
        %v1477 = vunpack.c.h.b16 %v828
        %v1478 = vunpack.c.l.b16 %v829
        %v1479 = vunpack.c.h.b16 %v829
        %v1480 = vunpack.c.l.b16 %v830
        %v1481 = vunpack.c.h.b16 %v830
        %v1482 = vunpack.c.l.b16 %v831
        %v1483 = vunpack.c.h.b16 %v831
        %v1484 = vunpack.c.l.b16 %v832
        %v1485 = vunpack.c.h.b16 %v832
        %v1486 = vunpack.c.l.b16 %v833
        %v1487 = vunpack.c.h.b16 %v833
        %v1488 = vunpack.c.l.b16 %v834
        %v1489 = vunpack.c.h.b16 %v834
        %v1490 = vunpack.c.l.b16 %v835
        %v1491 = vunpack.c.h.b16 %v835
        %v1492 = vunpack.c.l.b16 %v836
        %v1493 = vunpack.c.h.b16 %v836
        %v1494 = vunpack.c.l.b16 %v837
        %v1495 = vunpack.c.h.b16 %v837
        %v1496 = vunpack.c.l.b16 %v838
        %v1497 = vunpack.c.h.b16 %v838
        %v1498 = vunpack.c.l.b16 %v839
        %v1499 = vunpack.c.h.b16 %v839
        %v1500 = vunpack.c.l.b16 %v840
        %v1501 = vunpack.c.h.b16 %v840
        %v1502 = vunpack.c.l.b16 %v841
        %v1503 = vunpack.c.h.b16 %v841
        %v1504 = vunpack.c.l.b16 %v842
        %v1505 = vunpack.c.h.b16 %v842
        %v1506 = vunpack.c.l.b16 %v843
        %v1507 = vunpack.c.h.b16 %v843
        %v1508 = vunpack.c.l.b16 %v844
        %v1509 = vunpack.c.h.b16 %v844
        %v1510 = vunpack.c.l.b16 %v845
        %v1511 = vunpack.c.h.b16 %v845
        %v1512 = vunpack.c.l.b16 %v846
        %v1513 = vunpack.c.h.b16 %v846
        %v1514 = vunpack.c.l.b16 %v847
        %v1515 = vunpack.c.h.b16 %v847
        %v1516 = vunpack.c.l.b16 %v848
        %v1517 = vunpack.c.h.b16 %v848
        %v1518 = vunpack.c.l.b16 %v849
        %v1519 = vunpack.c.h.b16 %v849
        %v1520 = vunpack.c.l.b16 %v850
        %v1521 = vunpack.c.h.b16 %v850
        %v1522 = vunpack.c.l.b16 %v851
        %v1523 = vunpack.c.h.b16 %v851
        %v1524 = vunpack.c.l.b16 %v852
        %v1525 = vunpack.c.h.b16 %v852
        %v1526 = vunpack.c.l.b16 %v853
        %v1527 = vunpack.c.h.b16 %v853
        %v1528 = vunpack.c.l.b16 %v854
        %v1529 = vunpack.c.h.b16 %v854
        %v1530 = vunpack.c.l.b16 %v855
        %v1531 = vunpack.c.h.b16 %v855
        %v1532 = vunpack.c.l.b16 %v856
        %v1533 = vunpack.c.h.b16 %v856
        %v1534 = vunpack.c.l.b16 %v857
        %v1535 = vunpack.c.h.b16 %v857
        %v1536 = vunpack.c.l.b16 %v858
        %v1537 = vunpack.c.h.b16 %v858
        %v1538 = vunpack.c.l.b16 %v859
        %v1539 = vunpack.c.h.b16 %v859
        %v1540 = vunpack.c.l.b16 %v860
        %v1541 = vunpack.c.h.b16 %v860
        %v1542 = vunpack.c.l.b16 %v861
        %v1543 = vunpack.c.h.b16 %v861
        %v1544 = vunpack.c.l.b16 %v862
        %v1545 = vunpack.c.h.b16 %v862
        %v1546 = vunpack.c.l.b16 %v863
        %v1547 = vunpack.c.h.b16 %v863
        %v1548 = vunpack.c.l.b16 %v864
        %v1549 = vunpack.c.h.b16 %v864
        %v1550 = vunpack.c.l.b16 %v865
        %v1551 = vunpack.c.h.b16 %v865
        %v1552 = vunpack.c.l.b16 %v866
        %v1553 = vunpack.c.h.b16 %v866
        %v1554 = vunpack.c.l.b16 %v867
        %v1555 = vunpack.c.h.b16 %v867
        %v1556 = vunpack.c.l.b16 %v868
        %v1557 = vunpack.c.h.b16 %v868
        %v1558 = vunpack.c.l.b16 %v869
        %v1559 = vunpack.c.h.b16 %v869
        %v1560 = vunpack.c.l.b16 %v870
        %v1561 = vunpack.c.h.b16 %v870
        %v1562 = vunpack.c.l.b16 %v871
        %v1563 = vunpack.c.h.b16 %v871
        %v1564 = vunpack.c.l.b16 %v872
        %v1565 = vunpack.c.h.b16 %v872
        %v1566 = vunpack.c.l.b16 %v873
        %v1567 = vunpack.c.h.b16 %v873
        %v1568 = vunpack.c.l.b16 %v874
        %v1569 = vunpack.c.h.b16 %v874
        %v1570 = vunpack.c.l.b16 %v875
        %v1571 = vunpack.c.h.b16 %v875
        %v1572 = vunpack.c.l.b16 %v876
        %v1573 = vunpack.c.h.b16 %v876
        %v1574 = vunpack.c.l.b16 %v877
        %v1575 = vunpack.c.h.b16 %v877
        %v1576 = vunpack.c.l.b16 %v878
        %v1577 = vunpack.c.h.b16 %v878
        %v1578 = vunpack.c.l.b16 %v879
        %v1579 = vunpack.c.h.b16 %v879
        %v1580 = vunpack.c.l.b16 %v880
        %v1581 = vunpack.c.h.b16 %v880
        %v1582 = vunpack.c.l.b16 %v881
        %v1583 = vunpack.c.h.b16 %v881
        %v1584 = vunpack.c.l.b16 %v882
        %v1585 = vunpack.c.h.b16 %v882
        %v1586 = vunpack.c.l.b16 %v883
        %v1587 = vunpack.c.h.b16 %v883
        %v1588 = vunpack.c.l.b16 %v884
        %v1589 = vunpack.c.h.b16 %v884
        %v1590 = vunpack.c.l.b16 %v885
        %v1591 = vunpack.c.h.b16 %v885
        %v1592 = vunpack.c.l.b16 %v886
        %v1593 = vunpack.c.h.b16 %v886
        %v1594 = vunpack.c.l.b16 %v887
        %v1595 = vunpack.c.h.b16 %v887
        %v1596 = vunpack.c.l.b16 %v888
        %v1597 = vunpack.c.h.b16 %v888
        %v1598 = vunpack.c.l.b16 %v889
        %v1599 = vunpack.c.h.b16 %v889
        %v1600 = vunpack.c.l.b16 %v890
        %v1601 = vunpack.c.h.b16 %v890
        %v1602 = vunpack.c.l.b16 %v891
        %v1603 = vunpack.c.h.b16 %v891
        %v1604 = vunpack.c.l.b16 %v892
        %v1605 = vunpack.c.h.b16 %v892
        %v1606 = vunpack.c.l.b16 %v893
        %v1607 = vunpack.c.h.b16 %v893
        %v1608 = vunpack.c.l.b16 %v894
        %v1609 = vunpack.c.h.b16 %v894
        %v1610 = vunpack.c.l.b16 %v895
        %v1611 = vunpack.c.h.b16 %v895
        %v1612 = vunpack.c.l.b16 %v896
        %v1613 = vunpack.c.h.b16 %v896
        %v1614 = vunpack.c.l.b16 %v897
        %v1615 = vunpack.c.h.b16 %v897
        %v1616 = vunpack.c.l.b16 %v898
        %v1617 = vunpack.c.h.b16 %v898
        %v1618 = vunpack.c.l.b16 %v899
        %v1619 = vunpack.c.h.b16 %v899
        %v1620 = vunpack.c.l.b16 %v900
        %v1621 = vunpack.c.h.b16 %v900
        %v1622 = vunpack.c.l.b16 %v901
        %v1623 = vunpack.c.h.b16 %v901
        %v1624 = vunpack.c.l.b16 %v902
        %v1625 = vunpack.c.h.b16 %v902
        %v1626 = vunpack.c.l.b16 %v903
        %v1627 = vunpack.c.h.b16 %v903
        %v1628 = vunpack.c.l.b16 %v904
        %v1629 = vunpack.c.h.b16 %v904
        %v1630 = vunpack.c.l.b16 %v905
        %v1631 = vunpack.c.h.b16 %v905
        %v1632 = vunpack.c.l.b16 %v906
        %v1633 = vunpack.c.h.b16 %v906
        %v1634 = vunpack.c.l.b16 %v907
        %v1635 = vunpack.c.h.b16 %v907
        %v1636 = vunpack.c.l.b16 %v908
        %v1637 = vunpack.c.h.b16 %v908
        %v1638 = vunpack.c.l.b16 %v909
        %v1639 = vunpack.c.h.b16 %v909
        %v1640 = vunpack.c.l.b16 %v910
        %v1641 = vunpack.c.h.b16 %v910
        %v1642 = vunpack.c.l.b16 %v911
        %v1643 = vunpack.c.h.b16 %v911
        %v1644 = vunpack.c.l.b16 %v912
        %v1645 = vunpack.c.h.b16 %v912
        %v1646 = vunpack.c.l.b16 %v913
        %v1647 = vunpack.c.h.b16 %v913
        %v1648 = vunpack.c.l.b16 %v914
        %v1649 = vunpack.c.h.b16 %v914
        %v1650 = vunpack.c.l.b16 %v915
        %v1651 = vunpack.c.h.b16 %v915
        %v1652 = vunpack.c.l.b16 %v916
        %v1653 = vunpack.c.h.b16 %v916
        %v1654 = vunpack.c.l.b16 %v917
        %v1655 = vunpack.c.h.b16 %v917
        %v1656 = vunpack.c.l.b16 %v918
        %v1657 = vunpack.c.h.b16 %v918
        %v1658 = vunpack.c.l.b16 %v919
        %v1659 = vunpack.c.h.b16 %v919
        %v1660 = vunpack.c.l.b16 %v920
        %v1661 = vunpack.c.h.b16 %v920
        %v1662 = vunpack.c.l.b16 %v921
        %v1663 = vunpack.c.h.b16 %v921
        %v1664 = vunpack.c.l.b16 %v922
        %v1665 = vunpack.c.h.b16 %v922
        %v1666 = vunpack.c.l.b16 %v923
        %v1667 = vunpack.c.h.b16 %v923
        %v1668 = vunpack.c.l.b16 %v924
        %v1669 = vunpack.c.h.b16 %v924
        %v1670 = vunpack.c.l.b16 %v925
        %v1671 = vunpack.c.h.b16 %v925
        %v1672 = vunpack.c.l.b16 %v926
        %v1673 = vunpack.c.h.b16 %v926
        %v1674 = vunpack.c.l.b16 %v927
        %v1675 = vunpack.c.h.b16 %v927
        %v1676 = vunpack.c.l.b16 %v928
        %v1677 = vunpack.c.h.b16 %v928
        %v1678 = vunpack.c.l.b16 %v929
        %v1679 = vunpack.c.h.b16 %v929
        %v1680 = vunpack.c.l.b16 %v930
        %v1681 = vunpack.c.h.b16 %v930
        %v1682 = vunpack.c.l.b16 %v931
        %v1683 = vunpack.c.h.b16 %v931
        %v1684 = vunpack.c.l.b16 %v932
        %v1685 = vunpack.c.h.b16 %v932
        %v1686 = vunpack.c.l.b16 %v933
        %v1687 = vunpack.c.h.b16 %v933
        %v1688 = vunpack.c.l.b16 %v934
        %v1689 = vunpack.c.h.b16 %v934
        %v1690 = vunpack.c.l.b16 %v935
        %v1691 = vunpack.c.h.b16 %v935
        %v1692 = vunpack.c.l.b16 %v936
        %v1693 = vunpack.c.h.b16 %v936
        %v1694 = vunpack.c.l.b16 %v937
        %v1695 = vunpack.c.h.b16 %v937
        %v1696 = vunpack.c.l.b16 %v938
        %v1697 = vunpack.c.h.b16 %v938
        %v1698 = vunpack.c.l.b16 %v939
        %v1699 = vunpack.c.h.b16 %v939
        %v1700 = vunpack.c.l.b16 %v940
        %v1701 = vunpack.c.h.b16 %v940
        %v1702 = vunpack.c.l.b16 %v941
        %v1703 = vunpack.c.h.b16 %v941
        %v1704 = vunpack.c.l.b16 %v942
        %v1705 = vunpack.c.h.b16 %v942
        %v1706 = vunpack.c.l.b16 %v943
        %v1707 = vunpack.c.h.b16 %v943
        %v1708 = vunpack.c.l.b16 %v944
        %v1709 = vunpack.c.h.b16 %v944
        %v1710 = vunpack.c.l.b16 %v945
        %v1711 = vunpack.c.h.b16 %v945
        %v1712 = vunpack.c.l.b16 %v946
        %v1713 = vunpack.c.h.b16 %v946
        %v1714 = vunpack.c.l.b16 %v947
        %v1715 = vunpack.c.h.b16 %v947
        %v1716 = vunpack.c.l.b16 %v948
        %v1717 = vunpack.c.h.b16 %v948
        %v1718 = vunpack.c.l.b16 %v949
        %v1719 = vunpack.c.h.b16 %v949
        %v1720 = vunpack.c.l.b16 %v950
        %v1721 = vunpack.c.h.b16 %v950
        %v1722 = vunpack.c.l.b16 %v951
        %v1723 = vunpack.c.h.b16 %v951
        %v1724 = vunpack.c.l.b16 %v952
        %v1725 = vunpack.c.h.b16 %v952
        %v1726 = vunpack.c.l.b16 %v953
        %v1727 = vunpack.c.h.b16 %v953
        %v1728 = vunpack.c.l.b16 %v954
        %v1729 = vunpack.c.h.b16 %v954
        %v1730 = vunpack.c.l.b16 %v955
        %v1731 = vunpack.c.h.b16 %v955
        %v1732 = vunpack.c.l.b16 %v956
        %v1733 = vunpack.c.h.b16 %v956
        %v1734 = vunpack.c.l.b16 %v957
        %v1735 = vunpack.c.h.b16 %v957
        %v1736 = vunpack.c.l.b16 %v958
        %v1737 = vunpack.c.h.b16 %v958
        %v1738 = vunpack.c.l.b16 %v959
        %v1739 = vunpack.c.h.b16 %v959
        %v1740 = vunpack.c.l.b16 %v960
        %v1741 = vunpack.c.h.b16 %v960
        %v1742 = vunpack.c.l.b16 %v961
        %v1743 = vunpack.c.h.b16 %v961
        %v1744 = vunpack.c.l.b16 %v962
        %v1745 = vunpack.c.h.b16 %v962
        %v1746 = vunpack.c.l.b16 %v963
        %v1747 = vunpack.c.h.b16 %v963
        %v1748 = vunpack.c.l.b16 %v964
        %v1749 = vunpack.c.h.b16 %v964
        %v1750 = vunpack.c.l.b16 %v965
        %v1751 = vunpack.c.h.b16 %v965
        %v1752 = vunpack.c.l.b16 %v966
        %v1753 = vunpack.c.h.b16 %v966
        %v1754 = vunpack.c.l.b16 %v967
        %v1755 = vunpack.c.h.b16 %v967
        %v1756 = vunpack.c.l.b16 %v968
        %v1757 = vunpack.c.h.b16 %v968
        %v1758 = vunpack.c.l.b16 %v969
        %v1759 = vunpack.c.h.b16 %v969
        %v1760 = vunpack.c.l.b16 %v970
        %v1761 = vunpack.c.h.b16 %v970
        %v1762 = vunpack.c.l.b16 %v971
        %v1763 = vunpack.c.h.b16 %v971
        %v1764 = vunpack.c.l.b16 %v972
        %v1765 = vunpack.c.h.b16 %v972
        %v1766 = vunpack.c.l.b16 %v973
        %v1767 = vunpack.c.h.b16 %v973
        %v1768 = vunpack.c.l.b16 %v974
        %v1769 = vunpack.c.h.b16 %v974
        %v1770 = vunpack.c.l.b16 %v975
        %v1771 = vunpack.c.h.b16 %v975
        %v1772 = vunpack.c.l.b16 %v976
        %v1773 = vunpack.c.h.b16 %v976
        %v1774 = vunpack.c.l.b16 %v977
        %v1775 = vunpack.c.h.b16 %v977
        %v1776 = vunpack.c.l.b16 %v978
        %v1777 = vunpack.c.h.b16 %v978
        %v1778 = vunpack.c.l.b16 %v979
        %v1779 = vunpack.c.h.b16 %v979
        %v1780 = vunpack.c.l.b16 %v980
        %v1781 = vunpack.c.h.b16 %v980
        %v1782 = vunpack.c.l.b16 %v981
        %v1783 = vunpack.c.h.b16 %v981
        %v1784 = vunpack.c.l.b16 %v982
        %v1785 = vunpack.c.h.b16 %v982
        %v1786 = vunpack.c.l.b16 %v983
        %v1787 = vunpack.c.h.b16 %v983
        %v1788 = vunpack.c.l.b16 %v984
        %v1789 = vunpack.c.h.b16 %v984
        %v1790 = vunpack.c.l.b16 %v985
        %v1791 = vunpack.c.h.b16 %v985
        %v1792 = vunpack.c.l.b16 %v986
        %v1793 = vunpack.c.h.b16 %v986
        %v1794 = vunpack.c.l.b16 %v987
        %v1795 = vunpack.c.h.b16 %v987
        %v1796 = vpack.c.b16 %v1288, %v1284
        %v1797 = vpack.c.b16 %v1289, %v1285
        %v1798 = vpack.c.b16 %v1290, %v1286
        %v1799 = vpack.c.b16 %v1291, %v1287
        %v1800 = vpack.c.b16 %v1296, %v1292
        %v1801 = vpack.c.b16 %v1297, %v1293
        %v1802 = vpack.c.b16 %v1298, %v1294
        %v1803 = vpack.c.b16 %v1299, %v1295
        %v1804 = vpack.c.b16 %v1304, %v1300
        %v1805 = vpack.c.b16 %v1305, %v1301
        %v1806 = vpack.c.b16 %v1306, %v1302
        %v1807 = vpack.c.b16 %v1307, %v1303
        %v1808 = vpack.c.b16 %v1312, %v1308
        %v1809 = vpack.c.b16 %v1313, %v1309
        %v1810 = vpack.c.b16 %v1314, %v1310
        %v1811 = vpack.c.b16 %v1315, %v1311
        %v1812 = vpack.c.b16 %v1320, %v1316
        %v1813 = vpack.c.b16 %v1321, %v1317
        %v1814 = vpack.c.b16 %v1322, %v1318
        %v1815 = vpack.c.b16 %v1323, %v1319
        %v1816 = vpack.c.b16 %v1328, %v1324
        %v1817 = vpack.c.b16 %v1329, %v1325
        %v1818 = vpack.c.b16 %v1330, %v1326
        %v1819 = vpack.c.b16 %v1331, %v1327
        %v1820 = vpack.c.b16 %v1336, %v1332
        %v1821 = vpack.c.b16 %v1337, %v1333
        %v1822 = vpack.c.b16 %v1338, %v1334
        %v1823 = vpack.c.b16 %v1339, %v1335
        %v1824 = vpack.c.b16 %v1344, %v1340
        %v1825 = vpack.c.b16 %v1345, %v1341
        %v1826 = vpack.c.b16 %v1346, %v1342
        %v1827 = vpack.c.b16 %v1347, %v1343
        %v1828 = vpack.c.b16 %v1352, %v1348
        %v1829 = vpack.c.b16 %v1353, %v1349
        %v1830 = vpack.c.b16 %v1354, %v1350
        %v1831 = vpack.c.b16 %v1355, %v1351
        %v1832 = vpack.c.b16 %v1360, %v1356
        %v1833 = vpack.c.b16 %v1361, %v1357
        %v1834 = vpack.c.b16 %v1362, %v1358
        %v1835 = vpack.c.b16 %v1363, %v1359
        %v1836 = vpack.c.b16 %v1368, %v1364
        %v1837 = vpack.c.b16 %v1369, %v1365
        %v1838 = vpack.c.b16 %v1370, %v1366
        %v1839 = vpack.c.b16 %v1371, %v1367
        %v1840 = vpack.c.b16 %v1376, %v1372
        %v1841 = vpack.c.b16 %v1377, %v1373
        %v1842 = vpack.c.b16 %v1378, %v1374
        %v1843 = vpack.c.b16 %v1379, %v1375
        %v1844 = vpack.c.b16 %v1384, %v1380
        %v1845 = vpack.c.b16 %v1385, %v1381
        %v1846 = vpack.c.b16 %v1386, %v1382
        %v1847 = vpack.c.b16 %v1387, %v1383
        %v1848 = vpack.c.b16 %v1392, %v1388
        %v1849 = vpack.c.b16 %v1393, %v1389
        %v1850 = vpack.c.b16 %v1394, %v1390
        %v1851 = vpack.c.b16 %v1395, %v1391
        %v1852 = vpack.c.b16 %v1400, %v1396
        %v1853 = vpack.c.b16 %v1401, %v1397
        %v1854 = vpack.c.b16 %v1402, %v1398
        %v1855 = vpack.c.b16 %v1403, %v1399
        %v1856 = vpack.c.b16 %v1408, %v1404
        %v1857 = vpack.c.b16 %v1409, %v1405
        %v1858 = vpack.c.b16 %v1410, %v1406
        %v1859 = vpack.c.b16 %v1411, %v1407
        %v1860 = vpack.c.b16 %v1416, %v1412
        %v1861 = vpack.c.b16 %v1417, %v1413
        %v1862 = vpack.c.b16 %v1418, %v1414
        %v1863 = vpack.c.b16 %v1419, %v1415
        %v1864 = vpack.c.b16 %v1424, %v1420
        %v1865 = vpack.c.b16 %v1425, %v1421
        %v1866 = vpack.c.b16 %v1426, %v1422
        %v1867 = vpack.c.b16 %v1427, %v1423
        %v1868 = vpack.c.b16 %v1432, %v1428
        %v1869 = vpack.c.b16 %v1433, %v1429
        %v1870 = vpack.c.b16 %v1434, %v1430
        %v1871 = vpack.c.b16 %v1435, %v1431
        %v1872 = vpack.c.b16 %v1440, %v1436
        %v1873 = vpack.c.b16 %v1441, %v1437
        %v1874 = vpack.c.b16 %v1442, %v1438
        %v1875 = vpack.c.b16 %v1443, %v1439
        %v1876 = vpack.c.b16 %v1448, %v1444
        %v1877 = vpack.c.b16 %v1449, %v1445
        %v1878 = vpack.c.b16 %v1450, %v1446
        %v1879 = vpack.c.b16 %v1451, %v1447
        %v1880 = vpack.c.b16 %v1456, %v1452
        %v1881 = vpack.c.b16 %v1457, %v1453
        %v1882 = vpack.c.b16 %v1458, %v1454
        %v1883 = vpack.c.b16 %v1459, %v1455
        %v1884 = vpack.c.b16 %v1464, %v1460
        %v1885 = vpack.c.b16 %v1465, %v1461
        %v1886 = vpack.c.b16 %v1466, %v1462
        %v1887 = vpack.c.b16 %v1467, %v1463
        %v1888 = vpack.c.b16 %v1472, %v1468
        %v1889 = vpack.c.b16 %v1473, %v1469
        %v1890 = vpack.c.b16 %v1474, %v1470
        %v1891 = vpack.c.b16 %v1475, %v1471
        %v1892 = vpack.c.b16 %v1480, %v1476
        %v1893 = vpack.c.b16 %v1481, %v1477
        %v1894 = vpack.c.b16 %v1482, %v1478
        %v1895 = vpack.c.b16 %v1483, %v1479
        %v1896 = vpack.c.b16 %v1488, %v1484
        %v1897 = vpack.c.b16 %v1489, %v1485
        %v1898 = vpack.c.b16 %v1490, %v1486
        %v1899 = vpack.c.b16 %v1491, %v1487
        %v1900 = vpack.c.b16 %v1496, %v1492
        %v1901 = vpack.c.b16 %v1497, %v1493
        %v1902 = vpack.c.b16 %v1498, %v1494
        %v1903 = vpack.c.b16 %v1499, %v1495
        %v1904 = vpack.c.b16 %v1504, %v1500
        %v1905 = vpack.c.b16 %v1505, %v1501
        %v1906 = vpack.c.b16 %v1506, %v1502
        %v1907 = vpack.c.b16 %v1507, %v1503
        %v1908 = vpack.c.b16 %v1512, %v1508
        %v1909 = vpack.c.b16 %v1513, %v1509
        %v1910 = vpack.c.b16 %v1514, %v1510
        %v1911 = vpack.c.b16 %v1515, %v1511
        %v1912 = vpack.c.b16 %v1520, %v1516
        %v1913 = vpack.c.b16 %v1521, %v1517
        %v1914 = vpack.c.b16 %v1522, %v1518
        %v1915 = vpack.c.b16 %v1523, %v1519
        %v1916 = vpack.c.b16 %v1528, %v1524
        %v1917 = vpack.c.b16 %v1529, %v1525
        %v1918 = vpack.c.b16 %v1530, %v1526
        %v1919 = vpack.c.b16 %v1531, %v1527
        %v1920 = vpack.c.b16 %v1536, %v1532
        %v1921 = vpack.c.b16 %v1537, %v1533
        %v1922 = vpack.c.b16 %v1538, %v1534
        %v1923 = vpack.c.b16 %v1539, %v1535
        %v1924 = vpack.c.b16 %v1544, %v1540
        %v1925 = vpack.c.b16 %v1545, %v1541
        %v1926 = vpack.c.b16 %v1546, %v1542
        %v1927 = vpack.c.b16 %v1547, %v1543
        %v1928 = vpack.c.b16 %v1552, %v1548
        %v1929 = vpack.c.b16 %v1553, %v1549
        %v1930 = vpack.c.b16 %v1554, %v1550
        %v1931 = vpack.c.b16 %v1555, %v1551
        %v1932 = vpack.c.b16 %v1560, %v1556
        %v1933 = vpack.c.b16 %v1561, %v1557
        %v1934 = vpack.c.b16 %v1562, %v1558
        %v1935 = vpack.c.b16 %v1563, %v1559
        %v1936 = vpack.c.b16 %v1568, %v1564
        %v1937 = vpack.c.b16 %v1569, %v1565
        %v1938 = vpack.c.b16 %v1570, %v1566
        %v1939 = vpack.c.b16 %v1571, %v1567
        %v1940 = vpack.c.b16 %v1576, %v1572
        %v1941 = vpack.c.b16 %v1577, %v1573
        %v1942 = vpack.c.b16 %v1578, %v1574
        %v1943 = vpack.c.b16 %v1579, %v1575
        %v1944 = vpack.c.b16 %v1584, %v1580
        %v1945 = vpack.c.b16 %v1585, %v1581
        %v1946 = vpack.c.b16 %v1586, %v1582
        %v1947 = vpack.c.b16 %v1587, %v1583
        %v1948 = vpack.c.b16 %v1592, %v1588
        %v1949 = vpack.c.b16 %v1593, %v1589
        %v1950 = vpack.c.b16 %v1594, %v1590
        %v1951 = vpack.c.b16 %v1595, %v1591
        %v1952 = vpack.c.b16 %v1600, %v1596
        %v1953 = vpack.c.b16 %v1601, %v1597
        %v1954 = vpack.c.b16 %v1602, %v1598
        %v1955 = vpack.c.b16 %v1603, %v1599
        %v1956 = vpack.c.b16 %v1608, %v1604
        %v1957 = vpack.c.b16 %v1609, %v1605
        %v1958 = vpack.c.b16 %v1610, %v1606
        %v1959 = vpack.c.b16 %v1611, %v1607
        %v1960 = vpack.c.b16 %v1616, %v1612
        %v1961 = vpack.c.b16 %v1617, %v1613
        %v1962 = vpack.c.b16 %v1618, %v1614
        %v1963 = vpack.c.b16 %v1619, %v1615
        %v1964 = vpack.c.b16 %v1624, %v1620
        %v1965 = vpack.c.b16 %v1625, %v1621
        %v1966 = vpack.c.b16 %v1626, %v1622
        %v1967 = vpack.c.b16 %v1627, %v1623
        %v1968 = vpack.c.b16 %v1632, %v1628
        %v1969 = vpack.c.b16 %v1633, %v1629
        %v1970 = vpack.c.b16 %v1634, %v1630
        %v1971 = vpack.c.b16 %v1635, %v1631
        %v1972 = vpack.c.b16 %v1640, %v1636
        %v1973 = vpack.c.b16 %v1641, %v1637
        %v1974 = vpack.c.b16 %v1642, %v1638
        %v1975 = vpack.c.b16 %v1643, %v1639
        %v1976 = vpack.c.b16 %v1648, %v1644
        %v1977 = vpack.c.b16 %v1649, %v1645
        %v1978 = vpack.c.b16 %v1650, %v1646
        %v1979 = vpack.c.b16 %v1651, %v1647
        %v1980 = vpack.c.b16 %v1656, %v1652
        %v1981 = vpack.c.b16 %v1657, %v1653
        %v1982 = vpack.c.b16 %v1658, %v1654
        %v1983 = vpack.c.b16 %v1659, %v1655
        %v1984 = vpack.c.b16 %v1664, %v1660
        %v1985 = vpack.c.b16 %v1665, %v1661
        %v1986 = vpack.c.b16 %v1666, %v1662
        %v1987 = vpack.c.b16 %v1667, %v1663
        %v1988 = vpack.c.b16 %v1672, %v1668
        %v1989 = vpack.c.b16 %v1673, %v1669
        %v1990 = vpack.c.b16 %v1674, %v1670
        %v1991 = vpack.c.b16 %v1675, %v1671
        %v1992 = vpack.c.b16 %v1680, %v1676
        %v1993 = vpack.c.b16 %v1681, %v1677
        %v1994 = vpack.c.b16 %v1682, %v1678
        %v1995 = vpack.c.b16 %v1683, %v1679
        %v1996 = vpack.c.b16 %v1688, %v1684
        %v1997 = vpack.c.b16 %v1689, %v1685
        %v1998 = vpack.c.b16 %v1690, %v1686
        %v1999 = vpack.c.b16 %v1691, %v1687
        %v2000 = vpack.c.b16 %v1696, %v1692
        %v2001 = vpack.c.b16 %v1697, %v1693
        %v2002 = vpack.c.b16 %v1698, %v1694
        %v2003 = vpack.c.b16 %v1699, %v1695
        %v2004 = vpack.c.b16 %v1704, %v1700
        %v2005 = vpack.c.b16 %v1705, %v1701
        %v2006 = vpack.c.b16 %v1706, %v1702
        %v2007 = vpack.c.b16 %v1707, %v1703
        %v2008 = vpack.c.b16 %v1712, %v1708
        %v2009 = vpack.c.b16 %v1713, %v1709
        %v2010 = vpack.c.b16 %v1714, %v1710
        %v2011 = vpack.c.b16 %v1715, %v1711
        %v2012 = vpack.c.b16 %v1720, %v1716
        %v2013 = vpack.c.b16 %v1721, %v1717
        %v2014 = vpack.c.b16 %v1722, %v1718
        %v2015 = vpack.c.b16 %v1723, %v1719
        %v2016 = vpack.c.b16 %v1728, %v1724
        %v2017 = vpack.c.b16 %v1729, %v1725
        %v2018 = vpack.c.b16 %v1730, %v1726
        %v2019 = vpack.c.b16 %v1731, %v1727
        %v2020 = vpack.c.b16 %v1736, %v1732
        %v2021 = vpack.c.b16 %v1737, %v1733
        %v2022 = vpack.c.b16 %v1738, %v1734
        %v2023 = vpack.c.b16 %v1739, %v1735
        %v2024 = vpack.c.b16 %v1744, %v1740
        %v2025 = vpack.c.b16 %v1745, %v1741
        %v2026 = vpack.c.b16 %v1746, %v1742
        %v2027 = vpack.c.b16 %v1747, %v1743
        %v2028 = vpack.c.b16 %v1752, %v1748
        %v2029 = vpack.c.b16 %v1753, %v1749
        %v2030 = vpack.c.b16 %v1754, %v1750
        %v2031 = vpack.c.b16 %v1755, %v1751
        %v2032 = vpack.c.b16 %v1760, %v1756
        %v2033 = vpack.c.b16 %v1761, %v1757
        %v2034 = vpack.c.b16 %v1762, %v1758
        %v2035 = vpack.c.b16 %v1763, %v1759
        %v2036 = vpack.c.b16 %v1768, %v1764
        %v2037 = vpack.c.b16 %v1769, %v1765
        %v2038 = vpack.c.b16 %v1770, %v1766
        %v2039 = vpack.c.b16 %v1771, %v1767
        %v2040 = vpack.c.b16 %v1776, %v1772
        %v2041 = vpack.c.b16 %v1777, %v1773
        %v2042 = vpack.c.b16 %v1778, %v1774
        %v2043 = vpack.c.b16 %v1779, %v1775
        %v2044 = vpack.c.b16 %v1784, %v1780
        %v2045 = vpack.c.b16 %v1785, %v1781
        %v2046 = vpack.c.b16 %v1786, %v1782
        %v2047 = vpack.c.b16 %v1787, %v1783
        %v2048 = vpack.c.b16 %v1792, %v1788
        %v2049 = vpack.c.b16 %v1793, %v1789
        %v2050 = vpack.c.b16 %v1794, %v1790
        %v2051 = vpack.c.b16 %v1795, %v1791
        %2308 = vmatprep.subr.bf16.mxu0 %v1825
        %2309 = vmatpush1.bf16.msra.mxu0 %v1824
        %2310 = vmatprep.subr.bf16.mxu0 %v1821
        %2311 = vmatpush1.bf16.msra.mxu0 %v1820
        %2312 = vmatprep.subr.bf16.mxu0 %v1817
        %2313 = vmatpush1.bf16.msra.mxu0 %v1816
        %2314 = vmatprep.subr.bf16.mxu0 %v1813
        %2315 = vmatpush1.bf16.msra.mxu0 %v1812
        %2316 = vmatprep.subr.bf16.mxu0 %v1809
        %2317 = vmatpush1.bf16.msra.mxu0 %v1808
        %2318 = vmatprep.subr.bf16.mxu0 %v1805
        %2319 = vmatpush1.bf16.msra.mxu0 %v1804
        %2320 = vmatprep.subr.bf16.mxu0 %v1801
        %2321 = vmatpush1.bf16.msra.mxu0 %v1800
        %2322 = vmatprep.subr.bf16.mxu0 %v1797
        %2323 = vmatpush1.bf16.msra.mxu0 %v1796
        %2324 = vmatprep.subr.bf16.mxu0 %v1857
        %2325 = vmatpush2.bf16.msra.mxu0 %v1856
        %2326 = vmatprep.subr.bf16.mxu0 %v1853
        %2327 = vmatpush2.bf16.msra.mxu0 %v1852
        %2328 = vmatprep.subr.bf16.mxu0 %v1849
        %2329 = vmatpush2.bf16.msra.mxu0 %v1848
        %2330 = vmatprep.subr.bf16.mxu0 %v1845
        %2331 = vmatpush2.bf16.msra.mxu0 %v1844
        %2332 = vmatprep.subr.bf16.mxu0 %v1841
        %2333 = vmatpush2.bf16.msra.mxu0 %v1840
        %2334 = vmatprep.subr.bf16.mxu0 %v1837
        %2335 = vmatpush2.bf16.msra.mxu0 %v1836
        %2336 = vmatprep.subr.bf16.mxu0 %v1833
        %2337 = vmatpush2.bf16.msra.mxu0 %v1832
        %2338 = vmatprep.subr.bf16.mxu0 %v1829
        %2339 = vmatpush2.bf16.msra.mxu0 %v1828
        %2340 = vmatprep.mubr.bf16.mxu0 %v1013
        %2341 = vmatmul.mubr.bf16.gmra.mxu0 %v1012
        %v2342 = vpop.f32.mrf.mxu0
        %v2343 = vadd.f32 0.0, %v2342
        %v2344 = vpop.f32.mrf.mxu0
        %v2345 = vadd.f32 0.0, %v2344
        %v2346 = vpop.f32.mrf.mxu0
        %v2347 = vadd.f32 0.0, %v2346
        %v2348 = vpop.f32.mrf.mxu0
        %v2349 = vadd.f32 0.0, %v2348
        %2350 = vdwg.mxu0
        %2351 = vmatprep.subr.bf16.mxu0 %v1889
        %2352 = vmatpush1.bf16.msra.mxu0 %v1888
        %2353 = vmatprep.subr.bf16.mxu0 %v1885
        %2354 = vmatpush1.bf16.msra.mxu0 %v1884
        %2355 = vmatprep.subr.bf16.mxu0 %v1881
        %2356 = vmatpush1.bf16.msra.mxu0 %v1880
        %2357 = vmatprep.subr.bf16.mxu0 %v1877
        %2358 = vmatpush1.bf16.msra.mxu0 %v1876
        %2359 = vmatprep.subr.bf16.mxu0 %v1873
        %2360 = vmatpush1.bf16.msra.mxu0 %v1872
        %2361 = vmatprep.subr.bf16.mxu0 %v1869
        %2362 = vmatpush1.bf16.msra.mxu0 %v1868
        %2363 = vmatprep.subr.bf16.mxu0 %v1865
        %2364 = vmatpush1.bf16.msra.mxu0 %v1864
        %2365 = vmatprep.subr.bf16.mxu0 %v1861
        %2366 = vmatpush1.bf16.msra.mxu0 %v1860
        %2367 = vmatprep.subr.bf16.mxu0 %v1921
        %2368 = vmatpush2.bf16.msra.mxu0 %v1920
        %2369 = vmatprep.subr.bf16.mxu0 %v1917
        %2370 = vmatpush2.bf16.msra.mxu0 %v1916
        %2371 = vmatprep.subr.bf16.mxu0 %v1913
        %2372 = vmatpush2.bf16.msra.mxu0 %v1912
        %2373 = vmatprep.subr.bf16.mxu0 %v1909
        %2374 = vmatpush2.bf16.msra.mxu0 %v1908
        %2375 = vmatprep.subr.bf16.mxu0 %v1905
        %2376 = vmatpush2.bf16.msra.mxu0 %v1904
        %2377 = vmatprep.subr.bf16.mxu0 %v1901
        %2378 = vmatpush2.bf16.msra.mxu0 %v1900
        %2379 = vmatprep.subr.bf16.mxu0 %v1897
        %2380 = vmatpush2.bf16.msra.mxu0 %v1896
        %2381 = vmatprep.subr.bf16.mxu0 %v1893
        %2382 = vmatpush2.bf16.msra.mxu0 %v1892
        %2383 = vmatprep.mubr.bf16.mxu0 %v1015
        %2384 = vmatmul.mubr.bf16.gmra.mxu0 %v1014
        %v2385 = vpop.f32.mrf.mxu0
        %v2386 = vadd.f32 %v2343, %v2385
        %v2387 = vpop.f32.mrf.mxu0
        %v2388 = vadd.f32 %v2345, %v2387
        %v2389 = vpop.f32.mrf.mxu0
        %v2390 = vadd.f32 %v2347, %v2389
        %v2391 = vpop.f32.mrf.mxu0
        %v2392 = vadd.f32 %v2349, %v2391
        %2393 = vdwg.mxu0
        %2394 = vmatprep.subr.bf16.mxu0 %v1953
        %2395 = vmatpush1.bf16.msra.mxu0 %v1952
        %2396 = vmatprep.subr.bf16.mxu0 %v1949
        %2397 = vmatpush1.bf16.msra.mxu0 %v1948
        %2398 = vmatprep.subr.bf16.mxu0 %v1945
        %2399 = vmatpush1.bf16.msra.mxu0 %v1944
        %2400 = vmatprep.subr.bf16.mxu0 %v1941
        %2401 = vmatpush1.bf16.msra.mxu0 %v1940
        %2402 = vmatprep.subr.bf16.mxu0 %v1937
        %2403 = vmatpush1.bf16.msra.mxu0 %v1936
        %2404 = vmatprep.subr.bf16.mxu0 %v1933
        %2405 = vmatpush1.bf16.msra.mxu0 %v1932
        %2406 = vmatprep.subr.bf16.mxu0 %v1929
        %2407 = vmatpush1.bf16.msra.mxu0 %v1928
        %2408 = vmatprep.subr.bf16.mxu0 %v1925
        %2409 = vmatpush1.bf16.msra.mxu0 %v1924
        %2410 = vmatprep.subr.bf16.mxu0 %v1985
        %2411 = vmatpush2.bf16.msra.mxu0 %v1984
        %2412 = vmatprep.subr.bf16.mxu0 %v1981
        %2413 = vmatpush2.bf16.msra.mxu0 %v1980
        %2414 = vmatprep.subr.bf16.mxu0 %v1977
        %2415 = vmatpush2.bf16.msra.mxu0 %v1976
        %2416 = vmatprep.subr.bf16.mxu0 %v1973
        %2417 = vmatpush2.bf16.msra.mxu0 %v1972
        %2418 = vmatprep.subr.bf16.mxu0 %v1969
        %2419 = vmatpush2.bf16.msra.mxu0 %v1968
        %2420 = vmatprep.subr.bf16.mxu0 %v1965
        %2421 = vmatpush2.bf16.msra.mxu0 %v1964
        %2422 = vmatprep.subr.bf16.mxu0 %v1961
        %2423 = vmatpush2.bf16.msra.mxu0 %v1960
        %2424 = vmatprep.subr.bf16.mxu0 %v1957
        %2425 = vmatpush2.bf16.msra.mxu0 %v1956
        %2426 = vmatprep.mubr.bf16.mxu0 %v1017
        %2427 = vmatmul.mubr.bf16.gmra.mxu0 %v1016
        %v2428 = vpop.f32.mrf.mxu0
        %v2429 = vadd.f32 %v2386, %v2428
        %v2430 = vpop.f32.mrf.mxu0
        %v2431 = vadd.f32 %v2388, %v2430
        %v2432 = vpop.f32.mrf.mxu0
        %v2433 = vadd.f32 %v2390, %v2432
        %v2434 = vpop.f32.mrf.mxu0
        %v2435 = vadd.f32 %v2392, %v2434
        %2436 = vdwg.mxu0
        %2437 = vmatprep.subr.bf16.mxu0 %v2017
        %2438 = vmatpush1.bf16.msra.mxu0 %v2016
        %2439 = vmatprep.subr.bf16.mxu0 %v2013
        %2440 = vmatpush1.bf16.msra.mxu0 %v2012
        %2441 = vmatprep.subr.bf16.mxu0 %v2009
        %2442 = vmatpush1.bf16.msra.mxu0 %v2008
        %2443 = vmatprep.subr.bf16.mxu0 %v2005
        %2444 = vmatpush1.bf16.msra.mxu0 %v2004
        %2445 = vmatprep.subr.bf16.mxu0 %v2001
        %2446 = vmatpush1.bf16.msra.mxu0 %v2000
        %2447 = vmatprep.subr.bf16.mxu0 %v1997
        %2448 = vmatpush1.bf16.msra.mxu0 %v1996
        %2449 = vmatprep.subr.bf16.mxu0 %v1993
        %2450 = vmatpush1.bf16.msra.mxu0 %v1992
        %2451 = vmatprep.subr.bf16.mxu0 %v1989
        %2452 = vmatpush1.bf16.msra.mxu0 %v1988
        %2453 = vmatprep.subr.bf16.mxu0 %v2049
        %2454 = vmatpush2.bf16.msra.mxu0 %v2048
        %2455 = vmatprep.subr.bf16.mxu0 %v2045
        %2456 = vmatpush2.bf16.msra.mxu0 %v2044
        %2457 = vmatprep.subr.bf16.mxu0 %v2041
        %2458 = vmatpush2.bf16.msra.mxu0 %v2040
        %2459 = vmatprep.subr.bf16.mxu0 %v2037
        %2460 = vmatpush2.bf16.msra.mxu0 %v2036
        %2461 = vmatprep.subr.bf16.mxu0 %v2033
        %2462 = vmatpush2.bf16.msra.mxu0 %v2032
        %2463 = vmatprep.subr.bf16.mxu0 %v2029
        %2464 = vmatpush2.bf16.msra.mxu0 %v2028
        %2465 = vmatprep.subr.bf16.mxu0 %v2025
        %2466 = vmatpush2.bf16.msra.mxu0 %v2024
        %2467 = vmatprep.subr.bf16.mxu0 %v2021
        %2468 = vmatpush2.bf16.msra.mxu0 %v2020
        %2469 = vmatprep.mubr.bf16.mxu0 %v1019
        %2470 = vmatmul.mubr.bf16.gmra.mxu0 %v1018
        %v2471 = vpop.f32.mrf.mxu0
        %v2472 = vadd.f32 %v2429, %v2471
        %v2473 = vpop.f32.mrf.mxu0
        %v2474 = vadd.f32 %v2431, %v2473
        %v2475 = vpop.f32.mrf.mxu0
        %v2476 = vadd.f32 %v2433, %v2475
        %v2477 = vpop.f32.mrf.mxu0
        %v2478 = vadd.f32 %v2435, %v2477
        %2479 = vdwg.mxu0
        %2480 = vmatprep.subr.bf16.mxu0 %v1827
        %2481 = vmatpush1.bf16.msra.mxu0 %v1826
        %2482 = vmatprep.subr.bf16.mxu0 %v1823
        %2483 = vmatpush1.bf16.msra.mxu0 %v1822
        %2484 = vmatprep.subr.bf16.mxu0 %v1819
        %2485 = vmatpush1.bf16.msra.mxu0 %v1818
        %2486 = vmatprep.subr.bf16.mxu0 %v1815
        %2487 = vmatpush1.bf16.msra.mxu0 %v1814
        %2488 = vmatprep.subr.bf16.mxu0 %v1811
        %2489 = vmatpush1.bf16.msra.mxu0 %v1810
        %2490 = vmatprep.subr.bf16.mxu0 %v1807
        %2491 = vmatpush1.bf16.msra.mxu0 %v1806
        %2492 = vmatprep.subr.bf16.mxu0 %v1803
        %2493 = vmatpush1.bf16.msra.mxu0 %v1802
        %2494 = vmatprep.subr.bf16.mxu0 %v1799
        %2495 = vmatpush1.bf16.msra.mxu0 %v1798
        %2496 = vmatprep.subr.bf16.mxu0 %v1859
        %2497 = vmatpush2.bf16.msra.mxu0 %v1858
        %2498 = vmatprep.subr.bf16.mxu0 %v1855
        %2499 = vmatpush2.bf16.msra.mxu0 %v1854
        %2500 = vmatprep.subr.bf16.mxu0 %v1851
        %2501 = vmatpush2.bf16.msra.mxu0 %v1850
        %2502 = vmatprep.subr.bf16.mxu0 %v1847
        %2503 = vmatpush2.bf16.msra.mxu0 %v1846
        %2504 = vmatprep.subr.bf16.mxu0 %v1843
        %2505 = vmatpush2.bf16.msra.mxu0 %v1842
        %2506 = vmatprep.subr.bf16.mxu0 %v1839
        %2507 = vmatpush2.bf16.msra.mxu0 %v1838
        %2508 = vmatprep.subr.bf16.mxu0 %v1835
        %2509 = vmatpush2.bf16.msra.mxu0 %v1834
        %2510 = vmatprep.subr.bf16.mxu0 %v1831
        %2511 = vmatpush2.bf16.msra.mxu0 %v1830
        %2512 = vmatprep.mubr.bf16.mxu0 %v1013
        %2513 = vmatmul.mubr.bf16.gmra.mxu0 %v1012
        %v2514 = vpop.f32.mrf.mxu0
        %v2515 = vadd.f32 0.0, %v2514
        %v2516 = vpop.f32.mrf.mxu0
        %v2517 = vadd.f32 0.0, %v2516
        %v2518 = vpop.f32.mrf.mxu0
        %v2519 = vadd.f32 0.0, %v2518
        %v2520 = vpop.f32.mrf.mxu0
        %v2521 = vadd.f32 0.0, %v2520
        %2522 = vdwg.mxu0
        %2523 = vmatprep.subr.bf16.mxu0 %v1891
        %2524 = vmatpush1.bf16.msra.mxu0 %v1890
        %2525 = vmatprep.subr.bf16.mxu0 %v1887
        %2526 = vmatpush1.bf16.msra.mxu0 %v1886
        %2527 = vmatprep.subr.bf16.mxu0 %v1883
        %2528 = vmatpush1.bf16.msra.mxu0 %v1882
        %2529 = vmatprep.subr.bf16.mxu0 %v1879
        %2530 = vmatpush1.bf16.msra.mxu0 %v1878
        %2531 = vmatprep.subr.bf16.mxu0 %v1875
        %2532 = vmatpush1.bf16.msra.mxu0 %v1874
        %2533 = vmatprep.subr.bf16.mxu0 %v1871
        %2534 = vmatpush1.bf16.msra.mxu0 %v1870
        %2535 = vmatprep.subr.bf16.mxu0 %v1867
        %2536 = vmatpush1.bf16.msra.mxu0 %v1866
        %2537 = vmatprep.subr.bf16.mxu0 %v1863
        %2538 = vmatpush1.bf16.msra.mxu0 %v1862
        %2539 = vmatprep.subr.bf16.mxu0 %v1923
        %2540 = vmatpush2.bf16.msra.mxu0 %v1922
        %2541 = vmatprep.subr.bf16.mxu0 %v1919
        %2542 = vmatpush2.bf16.msra.mxu0 %v1918
        %2543 = vmatprep.subr.bf16.mxu0 %v1915
        %2544 = vmatpush2.bf16.msra.mxu0 %v1914
        %2545 = vmatprep.subr.bf16.mxu0 %v1911
        %2546 = vmatpush2.bf16.msra.mxu0 %v1910
        %2547 = vmatprep.subr.bf16.mxu0 %v1907
        %2548 = vmatpush2.bf16.msra.mxu0 %v1906
        %2549 = vmatprep.subr.bf16.mxu0 %v1903
        %2550 = vmatpush2.bf16.msra.mxu0 %v1902
        %2551 = vmatprep.subr.bf16.mxu0 %v1899
        %2552 = vmatpush2.bf16.msra.mxu0 %v1898
        %2553 = vmatprep.subr.bf16.mxu0 %v1895
        %2554 = vmatpush2.bf16.msra.mxu0 %v1894
        %2555 = vmatprep.mubr.bf16.mxu0 %v1015
        %2556 = vmatmul.mubr.bf16.gmra.mxu0 %v1014
        %v2557 = vpop.f32.mrf.mxu0
        %v2558 = vadd.f32 %v2515, %v2557
        %v2559 = vpop.f32.mrf.mxu0
        %v2560 = vadd.f32 %v2517, %v2559
        %v2561 = vpop.f32.mrf.mxu0
        %v2562 = vadd.f32 %v2519, %v2561
        %v2563 = vpop.f32.mrf.mxu0
        %v2564 = vadd.f32 %v2521, %v2563
        %2565 = vdwg.mxu0
        %2566 = vmatprep.subr.bf16.mxu0 %v1955
        %2567 = vmatpush1.bf16.msra.mxu0 %v1954
        %2568 = vmatprep.subr.bf16.mxu0 %v1951
        %2569 = vmatpush1.bf16.msra.mxu0 %v1950
        %2570 = vmatprep.subr.bf16.mxu0 %v1947
        %2571 = vmatpush1.bf16.msra.mxu0 %v1946
        %2572 = vmatprep.subr.bf16.mxu0 %v1943
        %2573 = vmatpush1.bf16.msra.mxu0 %v1942
        %2574 = vmatprep.subr.bf16.mxu0 %v1939
        %2575 = vmatpush1.bf16.msra.mxu0 %v1938
        %2576 = vmatprep.subr.bf16.mxu0 %v1935
        %2577 = vmatpush1.bf16.msra.mxu0 %v1934
        %2578 = vmatprep.subr.bf16.mxu0 %v1931
        %2579 = vmatpush1.bf16.msra.mxu0 %v1930
        %2580 = vmatprep.subr.bf16.mxu0 %v1927
        %2581 = vmatpush1.bf16.msra.mxu0 %v1926
        %2582 = vmatprep.subr.bf16.mxu0 %v1987
        %2583 = vmatpush2.bf16.msra.mxu0 %v1986
        %2584 = vmatprep.subr.bf16.mxu0 %v1983
        %2585 = vmatpush2.bf16.msra.mxu0 %v1982
        %2586 = vmatprep.subr.bf16.mxu0 %v1979
        %2587 = vmatpush2.bf16.msra.mxu0 %v1978
        %2588 = vmatprep.subr.bf16.mxu0 %v1975
        %2589 = vmatpush2.bf16.msra.mxu0 %v1974
        %2590 = vmatprep.subr.bf16.mxu0 %v1971
        %2591 = vmatpush2.bf16.msra.mxu0 %v1970
        %2592 = vmatprep.subr.bf16.mxu0 %v1967
        %2593 = vmatpush2.bf16.msra.mxu0 %v1966
        %2594 = vmatprep.subr.bf16.mxu0 %v1963
        %2595 = vmatpush2.bf16.msra.mxu0 %v1962
        %2596 = vmatprep.subr.bf16.mxu0 %v1959
        %2597 = vmatpush2.bf16.msra.mxu0 %v1958
        %2598 = vmatprep.mubr.bf16.mxu0 %v1017
        %2599 = vmatmul.mubr.bf16.gmra.mxu0 %v1016
        %v2600 = vpop.f32.mrf.mxu0
        %v2601 = vadd.f32 %v2558, %v2600
        %v2602 = vpop.f32.mrf.mxu0
        %v2603 = vadd.f32 %v2560, %v2602
        %v2604 = vpop.f32.mrf.mxu0
        %v2605 = vadd.f32 %v2562, %v2604
        %v2606 = vpop.f32.mrf.mxu0
        %v2607 = vadd.f32 %v2564, %v2606
        %2608 = vdwg.mxu0
        %2609 = vmatprep.subr.bf16.mxu0 %v2019
        %2610 = vmatpush1.bf16.msra.mxu0 %v2018
        %2611 = vmatprep.subr.bf16.mxu0 %v2015
        %2612 = vmatpush1.bf16.msra.mxu0 %v2014
        %2613 = vmatprep.subr.bf16.mxu0 %v2011
        %2614 = vmatpush1.bf16.msra.mxu0 %v2010
        %2615 = vmatprep.subr.bf16.mxu0 %v2007
        %2616 = vmatpush1.bf16.msra.mxu0 %v2006
        %2617 = vmatprep.subr.bf16.mxu0 %v2003
        %2618 = vmatpush1.bf16.msra.mxu0 %v2002
        %2619 = vmatprep.subr.bf16.mxu0 %v1999
        %2620 = vmatpush1.bf16.msra.mxu0 %v1998
        %2621 = vmatprep.subr.bf16.mxu0 %v1995
        %2622 = vmatpush1.bf16.msra.mxu0 %v1994
        %2623 = vmatprep.subr.bf16.mxu0 %v1991
        %2624 = vmatpush1.bf16.msra.mxu0 %v1990
        %2625 = vmatprep.subr.bf16.mxu0 %v2051
        %2626 = vmatpush2.bf16.msra.mxu0 %v2050
        %2627 = vmatprep.subr.bf16.mxu0 %v2047
        %2628 = vmatpush2.bf16.msra.mxu0 %v2046
        %2629 = vmatprep.subr.bf16.mxu0 %v2043
        %2630 = vmatpush2.bf16.msra.mxu0 %v2042
        %2631 = vmatprep.subr.bf16.mxu0 %v2039
        %2632 = vmatpush2.bf16.msra.mxu0 %v2038
        %2633 = vmatprep.subr.bf16.mxu0 %v2035
        %2634 = vmatpush2.bf16.msra.mxu0 %v2034
        %2635 = vmatprep.subr.bf16.mxu0 %v2031
        %2636 = vmatpush2.bf16.msra.mxu0 %v2030
        %2637 = vmatprep.subr.bf16.mxu0 %v2027
        %2638 = vmatpush2.bf16.msra.mxu0 %v2026
        %2639 = vmatprep.subr.bf16.mxu0 %v2023
        %2640 = vmatpush2.bf16.msra.mxu0 %v2022
        %2641 = vmatprep.mubr.bf16.mxu0 %v1019
        %2642 = vmatmul.mubr.bf16.gmra.mxu0 %v1018
        %v2643 = vpop.f32.mrf.mxu0
        %v2644 = vadd.f32 %v2601, %v2643
        %v2645 = vpop.f32.mrf.mxu0
        %v2646 = vadd.f32 %v2603, %v2645
        %v2647 = vpop.f32.mrf.mxu0
        %v2648 = vadd.f32 %v2605, %v2647
        %v2649 = vpop.f32.mrf.mxu0
        %v2650 = vadd.f32 %v2607, %v2649
        %2651 = vdwg.mxu0
        %v2652 = vld [vmem:[%s2] sm:$0xff]
        %v2653 = vld [vmem:[%s2 + $0x8] sm:$0xff]
        %2655 = vset.pattern.permute.xlu0 0
        %2656 = vperm.xlu0 %2655, %v2652
        %v2657 = vpop.permute.xlu0 %2656
        %2660 = vset.pattern.permute.xlu0 0
        %2661 = vperm.xlu0 %2660, %v2653
        %v2662 = vpop.permute.xlu0 %2661
        %v2664 = vmul.f32 %v2472, %v2657
        %v2665 = vmul.f32 %v2474, %v2657
        %v2666 = vmul.f32 %v2644, %v2657
        %v2667 = vmul.f32 %v2646, %v2657
        %v2668 = vmul.f32 %v2476, %v2662
        %v2669 = vmul.f32 %v2478, %v2662
        %v2670 = vmul.f32 %v2648, %v2662
        %v2671 = vmul.f32 %v2650, %v2662
        %v2672 = vld [vmem:[%s3] sm:$0xff]
        %v2673 = vld [vmem:[%s3 + $0x8] sm:$0xff]
        %2675 = vset.pattern.permute.xlu0 0
        %2676 = vperm.xlu0 %2675, %v2672
        %v2677 = vpop.permute.xlu0 %2676
        %2680 = vset.pattern.permute.xlu0 0
        %2681 = vperm.xlu0 %2680, %v2673
        %v2682 = vpop.permute.xlu0 %2681
        %v2684 = vadd.f32 %v2664, %v2677
        %v2685 = vadd.f32 %v2665, %v2677
        %v2686 = vadd.f32 %v2666, %v2677
        %v2687 = vadd.f32 %v2667, %v2677
        %v2688 = vadd.f32 %v2668, %v2682
        %v2689 = vadd.f32 %v2669, %v2682
        %v2690 = vadd.f32 %v2670, %v2682
        %v2691 = vadd.f32 %v2671, %v2682
        %v2692 = vmax.f32 %v2684, 0.0
        %v2693 = vmax.f32 %v2685, 0.0
        %v2694 = vmax.f32 %v2686, 0.0
        %v2695 = vmax.f32 %v2687, 0.0
        %v2696 = vmax.f32 %v2688, 0.0
        %v2697 = vmax.f32 %v2689, 0.0
        %v2698 = vmax.f32 %v2690, 0.0
        %v2699 = vmax.f32 %v2691, 0.0
        %2700 = vst [vmem:[%s721] sm:$0xff] %v2692
        %2701 = vst [vmem:[%s721 + $0x8] sm:$0xff] %v2693
        %2702 = vst [vmem:[%s721 + $0x10] sm:$0xff] %v2694
        %2703 = vst [vmem:[%s721 + $0x18] sm:$0xff] %v2695
        %2704 = vst [vmem:[%s721 + $0x20] sm:$0xff] %v2696
        %2705 = vst [vmem:[%s721 + $0x28] sm:$0xff] %v2697
        %2706 = vst [vmem:[%s721 + $0x30] sm:$0xff] %v2698
        %2707 = vst [vmem:[%s721 + $0x38] sm:$0xff] %v2699
        %s2708 = sand.u32 %s112, 1
        %s2709 = sand.u32 %s112, 1
        %s2710 = smul.addr %s2709, 64
        %s2711 = scalar_lea.vmem [#allocation3], %s2710
        // Predicated region
        $region60: #{cnn3d_block.3} parent=54 // pred_check
          %p2712 = pneg %p122
        $region61: #{cnn3d_block.3} parent=54 // pred_check_branch
          %2714 = sbr.rel (%p2712) target = $region63
        $region62: #{cnn3d_block.3} parent=54 // pred_region
          %s2715 = smul.u32 4, %s15
          %s2716 = smul.addr %s2715, 8
          %s2717 = scalar_lea.vmem %s4, %s2716
          // Predicated region
          $region64: #{cnn3d_block.3} parent=62 // pred_check
            _
          $region65: #{cnn3d_block.3} parent=62 // pred_check_branch
            %2719 = sbr.rel (0) target = $region67
          $region66: #{cnn3d_block.3} parent=62 // pred_region
            // Predicated region
            $region68: #{cnn3d_block.3} parent=66 // pred_check
              _
            $region69: #{cnn3d_block.3} parent=66 // pred_check_branch
              %2721 = sbr.rel (0) target = $region71
            $region70: #{cnn3d_block.3} parent=66 // pred_region
              loop: start=0, step=1, limit=1
              $region72: #{cnn3d_block.3} parent=70 // loop_pre_header
                _
              $region73: #{cnn3d_block.3} parent=70 // loop_header
                %s2723 = sphi 0, %s2727
                %p2724 = scmp.ge.s32.totalorder %s2723, 1
                %s2728 = sphi %s2711, %s2711
                %s2729 = sphi %s2717, %s2717
              $region74: #{cnn3d_block.3} parent=70 // loop_header_branch
                %2726 = sbr.rel (%p2724) target = $region78
              $region75: #{cnn3d_block.3} parent=70 // loop_body
                %v2730 = vld [vmem:[%s2728] sm:$0xff]
                %2731 = vst [vmem:[%s2729] sm:$0xff] %v2730
                %v2732 = vld [vmem:[%s2728 + $0x8] sm:$0xff]
                %2733 = vst [vmem:[%s2729 + $0x8] sm:$0xff] %v2732
                %v2734 = vld [vmem:[%s2728 + $0x10] sm:$0xff]
                %2735 = vst [vmem:[%s2729 + $0x10] sm:$0xff] %v2734
                %v2736 = vld [vmem:[%s2728 + $0x18] sm:$0xff]
                %2737 = vst [vmem:[%s2729 + $0x18] sm:$0xff] %v2736
                %v2738 = vld [vmem:[%s2728 + $0x20] sm:$0xff]
                %2739 = vst [vmem:[%s2729 + $0x40] sm:$0xff] %v2738
                %v2740 = vld [vmem:[%s2728 + $0x28] sm:$0xff]
                %2741 = vst [vmem:[%s2729 + $0x48] sm:$0xff] %v2740
                %v2742 = vld [vmem:[%s2728 + $0x30] sm:$0xff]
                %2743 = vst [vmem:[%s2729 + $0x50] sm:$0xff] %v2742
                %v2744 = vld [vmem:[%s2728 + $0x38] sm:$0xff]
                %2745 = vst [vmem:[%s2729 + $0x58] sm:$0xff] %v2744
              $region76: #{cnn3d_block.3} parent=70 // loop_footer
                %s2727 = sadd.s32 1, %s2723
              $region77: #{cnn3d_block.3} parent=70 // loop_footer_branch
                %2722 = sbr.rel target = $region73
              $region78: #{cnn3d_block.3} parent=70 // loop_exit
                _
            $region71: #{cnn3d_block.3} parent=66 // pred_fallthru
              _
            // Predicated region
            $region79: #{cnn3d_block.3} parent=66 // pred_check
              _
            $region80: #{cnn3d_block.3} parent=66 // pred_check_branch
              %2747 = sbr.rel target = $region82
            $region81: #{cnn3d_block.3} parent=66 // pred_region
              _
            $region82: #{cnn3d_block.3} parent=66 // pred_fallthru
              _
          $region67: #{cnn3d_block.3} parent=62 // pred_fallthru
            _
          %2748 = vnop
        $region63: #{cnn3d_block.3} parent=54 // pred_fallthru
          _
      $region55: #{cnn3d_block.3} parent=5 // pred_fallthru
        _
      %p2749 = scmp.le.s32.totalorder 2, %s10
      // Predicated region
      $region83: #{cnn3d_block.3} parent=5 // pred_check
        %p2750 = pneg %p2749
      $region84: #{cnn3d_block.3} parent=5 // pred_check_branch
        %2752 = sbr.rel (%p2750) target = $region86
      $region85: #{cnn3d_block.3} parent=5 // pred_region
        %s2753 = ssub.s32 %s10, 2
        // Predicated region
        $region87: #{cnn3d_block.3} parent=85 // pred_check
          %p2754 = pneg %p128
        $region88: #{cnn3d_block.3} parent=85 // pred_check_branch
          %2756 = sbr.rel (%p2754) target = $region90
        $region89: #{cnn3d_block.3} parent=85 // pred_region
          %s2757 = sand.u32 %s113, 1
          %s2758 = sand.u32 %s113, 1
          %s2759 = smul.addr %s2758, 64
          %s2760 = scalar_lea.vmem [#allocation3], %s2759
        $region90: #{cnn3d_block.3} parent=85 // pred_fallthru
          _
      $region86: #{cnn3d_block.3} parent=5 // pred_fallthru
        _
    $region6: #{cnn3d_block.3} parent=1 // loop_footer
      %s14 = sadd.s32 1, %s10
    $region7: #{cnn3d_block.3} parent=1 // loop_footer_branch
      %9 = sbr.rel target = $region3
    $region8: #{cnn3d_block.3} parent=1 // loop_exit
      _

</llo_original>
